<compile_context>
chip_gen: v7x
topology: tpu7x:2x2x1
jax: 0.10.0
libtpu: 0.0.40
codegen_flags: <defaults>
</compile_context>

<pallas_src>
import math
import functools

import jax
import jax.numpy as jnp
from jax.experimental import pallas as pl
from jax.experimental.pallas import tpu as pltpu

NEG_INF = -1e30     # large-negative additive mask (avoids inf-inf NaN inside softmax)
LANES = 128
LN_EPS = 1e-5


def _round_up(x, m):
    return (x + m - 1) // m * m


def _compiler_params():
    return pltpu.CompilerParams(
        dimension_semantics=("parallel",),
        vmem_limit_bytes=32 * 1024 * 1024,
    )


# ----------------------------------------------------------------------------
# In-kernel helpers (operate on loaded values, all math f32 unless on the MXU)
# ----------------------------------------------------------------------------

def _layernorm_f32(y, g, b):
    mu = jnp.mean(y, axis=-1, keepdims=True)
    yc = y - mu
    var = jnp.mean(yc * yc, axis=-1, keepdims=True)
    return yc * jax.lax.rsqrt(var + LN_EPS) * g + b


def _attention_core(q, k, v, mask, wo, bo, nhead):
    """q:(Lq,E) k,v:(Lk,E) f32 (softmax scale already folded into Wq).
    mask broadcastable to (Lq,Lk) additive f32.  Returns (Lq,E) f32 after out-proj."""
    Lq, E = q.shape
    Dh = E // nhead
    qb = q.astype(jnp.bfloat16)
    kb = k.astype(jnp.bfloat16)
    vb = v.astype(jnp.bfloat16)
    ctx_parts = []
    for h in range(nhead):                               # static unroll, H is tiny
        lo, hi = h * Dh, (h + 1) * Dh
        s = jax.lax.dot_general(                         # QK^T, contraction over Dh
            qb[:, lo:hi], kb[:, lo:hi],
            dimension_numbers=(((1,), (1,)), ((), ())),
            preferred_element_type=jnp.float32) + mask   # (Lq, Lk) f32
        s = s - jnp.max(s, axis=-1, keepdims=True)
        p = jnp.exp(s)
        l = jnp.sum(p, axis=-1, keepdims=True)
        ctx_parts.append(
            jnp.dot(p.astype(jnp.bfloat16), vb[:, lo:hi],
                    preferred_element_type=jnp.float32) / l)
    # Concat heads on the lane axis -> single (Lq,E)x(E,E) out-projection matmul
    ctx = jnp.concatenate(ctx_parts, axis=-1).astype(jnp.bfloat16)   # (Lq, E)
    return jnp.dot(ctx, wo, preferred_element_type=jnp.float32) + bo


# ----------------------------------------------------------------------------
# Fused block kernels
# ----------------------------------------------------------------------------

def _self_attn_ln_kernel(x_ref, wqkv_ref, bqkv_ref, wo_ref, bo_ref,
                         amask_ref, kpm_ref, g_ref, b_ref, o_ref, *, nhead):
    """LayerNorm(x + SelfAttention(x)) for one batch element (post-LN)."""
    E = x_ref.shape[2]
    x = x_ref[0]                                                        # (L, E) bf16
    qkv = jnp.dot(x, wqkv_ref[...],
                  preferred_element_type=jnp.float32) + bqkv_ref[...]   # (L, 3E) f32
    mask = amask_ref[...] + kpm_ref[0]                                  # (L, L) f32
    attn = _attention_core(qkv[:, :E], qkv[:, E:2 * E], qkv[:, 2 * E:],
                           mask, wo_ref[...], bo_ref[...], nhead)
    y = x.astype(jnp.float32) + attn
    o_ref[0] = _layernorm_f32(y, g_ref[...], b_ref[...]).astype(o_ref.dtype)


def _cross_attn_ln_kernel(x_ref, mem_ref, wq_ref, bq_ref, wkv_ref, bkv_ref,
                          wo_ref, bo_ref, kpm_ref, g_ref, b_ref, o_ref, *, nhead):
    """LayerNorm(x + CrossAttention(x, memory)) for one batch element."""
    E = x_ref.shape[2]
    x = x_ref[0]                                                        # (Lq, E) bf16
    m = mem_ref[0]                                                      # (Lk, E) bf16
    q = jnp.dot(x, wq_ref[...], preferred_element_type=jnp.float32) + bq_ref[...]
    kv = jnp.dot(m, wkv_ref[...], preferred_element_type=jnp.float32) + bkv_ref[...]
    attn = _attention_core(q, kv[:, :E], kv[:, E:], kpm_ref[0],
                           wo_ref[...], bo_ref[...], nhead)
    y = x.astype(jnp.float32) + attn
    o_ref[0] = _layernorm_f32(y, g_ref[...], b_ref[...]).astype(o_ref.dtype)


def _ffn_ln_kernel(x_ref, w1_ref, b1_ref, w2_ref, b2_ref, g_ref, b_ref, o_ref):
    """LayerNorm(x + lin2(relu(lin1(x)))) for one batch element."""
    x = x_ref[0]                                                        # (L, E) bf16
    h = jnp.dot(x, w1_ref[...], preferred_element_type=jnp.float32) + b1_ref[...]
    h = jnp.maximum(h, 0.0)                                             # ReLU in f32
    y = jnp.dot(h.astype(jnp.bfloat16), w2_ref[...],
                preferred_element_type=jnp.float32) + b2_ref[...]
    y = x.astype(jnp.float32) + y
    o_ref[0] = _layernorm_f32(y, g_ref[...], b_ref[...]).astype(o_ref.dtype)


def _ln_kernel(x_ref, g_ref, b_ref, o_ref):
    """Encoder final LayerNorm."""
    y = x_ref[0].astype(jnp.float32)
    o_ref[0] = _layernorm_f32(y, g_ref[...], b_ref[...]).astype(o_ref.dtype)


def _ln_generator_kernel(x_ref, g_ref, b_ref, wg_ref, bg_ref, o_ref):
    """Decoder final LayerNorm fused with the generator linear (lane-padded vocab)."""
    y = _layernorm_f32(x_ref[0].astype(jnp.float32), g_ref[...], b_ref[...])
    o_ref[0] = jnp.dot(y.astype(jnp.bfloat16), wg_ref[...],
                       preferred_element_type=jnp.float32) + bg_ref[...]


# ----------------------------------------------------------------------------
# pallas_call wrappers (grid over batch -> >=2 parallel steps for dual-TC chips)
# ----------------------------------------------------------------------------

def run_self_attn_block(x, p, attn_mask, kpm_add, nhead):
    """x:(B,L,E) bf16, attn_mask:(L,L) f32, kpm_add:(B,1,L) f32 -> (B,L,E) bf16."""
    B, L, E = x.shape
    kern = functools.partial(_self_attn_ln_kernel, nhead=nhead)
    return pl.pallas_call(
        kern,
        out_shape=jax.ShapeDtypeStruct((B, L, E), jnp.bfloat16),
        grid=(B,),
        in_specs=[
            pl.BlockSpec((1, L, E), lambda i: (i, 0, 0)),
            pl.BlockSpec((E, 3 * E), lambda i: (0, 0)),
            pl.BlockSpec((1, 3 * E), lambda i: (0, 0)),
            pl.BlockSpec((E, E), lambda i: (0, 0)),
            pl.BlockSpec((1, E), lambda i: (0, 0)),
            pl.BlockSpec((L, L), lambda i: (0, 0)),
            pl.BlockSpec((1, 1, L), lambda i: (i, 0, 0)),
            pl.BlockSpec((1, E), lambda i: (0, 0)),
            pl.BlockSpec((1, E), lambda i: (0, 0)),
        ],
        out_specs=pl.BlockSpec((1, L, E), lambda i: (i, 0, 0)),
        compiler_params=_compiler_params(),
    )(x, p["wqkv"], p["bqkv"], p["wo"], p["bo"],
      attn_mask, kpm_add, p["ln_g"], p["ln_b"])


def run_cross_attn_block(x, memory, p, kpm_add, nhead):
    """x:(B,Lq,E) bf16, memory:(B,Lk,E) bf16, kpm_add:(B,1,Lk) f32 -> (B,Lq,E) bf16."""
    B, Lq, E = x.shape
    Lk = memory.shape[1]
    kern = functools.partial(_cross_attn_ln_kernel, nhead=nhead)
    return pl.pallas_call(
        kern,
        out_shape=jax.ShapeDtypeStruct((B, Lq, E), jnp.bfloat16),
        grid=(B,),
        in_specs=[
            pl.BlockSpec((1, Lq, E), lambda i: (i, 0, 0)),
            pl.BlockSpec((1, Lk, E), lambda i: (i, 0, 0)),
            pl.BlockSpec((E, E), lambda i: (0, 0)),
            pl.BlockSpec((1, E), lambda i: (0, 0)),
            pl.BlockSpec((E, 2 * E), lambda i: (0, 0)),
            pl.BlockSpec((1, 2 * E), lambda i: (0, 0)),
            pl.BlockSpec((E, E), lambda i: (0, 0)),
            pl.BlockSpec((1, E), lambda i: (0, 0)),
            pl.BlockSpec((1, 1, Lk), lambda i: (i, 0, 0)),
            pl.BlockSpec((1, E), lambda i: (0, 0)),
            pl.BlockSpec((1, E), lambda i: (0, 0)),
        ],
        out_specs=pl.BlockSpec((1, Lq, E), lambda i: (i, 0, 0)),
        compiler_params=_compiler_params(),
    )(x, memory, p["wq"], p["bq"], p["wkv"], p["bkv"],
      p["wo"], p["bo"], kpm_add, p["ln_g"], p["ln_b"])


def run_ffn_block(x, p):
    B, L, E = x.shape
    F = p["w1"].shape[1]
    return pl.pallas_call(
        _ffn_ln_kernel,
        out_shape=jax.ShapeDtypeStruct((B, L, E), jnp.bfloat16),
        grid=(B,),
        in_specs=[
            pl.BlockSpec((1, L, E), lambda i: (i, 0, 0)),
            pl.BlockSpec((E, F), lambda i: (0, 0)),
            pl.BlockSpec((1, F), lambda i: (0, 0)),
            pl.BlockSpec((F, E), lambda i: (0, 0)),
            pl.BlockSpec((1, E), lambda i: (0, 0)),
            pl.BlockSpec((1, E), lambda i: (0, 0)),
            pl.BlockSpec((1, E), lambda i: (0, 0)),
        ],
        out_specs=pl.BlockSpec((1, L, E), lambda i: (i, 0, 0)),
        compiler_params=_compiler_params(),
    )(x, p["w1"], p["b1"], p["w2"], p["b2"], p["ln_g"], p["ln_b"])


def run_layernorm(x, g, b):
    B, L, E = x.shape
    return pl.pallas_call(
        _ln_kernel,
        out_shape=jax.ShapeDtypeStruct((B, L, E), jnp.bfloat16),
        grid=(B,),
        in_specs=[
            pl.BlockSpec((1, L, E), lambda i: (i, 0, 0)),
            pl.BlockSpec((1, E), lambda i: (0, 0)),
            pl.BlockSpec((1, E), lambda i: (0, 0)),
        ],
        out_specs=pl.BlockSpec((1, L, E), lambda i: (i, 0, 0)),
        compiler_params=_compiler_params(),
    )(x, g, b)


def run_ln_generator(x, g, b, gen):
    B, L, E = x.shape
    Vp = gen["w"].shape[1]
    return pl.pallas_call(
        _ln_generator_kernel,
        out_shape=jax.ShapeDtypeStruct((B, L, Vp), jnp.float32),
        grid=(B,),
        in_specs=[
            pl.BlockSpec((1, L, E), lambda i: (i, 0, 0)),
            pl.BlockSpec((1, E), lambda i: (0, 0)),
            pl.BlockSpec((1, E), lambda i: (0, 0)),
            pl.BlockSpec((E, Vp), lambda i: (0, 0)),
            pl.BlockSpec((1, Vp), lambda i: (0, 0)),
        ],
        out_specs=pl.BlockSpec((1, L, Vp), lambda i: (i, 0, 0)),
        compiler_params=_compiler_params(),
    )(x, g, b, gen["w"], gen["b"])


# ----------------------------------------------------------------------------
# Forward pass (glue in JAX, hot paths fused in Pallas)
# ----------------------------------------------------------------------------

def seq2seq_forward(params, src, trg, src_mask, tgt_mask,
                    src_padding_mask, tgt_padding_mask, memory_key_padding_mask,
                    nhead):
    S = src.shape[0]
    T = trg.shape[0]

    # Token embedding (* sqrt(E) folded into the tables) + positional encoding as plain
    # JAX glue (dropout = identity in eval); residual stream carried batch-major bf16.
    src_emb = jnp.take(params["src_tok_emb"], src, axis=0) + params["pos_emb"][:S]
    tgt_emb = jnp.take(params["tgt_tok_emb"], trg, axis=0) + params["pos_emb"][:T]
    x = src_emb.transpose(1, 0, 2).astype(jnp.bfloat16)   # (B, S, E)
    y = tgt_emb.transpose(1, 0, 2).astype(jnp.bfloat16)   # (B, T, E)

    # Additive key-padding rows (B,1,Lk) f32 — no (B,Lq,Lk) mask materialized in HBM.
    def kpm_rows(kpm):
        return jnp.where(kpm, NEG_INF, 0.0).astype(jnp.float32)[:, None, :]

    src_kpm = kpm_rows(src_padding_mask)
    tgt_kpm = kpm_rows(tgt_padding_mask)
    mem_kpm = kpm_rows(memory_key_padding_mask)
    src_mask = src_mask.astype(jnp.float32)
    tgt_mask = tgt_mask.astype(jnp.float32)

    # Encoder (post-LN layers) + final encoder norm
    for lp in params["encoder_layers"]:
        x = run_self_attn_block(x, lp["sa"], src_mask, src_kpm, nhead)
        x = run_ffn_block(x, lp["ffn"])
    memory = run_layernorm(x, params["enc_norm_g"], params["enc_norm_b"])

    # Decoder (post-LN layers); final decoder norm fused into the generator kernel
    for lp in params["decoder_layers"]:
        y = run_self_attn_block(y, lp["sa"], tgt_mask, tgt_kpm, nhead)
        y = run_cross_attn_block(y, memory, lp["ca"], mem_kpm, nhead)
        y = run_ffn_block(y, lp["ffn"])

    logits = run_ln_generator(y, params["dec_norm_g"], params["dec_norm_b"],
                              params["gen"])              # (B, T, Vp) f32
    V = params["gen"]["n"]
    return logits[:, :, :V].transpose(1, 0, 2)             # (T, B, V)


# ----------------------------------------------------------------------------
# Deterministic parameter construction
# ----------------------------------------------------------------------------

def _normal(key, shape, std=0.02):
    return jax.random.normal(key, shape, jnp.float32) * std


def init_self_attn(key, E, H):
    k1, k2 = jax.random.split(key)
    scale = 1.0 / math.sqrt(E // H)
    wqkv = _normal(k1, (E, 3 * E))
    wqkv = wqkv.at[:, :E].multiply(scale)        # fold 1/sqrt(Dh) into Wq
    return dict(
        wqkv=wqkv.astype(jnp.bfloat16),
        bqkv=jnp.zeros((1, 3 * E), jnp.float32),
        wo=_normal(k2, (E, E)).astype(jnp.bfloat16),
        bo=jnp.zeros((1, E), jnp.float32),
        ln_g=jnp.ones((1, E), jnp.float32),
        ln_b=jnp.zeros((1, E), jnp.float32),
    )


def init_cross_attn(key, E, H):
    k1, k2, k3 = jax.random.split(key, 3)
    scale = 1.0 / math.sqrt(E // H)
    return dict(
        wq=(_normal(k1, (E, E)) * scale).astype(jnp.bfloat16),   # scale folded into Wq
        bq=jnp.zeros((1, E), jnp.float32),
        wkv=_normal(k2, (E, 2 * E)).astype(jnp.bfloat16),        # fused K|V projection
        bkv=jnp.zeros((1, 2 * E), jnp.float32),
        wo=_normal(k3, (E, E)).astype(jnp.bfloat16),
        bo=jnp.zeros((1, E), jnp.float32),
        ln_g=jnp.ones((1, E), jnp.float32),
        ln_b=jnp.zeros((1, E), jnp.float32),
    )


def init_ffn(key, E, F):
    k1, k2 = jax.random.split(key)
    return dict(
        w1=_normal(k1, (E, F)).astype(jnp.bfloat16),
        b1=jnp.zeros((1, F), jnp.float32),
        w2=_normal(k2, (F, E)).astype(jnp.bfloat16),
        b2=jnp.zeros((1, E), jnp.float32),
        ln_g=jnp.ones((1, E), jnp.float32),
        ln_b=jnp.zeros((1, E), jnp.float32),
    )


def init_encoder_layer(key, E, F, H):
    k1, k2 = jax.random.split(key)
    return dict(sa=init_self_attn(k1, E, H), ffn=init_ffn(k2, E, F))


def init_decoder_layer(key, E, F, H):
    k1, k2, k3 = jax.random.split(key, 3)
    return dict(sa=init_self_attn(k1, E, H), ca=init_cross_attn(k2, E, H),
                ffn=init_ffn(k3, E, F))


def init_generator(key, E, V):
    Vp = _round_up(V, LANES)                      # lane-dense padded vocab
    w = jnp.zeros((E, Vp), jnp.float32).at[:, :V].set(_normal(key, (E, V)))
    return dict(w=w.astype(jnp.bfloat16), b=jnp.zeros((1, Vp), jnp.float32), n=V)


def make_pos_embedding(emb_size, maxlen=5000):
    den = jnp.exp(-jnp.arange(0, emb_size, 2, dtype=jnp.float32)
                  * math.log(10000.0) / emb_size)
    pos = jnp.arange(0, maxlen, dtype=jnp.float32).reshape(maxlen, 1)
    pe = jnp.zeros((maxlen, emb_size), jnp.float32)
    pe = pe.at[:, 0::2].set(jnp.sin(pos * den))
    pe = pe.at[:, 1::2].set(jnp.cos(pos * den))
    return pe[:, None, :]                         # (maxlen, 1, emb_size)


def init_params(key, num_encoder_layers, num_decoder_layers, emb_size, nhead,
                src_vocab_size, tgt_vocab_size, dim_feedforward):
    keys = jax.random.split(key, 3 + num_encoder_layers + num_decoder_layers)
    enc_keys = keys[3:3 + num_encoder_layers]
    dec_keys = keys[3 + num_encoder_layers:]
    scale = math.sqrt(emb_size)
    return dict(
        emb_size=emb_size,
        # TokenEmbedding's * sqrt(E) folded into the tables (one-time init cost)
        src_tok_emb=_normal(keys[0], (src_vocab_size, emb_size), std=1.0) * scale,
        tgt_tok_emb=_normal(keys[1], (tgt_vocab_size, emb_size), std=1.0) * scale,
        pos_emb=make_pos_embedding(emb_size),
        encoder_layers=[init_encoder_layer(k, emb_size, dim_feedforward, nhead)
                        for k in enc_keys],
        decoder_layers=[init_decoder_layer(k, emb_size, dim_feedforward, nhead)
                        for k in dec_keys],
        enc_norm_g=jnp.ones((1, emb_size), jnp.float32),
        enc_norm_b=jnp.zeros((1, emb_size), jnp.float32),
        dec_norm_g=jnp.ones((1, emb_size), jnp.float32),
        dec_norm_b=jnp.zeros((1, emb_size), jnp.float32),
        gen=init_generator(keys[2], emb_size, tgt_vocab_size),
    )


# ----------------------------------------------------------------------------
# Main
# ----------------------------------------------------------------------------

if __name__ == "__main__":
    # small config consistent with the module's __init__
    NUM_ENC, NUM_DEC = 2, 2
    EMB, NHEAD, FF = 32, 4, 64
    SRC_VOCAB, TGT_VOCAB = 50, 60
    S, T, B = 8, 8, 2

    root = jax.random.PRNGKey(0)
    kp, ks, kt = jax.random.split(root, 3)
    params = init_params(kp, NUM_ENC, NUM_DEC, EMB, NHEAD, SRC_VOCAB, TGT_VOCAB, FF)

    src = jax.random.randint(ks, (S, B), 0, SRC_VOCAB, dtype=jnp.int32)
    trg = jax.random.randint(kt, (T, B), 0, TGT_VOCAB, dtype=jnp.int32)

    src_mask = jnp.zeros((S, S), jnp.float32)
    tgt_mask = jnp.where(jnp.triu(jnp.ones((T, T), bool), k=1), NEG_INF, 0.0)
    src_padding_mask = jnp.zeros((B, S), bool).at[0, S - 1].set(True)
    tgt_padding_mask = jnp.zeros((B, T), bool)
    memory_key_padding_mask = src_padding_mask

    @jax.jit
    def forward(src, trg, src_mask, tgt_mask, src_pad, tgt_pad, mem_pad):
        # params / NHEAD captured by closure (stay static under trace)
        return seq2seq_forward(params, src, trg, src_mask, tgt_mask,
                               src_pad, tgt_pad, mem_pad, NHEAD)

    logits = forward(src, trg, src_mask, tgt_mask,
                     src_padding_mask, tgt_padding_mask, memory_key_padding_mask)
    logits = jax.block_until_ready(logits)

    assert logits.shape == (T, B, TGT_VOCAB), logits.shape
    assert bool(jnp.all(jnp.isfinite(logits)))
    print("KERNEL_OK")
</pallas_src>

<mosaic_0001>
module attributes {stable_mosaic.version = 11 : i64} {
  func.func @_ffn_ln_kernel(%arg0: i32, %arg1: memref<1x8x32xbf16, #tpu.memory_space<vmem>>, %arg2: memref<32x64xbf16, #tpu.memory_space<vmem>>, %arg3: memref<1x64xf32, #tpu.memory_space<vmem>>, %arg4: memref<64x32xbf16, #tpu.memory_space<vmem>>, %arg5: memref<1x32xf32, #tpu.memory_space<vmem>>, %arg6: memref<1x32xf32, #tpu.memory_space<vmem>>, %arg7: memref<1x32xf32, #tpu.memory_space<vmem>>, %arg8: memref<1x8x32xbf16, #tpu.memory_space<vmem>>) attributes {dimension_semantics = [#tpu.dimension_semantics<parallel>], iteration_bounds = array<i64: 2>, scalar_prefetch = 0 : i64, scratch_operands = 0 : i64, tpu.core_type = #tpu.core_type<tc>, window_params = [{transform_indices = @transform_0, window_bounds = array<i64: 1, 8, 32>}, {pipeline_mode = #tpu.pipeline_mode<synchronous>, transform_indices = @transform_1, window_bounds = array<i64: 32, 64>}, {pipeline_mode = #tpu.pipeline_mode<synchronous>, transform_indices = @transform_2, window_bounds = array<i64: 1, 64>}, {pipeline_mode = #tpu.pipeline_mode<synchronous>, transform_indices = @transform_3, window_bounds = array<i64: 64, 32>}, {pipeline_mode = #tpu.pipeline_mode<synchronous>, transform_indices = @transform_4, window_bounds = array<i64: 1, 32>}, {pipeline_mode = #tpu.pipeline_mode<synchronous>, transform_indices = @transform_5, window_bounds = array<i64: 1, 32>}, {pipeline_mode = #tpu.pipeline_mode<synchronous>, transform_indices = @transform_6, window_bounds = array<i64: 1, 32>}, {transform_indices = @transform_7, window_bounds = array<i64: 1, 8, 32>}]} {
    %c0 = arith.constant 0 : index
    %c0_0 = arith.constant 0 : index
    %c0_1 = arith.constant 0 : index
    %0 = vector.load %arg1[%c0, %c0_0, %c0_1] : memref<1x8x32xbf16, #tpu.memory_space<vmem>>, vector<1x8x32xbf16>
    %1 = vector.shape_cast %0 : vector<1x8x32xbf16> to vector<8x32xbf16>
    %c0_2 = arith.constant 0 : index
    %c0_3 = arith.constant 0 : index
    %2 = vector.load %arg2[%c0_2, %c0_3] : memref<32x64xbf16, #tpu.memory_space<vmem>>, vector<32x64xbf16>
    %cst = arith.constant dense<0.000000e+00> : vector<8x64xf32>
    %3 = tpu.matmul %1, %2, %cst {dimension_numbers = #tpu.dot_dimension_numbers<[1], [0], [0], [1], [0, 0, 1, 1], [], []>} : vector<8x32xbf16>, vector<32x64xbf16>, vector<8x64xf32> -> vector<8x64xf32>
    %c0_4 = arith.constant 0 : index
    %c0_5 = arith.constant 0 : index
    %4 = vector.load %arg3[%c0_4, %c0_5] : memref<1x64xf32, #tpu.memory_space<vmem>>, vector<1x64xf32>
    %5 = vector.broadcast %4 : vector<1x64xf32> to vector<8x64xf32>
    %6 = arith.addf %3, %5 : vector<8x64xf32>
    %cst_6 = arith.constant 0.000000e+00 : f32
    %7 = vector.broadcast %cst_6 : f32 to vector<8x64xf32>
    %8 = arith.maximumf %6, %7 : vector<8x64xf32>
    %9 = arith.truncf %8 : vector<8x64xf32> to vector<8x64xbf16>
    %c0_7 = arith.constant 0 : index
    %c0_8 = arith.constant 0 : index
    %10 = vector.load %arg4[%c0_7, %c0_8] : memref<64x32xbf16, #tpu.memory_space<vmem>>, vector<64x32xbf16>
    %cst_9 = arith.constant dense<0.000000e+00> : vector<8x32xf32>
    %11 = tpu.matmul %9, %10, %cst_9 {dimension_numbers = #tpu.dot_dimension_numbers<[1], [0], [0], [1], [0, 0, 1, 1], [], []>} : vector<8x64xbf16>, vector<64x32xbf16>, vector<8x32xf32> -> vector<8x32xf32>
    %c0_10 = arith.constant 0 : index
    %c0_11 = arith.constant 0 : index
    %12 = vector.load %arg5[%c0_10, %c0_11] : memref<1x32xf32, #tpu.memory_space<vmem>>, vector<1x32xf32>
    %13 = vector.broadcast %12 : vector<1x32xf32> to vector<8x32xf32>
    %14 = arith.addf %11, %13 : vector<8x32xf32>
    %15 = arith.extf %1 : vector<8x32xbf16> to vector<8x32xf32>
    %16 = arith.addf %15, %14 : vector<8x32xf32>
    %c0_12 = arith.constant 0 : index
    %c0_13 = arith.constant 0 : index
    %17 = vector.load %arg6[%c0_12, %c0_13] : memref<1x32xf32, #tpu.memory_space<vmem>>, vector<1x32xf32>
    %c0_14 = arith.constant 0 : index
    %c0_15 = arith.constant 0 : index
    %18 = vector.load %arg7[%c0_14, %c0_15] : memref<1x32xf32, #tpu.memory_space<vmem>>, vector<1x32xf32>
    %cst_16 = arith.constant dense<0.000000e+00> : vector<8xf32>
    %19 = vector.multi_reduction <add>, %16, %cst_16 [1] : vector<8x32xf32> to vector<8xf32>
    %20 = vector.shape_cast %19 : vector<8xf32> to vector<8x1xf32>
    %cst_17 = arith.constant 3.200000e+01 : f32
    %21 = vector.broadcast %cst_17 : f32 to vector<8x1xf32>
    %22 = arith.divf %20, %21 : vector<8x1xf32>
    %23 = vector.broadcast %22 : vector<8x1xf32> to vector<8x32xf32>
    %24 = arith.subf %16, %23 : vector<8x32xf32>
    %25 = arith.mulf %24, %24 : vector<8x32xf32>
    %cst_18 = arith.constant dense<0.000000e+00> : vector<8xf32>
    %26 = vector.multi_reduction <add>, %25, %cst_18 [1] : vector<8x32xf32> to vector<8xf32>
    %27 = vector.shape_cast %26 : vector<8xf32> to vector<8x1xf32>
    %cst_19 = arith.constant 3.200000e+01 : f32
    %28 = vector.broadcast %cst_19 : f32 to vector<8x1xf32>
    %29 = arith.divf %27, %28 : vector<8x1xf32>
    %cst_20 = arith.constant 9.99999974E-6 : f32
    %30 = vector.broadcast %cst_20 : f32 to vector<8x1xf32>
    %31 = arith.addf %29, %30 : vector<8x1xf32>
    %32 = math.rsqrt %31 : vector<8x1xf32>
    %33 = vector.broadcast %32 : vector<8x1xf32> to vector<8x32xf32>
    %34 = arith.mulf %24, %33 : vector<8x32xf32>
    %35 = vector.broadcast %17 : vector<1x32xf32> to vector<8x32xf32>
    %36 = arith.mulf %34, %35 : vector<8x32xf32>
    %37 = vector.broadcast %18 : vector<1x32xf32> to vector<8x32xf32>
    %38 = arith.addf %36, %37 : vector<8x32xf32>
    %39 = arith.truncf %38 : vector<8x32xf32> to vector<8x32xbf16>
    %c0_21 = arith.constant 0 : index
    %c0_22 = arith.constant 0 : index
    %c0_23 = arith.constant 0 : index
    %40 = vector.load %arg8[%c0_21, %c0_22, %c0_23] : memref<1x8x32xbf16, #tpu.memory_space<vmem>>, vector<1x8x32xbf16>
    %41 = vector.shape_cast %40 : vector<1x8x32xbf16> to vector<8x32xbf16>
    %42 = vector.shape_cast %39 : vector<8x32xbf16> to vector<1x8x32xbf16>
    tpu.vector_store %arg8[%c0_21, %c0_22, %c0_23], %42 {strides = array<i32>} : memref<1x8x32xbf16, #tpu.memory_space<vmem>>, vector<1x8x32xbf16>,
    return
  }
  func.func @transform_0(%arg0: i32) -> (i32, i32, i32) {
    %c0_i32 = arith.constant 0 : i32
    %c0_i32_0 = arith.constant 0 : i32
    %c0_i32_1 = arith.constant 0 : i32
    return %arg0, %c0_i32, %c0_i32_0 : i32, i32, i32
  }
  func.func @transform_1(%arg0: i32) -> (i32, i32) {
    %c0_i32 = arith.constant 0 : i32
    %c0_i32_0 = arith.constant 0 : i32
    %c0_i32_1 = arith.constant 0 : i32
    return %c0_i32, %c0_i32_0 : i32, i32
  }
  func.func @transform_2(%arg0: i32) -> (i32, i32) {
    %c0_i32 = arith.constant 0 : i32
    %c0_i32_0 = arith.constant 0 : i32
    %c0_i32_1 = arith.constant 0 : i32
    return %c0_i32, %c0_i32_0 : i32, i32
  }
  func.func @transform_3(%arg0: i32) -> (i32, i32) {
    %c0_i32 = arith.constant 0 : i32
    %c0_i32_0 = arith.constant 0 : i32
    %c0_i32_1 = arith.constant 0 : i32
    return %c0_i32, %c0_i32_0 : i32, i32
  }
  func.func @transform_4(%arg0: i32) -> (i32, i32) {
    %c0_i32 = arith.constant 0 : i32
    %c0_i32_0 = arith.constant 0 : i32
    %c0_i32_1 = arith.constant 0 : i32
    return %c0_i32, %c0_i32_0 : i32, i32
  }
  func.func @transform_5(%arg0: i32) -> (i32, i32) {
    %c0_i32 = arith.constant 0 : i32
    %c0_i32_0 = arith.constant 0 : i32
    %c0_i32_1 = arith.constant 0 : i32
    return %c0_i32, %c0_i32_0 : i32, i32
  }
  func.func @transform_6(%arg0: i32) -> (i32, i32) {
    %c0_i32 = arith.constant 0 : i32
    %c0_i32_0 = arith.constant 0 : i32
    %c0_i32_1 = arith.constant 0 : i32
    return %c0_i32, %c0_i32_0 : i32, i32
  }
  func.func @transform_7(%arg0: i32) -> (i32, i32, i32) {
    %c0_i32 = arith.constant 0 : i32
    %c0_i32_0 = arith.constant 0 : i32
    %c0_i32_1 = arith.constant 0 : i32
    return %arg0, %c0_i32, %c0_i32_0 : i32, i32, i32
  }
}

module attributes {stable_mosaic.version = 11 : i64} {
  func.func @_ln_kernel(%arg0: i32, %arg1: memref<1x8x32xbf16, #tpu.memory_space<vmem>>, %arg2: memref<1x32xf32, #tpu.memory_space<vmem>>, %arg3: memref<1x32xf32, #tpu.memory_space<vmem>>, %arg4: memref<1x8x32xbf16, #tpu.memory_space<vmem>>) attributes {dimension_semantics = [#tpu.dimension_semantics<parallel>], iteration_bounds = array<i64: 2>, scalar_prefetch = 0 : i64, scratch_operands = 0 : i64, tpu.core_type = #tpu.core_type<tc>, window_params = [{transform_indices = @transform_0, window_bounds = array<i64: 1, 8, 32>}, {pipeline_mode = #tpu.pipeline_mode<synchronous>, transform_indices = @transform_1, window_bounds = array<i64: 1, 32>}, {pipeline_mode = #tpu.pipeline_mode<synchronous>, transform_indices = @transform_2, window_bounds = array<i64: 1, 32>}, {transform_indices = @transform_3, window_bounds = array<i64: 1, 8, 32>}]} {
    %c0 = arith.constant 0 : index
    %c0_0 = arith.constant 0 : index
    %c0_1 = arith.constant 0 : index
    %0 = vector.load %arg1[%c0, %c0_0, %c0_1] : memref<1x8x32xbf16, #tpu.memory_space<vmem>>, vector<1x8x32xbf16>
    %1 = vector.shape_cast %0 : vector<1x8x32xbf16> to vector<8x32xbf16>
    %2 = arith.extf %1 : vector<8x32xbf16> to vector<8x32xf32>
    %c0_2 = arith.constant 0 : index
    %c0_3 = arith.constant 0 : index
    %3 = vector.load %arg2[%c0_2, %c0_3] : memref<1x32xf32, #tpu.memory_space<vmem>>, vector<1x32xf32>
    %c0_4 = arith.constant 0 : index
    %c0_5 = arith.constant 0 : index
    %4 = vector.load %arg3[%c0_4, %c0_5] : memref<1x32xf32, #tpu.memory_space<vmem>>, vector<1x32xf32>
    %cst = arith.constant dense<0.000000e+00> : vector<8xf32>
    %5 = vector.multi_reduction <add>, %2, %cst [1] : vector<8x32xf32> to vector<8xf32>
    %6 = vector.shape_cast %5 : vector<8xf32> to vector<8x1xf32>
    %cst_6 = arith.constant 3.200000e+01 : f32
    %7 = vector.broadcast %cst_6 : f32 to vector<8x1xf32>
    %8 = arith.divf %6, %7 : vector<8x1xf32>
    %9 = vector.broadcast %8 : vector<8x1xf32> to vector<8x32xf32>
    %10 = arith.subf %2, %9 : vector<8x32xf32>
    %11 = arith.mulf %10, %10 : vector<8x32xf32>
    %cst_7 = arith.constant dense<0.000000e+00> : vector<8xf32>
    %12 = vector.multi_reduction <add>, %11, %cst_7 [1] : vector<8x32xf32> to vector<8xf32>
    %13 = vector.shape_cast %12 : vector<8xf32> to vector<8x1xf32>
    %cst_8 = arith.constant 3.200000e+01 : f32
    %14 = vector.broadcast %cst_8 : f32 to vector<8x1xf32>
    %15 = arith.divf %13, %14 : vector<8x1xf32>
    %cst_9 = arith.constant 9.99999974E-6 : f32
    %16 = vector.broadcast %cst_9 : f32 to vector<8x1xf32>
    %17 = arith.addf %15, %16 : vector<8x1xf32>
    %18 = math.rsqrt %17 : vector<8x1xf32>
    %19 = vector.broadcast %18 : vector<8x1xf32> to vector<8x32xf32>
    %20 = arith.mulf %10, %19 : vector<8x32xf32>
    %21 = vector.broadcast %3 : vector<1x32xf32> to vector<8x32xf32>
    %22 = arith.mulf %20, %21 : vector<8x32xf32>
    %23 = vector.broadcast %4 : vector<1x32xf32> to vector<8x32xf32>
    %24 = arith.addf %22, %23 : vector<8x32xf32>
    %25 = arith.truncf %24 : vector<8x32xf32> to vector<8x32xbf16>
    %c0_10 = arith.constant 0 : index
    %c0_11 = arith.constant 0 : index
    %c0_12 = arith.constant 0 : index
    %26 = vector.load %arg4[%c0_10, %c0_11, %c0_12] : memref<1x8x32xbf16, #tpu.memory_space<vmem>>, vector<1x8x32xbf16>
    %27 = vector.shape_cast %26 : vector<1x8x32xbf16> to vector<8x32xbf16>
    %28 = vector.shape_cast %25 : vector<8x32xbf16> to vector<1x8x32xbf16>
    tpu.vector_store %arg4[%c0_10, %c0_11, %c0_12], %28 {strides = array<i32>} : memref<1x8x32xbf16, #tpu.memory_space<vmem>>, vector<1x8x32xbf16>,
    return
  }
  func.func @transform_0(%arg0: i32) -> (i32, i32, i32) {
    %c0_i32 = arith.constant 0 : i32
    %c0_i32_0 = arith.constant 0 : i32
    %c0_i32_1 = arith.constant 0 : i32
    return %arg0, %c0_i32, %c0_i32_0 : i32, i32, i32
  }
  func.func @transform_1(%arg0: i32) -> (i32, i32) {
    %c0_i32 = arith.constant 0 : i32
    %c0_i32_0 = arith.constant 0 : i32
    %c0_i32_1 = arith.constant 0 : i32
    return %c0_i32, %c0_i32_0 : i32, i32
  }
  func.func @transform_2(%arg0: i32) -> (i32, i32) {
    %c0_i32 = arith.constant 0 : i32
    %c0_i32_0 = arith.constant 0 : i32
    %c0_i32_1 = arith.constant 0 : i32
    return %c0_i32, %c0_i32_0 : i32, i32
  }
  func.func @transform_3(%arg0: i32) -> (i32, i32, i32) {
    %c0_i32 = arith.constant 0 : i32
    %c0_i32_0 = arith.constant 0 : i32
    %c0_i32_1 = arith.constant 0 : i32
    return %arg0, %c0_i32, %c0_i32_0 : i32, i32, i32
  }
}

module attributes {stable_mosaic.version = 11 : i64} {
  func.func @_self_attn_ln_kernel(%arg0: i32, %arg1: memref<1x8x32xbf16, #tpu.memory_space<vmem>>, %arg2: memref<32x96xbf16, #tpu.memory_space<vmem>>, %arg3: memref<1x96xf32, #tpu.memory_space<vmem>>, %arg4: memref<32x32xbf16, #tpu.memory_space<vmem>>, %arg5: memref<1x32xf32, #tpu.memory_space<vmem>>, %arg6: memref<8x8xf32, #tpu.memory_space<vmem>>, %arg7: memref<1x1x8xf32, #tpu.memory_space<vmem>>, %arg8: memref<1x32xf32, #tpu.memory_space<vmem>>, %arg9: memref<1x32xf32, #tpu.memory_space<vmem>>, %arg10: memref<1x8x32xbf16, #tpu.memory_space<vmem>>) attributes {dimension_semantics = [#tpu.dimension_semantics<parallel>], iteration_bounds = array<i64: 2>, scalar_prefetch = 0 : i64, scratch_operands = 0 : i64, tpu.core_type = #tpu.core_type<tc>, window_params = [{transform_indices = @transform_0, window_bounds = array<i64: 1, 8, 32>}, {pipeline_mode = #tpu.pipeline_mode<synchronous>, transform_indices = @transform_1, window_bounds = array<i64: 32, 96>}, {pipeline_mode = #tpu.pipeline_mode<synchronous>, transform_indices = @transform_2, window_bounds = array<i64: 1, 96>}, {pipeline_mode = #tpu.pipeline_mode<synchronous>, transform_indices = @transform_3, window_bounds = array<i64: 32, 32>}, {pipeline_mode = #tpu.pipeline_mode<synchronous>, transform_indices = @transform_4, window_bounds = array<i64: 1, 32>}, {pipeline_mode = #tpu.pipeline_mode<synchronous>, transform_indices = @transform_5, window_bounds = array<i64: 8, 8>}, {transform_indices = @transform_6, window_bounds = array<i64: 1, 1, 8>}, {pipeline_mode = #tpu.pipeline_mode<synchronous>, transform_indices = @transform_7, window_bounds = array<i64: 1, 32>}, {pipeline_mode = #tpu.pipeline_mode<synchronous>, transform_indices = @transform_8, window_bounds = array<i64: 1, 32>}, {transform_indices = @transform_9, window_bounds = array<i64: 1, 8, 32>}]} {
    %c0 = arith.constant 0 : index
    %c0_0 = arith.constant 0 : index
    %c0_1 = arith.constant 0 : index
    %0 = vector.load %arg1[%c0, %c0_0, %c0_1] : memref<1x8x32xbf16, #tpu.memory_space<vmem>>, vector<1x8x32xbf16>
    %1 = vector.shape_cast %0 : vector<1x8x32xbf16> to vector<8x32xbf16>
    %c0_2 = arith.constant 0 : index
    %c0_3 = arith.constant 0 : index
    %2 = vector.load %arg2[%c0_2, %c0_3] : memref<32x96xbf16, #tpu.memory_space<vmem>>, vector<32x96xbf16>
    %cst = arith.constant dense<0.000000e+00> : vector<8x96xf32>
    %3 = tpu.matmul %1, %2, %cst {dimension_numbers = #tpu.dot_dimension_numbers<[1], [0], [0], [1], [0, 0, 1, 1], [], []>} : vector<8x32xbf16>, vector<32x96xbf16>, vector<8x96xf32> -> vector<8x96xf32>
    %c0_4 = arith.constant 0 : index
    %c0_5 = arith.constant 0 : index
    %4 = vector.load %arg3[%c0_4, %c0_5] : memref<1x96xf32, #tpu.memory_space<vmem>>, vector<1x96xf32>
    %5 = vector.broadcast %4 : vector<1x96xf32> to vector<8x96xf32>
    %6 = arith.addf %3, %5 : vector<8x96xf32>
    %c0_6 = arith.constant 0 : index
    %c0_7 = arith.constant 0 : index
    %7 = vector.load %arg6[%c0_6, %c0_7] : memref<8x8xf32, #tpu.memory_space<vmem>>, vector<8x8xf32>
    %c0_8 = arith.constant 0 : index
    %c0_9 = arith.constant 0 : index
    %c0_10 = arith.constant 0 : index
    %8 = vector.load %arg7[%c0_8, %c0_9, %c0_10] : memref<1x1x8xf32, #tpu.memory_space<vmem>>, vector<1x1x8xf32>
    %9 = vector.shape_cast %8 : vector<1x1x8xf32> to vector<1x8xf32>
    %10 = vector.broadcast %9 : vector<1x8xf32> to vector<8x8xf32>
    %11 = arith.addf %7, %10 : vector<8x8xf32>
    %12 = vector.extract_strided_slice %6 {offsets = [0, 0], sizes = [8, 32], strides = [1, 1]} : vector<8x96xf32> to vector<8x32xf32>
    %13 = vector.extract_strided_slice %6 {offsets = [0, 32], sizes = [8, 32], strides = [1, 1]} : vector<8x96xf32> to vector<8x32xf32>
    %14 = vector.extract_strided_slice %6 {offsets = [0, 64], sizes = [8, 32], strides = [1, 1]} : vector<8x96xf32> to vector<8x32xf32>
    %c0_11 = arith.constant 0 : index
    %c0_12 = arith.constant 0 : index
    %15 = vector.load %arg4[%c0_11, %c0_12] : memref<32x32xbf16, #tpu.memory_space<vmem>>, vector<32x32xbf16>
    %c0_13 = arith.constant 0 : index
    %c0_14 = arith.constant 0 : index
    %16 = vector.load %arg5[%c0_13, %c0_14] : memref<1x32xf32, #tpu.memory_space<vmem>>, vector<1x32xf32>
    %17 = arith.truncf %12 : vector<8x32xf32> to vector<8x32xbf16>
    %18 = arith.truncf %13 : vector<8x32xf32> to vector<8x32xbf16>
    %19 = arith.truncf %14 : vector<8x32xf32> to vector<8x32xbf16>
    %20 = vector.extract_strided_slice %17 {offsets = [0, 0], sizes = [8, 8], strides = [1, 1]} : vector<8x32xbf16> to vector<8x8xbf16>
    %21 = vector.extract_strided_slice %18 {offsets = [0, 0], sizes = [8, 8], strides = [1, 1]} : vector<8x32xbf16> to vector<8x8xbf16>
    %cst_15 = arith.constant dense<0.000000e+00> : vector<8x8xf32>
    %22 = tpu.matmul %20, %21, %cst_15 {dimension_numbers = #tpu.dot_dimension_numbers<[1], [1], [0], [0], [0, 0, 1, 0], [], []>} : vector<8x8xbf16>, vector<8x8xbf16>, vector<8x8xf32> -> vector<8x8xf32>
    %23 = arith.addf %22, %11 : vector<8x8xf32>
    %cst_16 = arith.constant dense<0xFF800000> : vector<8xf32>
    %24 = vector.multi_reduction <maximumf>, %23, %cst_16 [1] : vector<8x8xf32> to vector<8xf32>
    %25 = vector.shape_cast %24 : vector<8xf32> to vector<8x1xf32>
    %26 = vector.broadcast %25 : vector<8x1xf32> to vector<8x8xf32>
    %27 = arith.subf %23, %26 : vector<8x8xf32>
    %28 = math.exp %27 : vector<8x8xf32>
    %cst_17 = arith.constant dense<0.000000e+00> : vector<8xf32>
    %29 = vector.multi_reduction <add>, %28, %cst_17 [1] : vector<8x8xf32> to vector<8xf32>
    %30 = vector.shape_cast %29 : vector<8xf32> to vector<8x1xf32>
    %31 = arith.truncf %28 : vector<8x8xf32> to vector<8x8xbf16>
    %32 = vector.extract_strided_slice %19 {offsets = [0, 0], sizes = [8, 8], strides = [1, 1]} : vector<8x32xbf16> to vector<8x8xbf16>
    %cst_18 = arith.constant dense<0.000000e+00> : vector<8x8xf32>
    %33 = tpu.matmul %31, %32, %cst_18 {dimension_numbers = #tpu.dot_dimension_numbers<[1], [0], [0], [1], [0, 0, 1, 1], [], []>} : vector<8x8xbf16>, vector<8x8xbf16>, vector<8x8xf32> -> vector<8x8xf32>
    %34 = vector.broadcast %30 : vector<8x1xf32> to vector<8x8xf32>
    %35 = arith.divf %33, %34 : vector<8x8xf32>
    %36 = vector.extract_strided_slice %17 {offsets = [0, 8], sizes = [8, 8], strides = [1, 1]} : vector<8x32xbf16> to vector<8x8xbf16>
    %37 = vector.extract_strided_slice %18 {offsets = [0, 8], sizes = [8, 8], strides = [1, 1]} : vector<8x32xbf16> to vector<8x8xbf16>
    %cst_19 = arith.constant dense<0.000000e+00> : vector<8x8xf32>
    %38 = tpu.matmul %36, %37, %cst_19 {dimension_numbers = #tpu.dot_dimension_numbers<[1], [1], [0], [0], [0, 0, 1, 0], [], []>} : vector<8x8xbf16>, vector<8x8xbf16>, vector<8x8xf32> -> vector<8x8xf32>
    %39 = arith.addf %38, %11 : vector<8x8xf32>
    %cst_20 = arith.constant dense<0xFF800000> : vector<8xf32>
    %40 = vector.multi_reduction <maximumf>, %39, %cst_20 [1] : vector<8x8xf32> to vector<8xf32>
    %41 = vector.shape_cast %40 : vector<8xf32> to vector<8x1xf32>
    %42 = vector.broadcast %41 : vector<8x1xf32> to vector<8x8xf32>
    %43 = arith.subf %39, %42 : vector<8x8xf32>
    %44 = math.exp %43 : vector<8x8xf32>
    %cst_21 = arith.constant dense<0.000000e+00> : vector<8xf32>
    %45 = vector.multi_reduction <add>, %44, %cst_21 [1] : vector<8x8xf32> to vector<8xf32>
    %46 = vector.shape_cast %45 : vector<8xf32> to vector<8x1xf32>
    %47 = arith.truncf %44 : vector<8x8xf32> to vector<8x8xbf16>
    %48 = vector.extract_strided_slice %19 {offsets = [0, 8], sizes = [8, 8], strides = [1, 1]} : vector<8x32xbf16> to vector<8x8xbf16>
    %cst_22 = arith.constant dense<0.000000e+00> : vector<8x8xf32>
    %49 = tpu.matmul %47, %48, %cst_22 {dimension_numbers = #tpu.dot_dimension_numbers<[1], [0], [0], [1], [0, 0, 1, 1], [], []>} : vector<8x8xbf16>, vector<8x8xbf16>, vector<8x8xf32> -> vector<8x8xf32>
    %50 = vector.broadcast %46 : vector<8x1xf32> to vector<8x8xf32>
    %51 = arith.divf %49, %50 : vector<8x8xf32>
    %52 = vector.extract_strided_slice %17 {offsets = [0, 16], sizes = [8, 8], strides = [1, 1]} : vector<8x32xbf16> to vector<8x8xbf16>
    %53 = vector.extract_strided_slice %18 {offsets = [0, 16], sizes = [8, 8], strides = [1, 1]} : vector<8x32xbf16> to vector<8x8xbf16>
    %cst_23 = arith.constant dense<0.000000e+00> : vector<8x8xf32>
    %54 = tpu.matmul %52, %53, %cst_23 {dimension_numbers = #tpu.dot_dimension_numbers<[1], [1], [0], [0], [0, 0, 1, 0], [], []>} : vector<8x8xbf16>, vector<8x8xbf16>, vector<8x8xf32> -> vector<8x8xf32>
    %55 = arith.addf %54, %11 : vector<8x8xf32>
    %cst_24 = arith.constant dense<0xFF800000> : vector<8xf32>
    %56 = vector.multi_reduction <maximumf>, %55, %cst_24 [1] : vector<8x8xf32> to vector<8xf32>
    %57 = vector.shape_cast %56 : vector<8xf32> to vector<8x1xf32>
    %58 = vector.broadcast %57 : vector<8x1xf32> to vector<8x8xf32>
    %59 = arith.subf %55, %58 : vector<8x8xf32>
    %60 = math.exp %59 : vector<8x8xf32>
    %cst_25 = arith.constant dense<0.000000e+00> : vector<8xf32>
    %61 = vector.multi_reduction <add>, %60, %cst_25 [1] : vector<8x8xf32> to vector<8xf32>
    %62 = vector.shape_cast %61 : vector<8xf32> to vector<8x1xf32>
    %63 = arith.truncf %60 : vector<8x8xf32> to vector<8x8xbf16>
    %64 = vector.extract_strided_slice %19 {offsets = [0, 16], sizes = [8, 8], strides = [1, 1]} : vector<8x32xbf16> to vector<8x8xbf16>
    %cst_26 = arith.constant dense<0.000000e+00> : vector<8x8xf32>
    %65 = tpu.matmul %63, %64, %cst_26 {dimension_numbers = #tpu.dot_dimension_numbers<[1], [0], [0], [1], [0, 0, 1, 1], [], []>} : vector<8x8xbf16>, vector<8x8xbf16>, vector<8x8xf32> -> vector<8x8xf32>
    %66 = vector.broadcast %62 : vector<8x1xf32> to vector<8x8xf32>
    %67 = arith.divf %65, %66 : vector<8x8xf32>
    %68 = vector.extract_strided_slice %17 {offsets = [0, 24], sizes = [8, 8], strides = [1, 1]} : vector<8x32xbf16> to vector<8x8xbf16>
    %69 = vector.extract_strided_slice %18 {offsets = [0, 24], sizes = [8, 8], strides = [1, 1]} : vector<8x32xbf16> to vector<8x8xbf16>
    %cst_27 = arith.constant dense<0.000000e+00> : vector<8x8xf32>
    %70 = tpu.matmul %68, %69, %cst_27 {dimension_numbers = #tpu.dot_dimension_numbers<[1], [1], [0], [0], [0, 0, 1, 0], [], []>} : vector<8x8xbf16>, vector<8x8xbf16>, vector<8x8xf32> -> vector<8x8xf32>
    %71 = arith.addf %70, %11 : vector<8x8xf32>
    %cst_28 = arith.constant dense<0xFF800000> : vector<8xf32>
    %72 = vector.multi_reduction <maximumf>, %71, %cst_28 [1] : vector<8x8xf32> to vector<8xf32>
    %73 = vector.shape_cast %72 : vector<8xf32> to vector<8x1xf32>
    %74 = vector.broadcast %73 : vector<8x1xf32> to vector<8x8xf32>
    %75 = arith.subf %71, %74 : vector<8x8xf32>
    %76 = math.exp %75 : vector<8x8xf32>
    %cst_29 = arith.constant dense<0.000000e+00> : vector<8xf32>
    %77 = vector.multi_reduction <add>, %76, %cst_29 [1] : vector<8x8xf32> to vector<8xf32>
    %78 = vector.shape_cast %77 : vector<8xf32> to vector<8x1xf32>
    %79 = arith.truncf %76 : vector<8x8xf32> to vector<8x8xbf16>
    %80 = vector.extract_strided_slice %19 {offsets = [0, 24], sizes = [8, 8], strides = [1, 1]} : vector<8x32xbf16> to vector<8x8xbf16>
    %cst_30 = arith.constant dense<0.000000e+00> : vector<8x8xf32>
    %81 = tpu.matmul %79, %80, %cst_30 {dimension_numbers = #tpu.dot_dimension_numbers<[1], [0], [0], [1], [0, 0, 1, 1], [], []>} : vector<8x8xbf16>, vector<8x8xbf16>, vector<8x8xf32> -> vector<8x8xf32>
    %82 = vector.broadcast %78 : vector<8x1xf32> to vector<8x8xf32>
    %83 = arith.divf %81, %82 : vector<8x8xf32>
    %84 = tpu.concatenate %35, %51, %67, %83 in 1 : vector<8x8xf32>, vector<8x8xf32>, vector<8x8xf32>, vector<8x8xf32> -> vector<8x32xf32>
    %85 = arith.truncf %84 : vector<8x32xf32> to vector<8x32xbf16>
    %cst_31 = arith.constant dense<0.000000e+00> : vector<8x32xf32>
    %86 = tpu.matmul %85, %15, %cst_31 {dimension_numbers = #tpu.dot_dimension_numbers<[1], [0], [0], [1], [0, 0, 1, 1], [], []>} : vector<8x32xbf16>, vector<32x32xbf16>, vector<8x32xf32> -> vector<8x32xf32>
    %87 = vector.broadcast %16 : vector<1x32xf32> to vector<8x32xf32>
    %88 = arith.addf %86, %87 : vector<8x32xf32>
    %89 = arith.extf %1 : vector<8x32xbf16> to vector<8x32xf32>
    %90 = arith.addf %89, %88 : vector<8x32xf32>
    %c0_32 = arith.constant 0 : index
    %c0_33 = arith.constant 0 : index
    %91 = vector.load %arg8[%c0_32, %c0_33] : memref<1x32xf32, #tpu.memory_space<vmem>>, vector<1x32xf32>
    %c0_34 = arith.constant 0 : index
    %c0_35 = arith.constant 0 : index
    %92 = vector.load %arg9[%c0_34, %c0_35] : memref<1x32xf32, #tpu.memory_space<vmem>>, vector<1x32xf32>
    %cst_36 = arith.constant dense<0.000000e+00> : vector<8xf32>
    %93 = vector.multi_reduction <add>, %90, %cst_36 [1] : vector<8x32xf32> to vector<8xf32>
    %94 = vector.shape_cast %93 : vector<8xf32> to vector<8x1xf32>
    %cst_37 = arith.constant 3.200000e+01 : f32
    %95 = vector.broadcast %cst_37 : f32 to vector<8x1xf32>
    %96 = arith.divf %94, %95 : vector<8x1xf32>
    %97 = vector.broadcast %96 : vector<8x1xf32> to vector<8x32xf32>
    %98 = arith.subf %90, %97 : vector<8x32xf32>
    %99 = arith.mulf %98, %98 : vector<8x32xf32>
    %cst_38 = arith.constant dense<0.000000e+00> : vector<8xf32>
    %100 = vector.multi_reduction <add>, %99, %cst_38 [1] : vector<8x32xf32> to vector<8xf32>
    %101 = vector.shape_cast %100 : vector<8xf32> to vector<8x1xf32>
    %cst_39 = arith.constant 3.200000e+01 : f32
    %102 = vector.broadcast %cst_39 : f32 to vector<8x1xf32>
    %103 = arith.divf %101, %102 : vector<8x1xf32>
    %cst_40 = arith.constant 9.99999974E-6 : f32
    %104 = vector.broadcast %cst_40 : f32 to vector<8x1xf32>
    %105 = arith.addf %103, %104 : vector<8x1xf32>
    %106 = math.rsqrt %105 : vector<8x1xf32>
    %107 = vector.broadcast %106 : vector<8x1xf32> to vector<8x32xf32>
    %108 = arith.mulf %98, %107 : vector<8x32xf32>
    %109 = vector.broadcast %91 : vector<1x32xf32> to vector<8x32xf32>
    %110 = arith.mulf %108, %109 : vector<8x32xf32>
    %111 = vector.broadcast %92 : vector<1x32xf32> to vector<8x32xf32>
    %112 = arith.addf %110, %111 : vector<8x32xf32>
    %113 = arith.truncf %112 : vector<8x32xf32> to vector<8x32xbf16>
    %c0_41 = arith.constant 0 : index
    %c0_42 = arith.constant 0 : index
    %c0_43 = arith.constant 0 : index
    %114 = vector.load %arg10[%c0_41, %c0_42, %c0_43] : memref<1x8x32xbf16, #tpu.memory_space<vmem>>, vector<1x8x32xbf16>
    %115 = vector.shape_cast %114 : vector<1x8x32xbf16> to vector<8x32xbf16>
    %116 = vector.shape_cast %113 : vector<8x32xbf16> to vector<1x8x32xbf16>
    tpu.vector_store %arg10[%c0_41, %c0_42, %c0_43], %116 {strides = array<i32>} : memref<1x8x32xbf16, #tpu.memory_space<vmem>>, vector<1x8x32xbf16>,
    return
  }
  func.func @transform_0(%arg0: i32) -> (i32, i32, i32) {
    %c0_i32 = arith.constant 0 : i32
    %c0_i32_0 = arith.constant 0 : i32
    %c0_i32_1 = arith.constant 0 : i32
    return %arg0, %c0_i32, %c0_i32_0 : i32, i32, i32
  }
  func.func @transform_1(%arg0: i32) -> (i32, i32) {
    %c0_i32 = arith.constant 0 : i32
    %c0_i32_0 = arith.constant 0 : i32
    %c0_i32_1 = arith.constant 0 : i32
    return %c0_i32, %c0_i32_0 : i32, i32
  }
  func.func @transform_2(%arg0: i32) -> (i32, i32) {
    %c0_i32 = arith.constant 0 : i32
    %c0_i32_0 = arith.constant 0 : i32
    %c0_i32_1 = arith.constant 0 : i32
    return %c0_i32, %c0_i32_0 : i32, i32
  }
  func.func @transform_3(%arg0: i32) -> (i32, i32) {
    %c0_i32 = arith.constant 0 : i32
    %c0_i32_0 = arith.constant 0 : i32
    %c0_i32_1 = arith.constant 0 : i32
    return %c0_i32, %c0_i32_0 : i32, i32
  }
  func.func @transform_4(%arg0: i32) -> (i32, i32) {
    %c0_i32 = arith.constant 0 : i32
    %c0_i32_0 = arith.constant 0 : i32
    %c0_i32_1 = arith.constant 0 : i32
    return %c0_i32, %c0_i32_0 : i32, i32
  }
  func.func @transform_5(%arg0: i32) -> (i32, i32) {
    %c0_i32 = arith.constant 0 : i32
    %c0_i32_0 = arith.constant 0 : i32
    %c0_i32_1 = arith.constant 0 : i32
    return %c0_i32, %c0_i32_0 : i32, i32
  }
  func.func @transform_6(%arg0: i32) -> (i32, i32, i32) {
    %c0_i32 = arith.constant 0 : i32
    %c0_i32_0 = arith.constant 0 : i32
    %c0_i32_1 = arith.constant 0 : i32
    return %arg0, %c0_i32, %c0_i32_0 : i32, i32, i32
  }
  func.func @transform_7(%arg0: i32) -> (i32, i32) {
    %c0_i32 = arith.constant 0 : i32
    %c0_i32_0 = arith.constant 0 : i32
    %c0_i32_1 = arith.constant 0 : i32
    return %c0_i32, %c0_i32_0 : i32, i32
  }
  func.func @transform_8(%arg0: i32) -> (i32, i32) {
    %c0_i32 = arith.constant 0 : i32
    %c0_i32_0 = arith.constant 0 : i32
    %c0_i32_1 = arith.constant 0 : i32
    return %c0_i32, %c0_i32_0 : i32, i32
  }
  func.func @transform_9(%arg0: i32) -> (i32, i32, i32) {
    %c0_i32 = arith.constant 0 : i32
    %c0_i32_0 = arith.constant 0 : i32
    %c0_i32_1 = arith.constant 0 : i32
    return %arg0, %c0_i32, %c0_i32_0 : i32, i32, i32
  }
}

module attributes {stable_mosaic.version = 11 : i64} {
  func.func @_cross_attn_ln_kernel(%arg0: i32, %arg1: memref<1x8x32xbf16, #tpu.memory_space<vmem>>, %arg2: memref<1x8x32xbf16, #tpu.memory_space<vmem>>, %arg3: memref<32x32xbf16, #tpu.memory_space<vmem>>, %arg4: memref<1x32xf32, #tpu.memory_space<vmem>>, %arg5: memref<32x64xbf16, #tpu.memory_space<vmem>>, %arg6: memref<1x64xf32, #tpu.memory_space<vmem>>, %arg7: memref<32x32xbf16, #tpu.memory_space<vmem>>, %arg8: memref<1x32xf32, #tpu.memory_space<vmem>>, %arg9: memref<1x1x8xf32, #tpu.memory_space<vmem>>, %arg10: memref<1x32xf32, #tpu.memory_space<vmem>>, %arg11: memref<1x32xf32, #tpu.memory_space<vmem>>, %arg12: memref<1x8x32xbf16, #tpu.memory_space<vmem>>) attributes {dimension_semantics = [#tpu.dimension_semantics<parallel>], iteration_bounds = array<i64: 2>, scalar_prefetch = 0 : i64, scratch_operands = 0 : i64, tpu.core_type = #tpu.core_type<tc>, window_params = [{transform_indices = @transform_0, window_bounds = array<i64: 1, 8, 32>}, {transform_indices = @transform_1, window_bounds = array<i64: 1, 8, 32>}, {pipeline_mode = #tpu.pipeline_mode<synchronous>, transform_indices = @transform_2, window_bounds = array<i64: 32, 32>}, {pipeline_mode = #tpu.pipeline_mode<synchronous>, transform_indices = @transform_3, window_bounds = array<i64: 1, 32>}, {pipeline_mode = #tpu.pipeline_mode<synchronous>, transform_indices = @transform_4, window_bounds = array<i64: 32, 64>}, {pipeline_mode = #tpu.pipeline_mode<synchronous>, transform_indices = @transform_5, window_bounds = array<i64: 1, 64>}, {pipeline_mode = #tpu.pipeline_mode<synchronous>, transform_indices = @transform_6, window_bounds = array<i64: 32, 32>}, {pipeline_mode = #tpu.pipeline_mode<synchronous>, transform_indices = @transform_7, window_bounds = array<i64: 1, 32>}, {transform_indices = @transform_8, window_bounds = array<i64: 1, 1, 8>}, {pipeline_mode = #tpu.pipeline_mode<synchronous>, transform_indices = @transform_9, window_bounds = array<i64: 1, 32>}, {pipeline_mode = #tpu.pipeline_mode<synchronous>, transform_indices = @transform_10, window_bounds = array<i64: 1, 32>}, {transform_indices = @transform_11, window_bounds = array<i64: 1, 8, 32>}]} {
    %c0 = arith.constant 0 : index
    %c0_0 = arith.constant 0 : index
    %c0_1 = arith.constant 0 : index
    %0 = vector.load %arg1[%c0, %c0_0, %c0_1] : memref<1x8x32xbf16, #tpu.memory_space<vmem>>, vector<1x8x32xbf16>
    %1 = vector.shape_cast %0 : vector<1x8x32xbf16> to vector<8x32xbf16>
    %c0_2 = arith.constant 0 : index
    %c0_3 = arith.constant 0 : index
    %c0_4 = arith.constant 0 : index
    %2 = vector.load %arg2[%c0_2, %c0_3, %c0_4] : memref<1x8x32xbf16, #tpu.memory_space<vmem>>, vector<1x8x32xbf16>
    %3 = vector.shape_cast %2 : vector<1x8x32xbf16> to vector<8x32xbf16>
    %c0_5 = arith.constant 0 : index
    %c0_6 = arith.constant 0 : index
    %4 = vector.load %arg3[%c0_5, %c0_6] : memref<32x32xbf16, #tpu.memory_space<vmem>>, vector<32x32xbf16>
    %cst = arith.constant dense<0.000000e+00> : vector<8x32xf32>
    %5 = tpu.matmul %1, %4, %cst {dimension_numbers = #tpu.dot_dimension_numbers<[1], [0], [0], [1], [0, 0, 1, 1], [], []>} : vector<8x32xbf16>, vector<32x32xbf16>, vector<8x32xf32> -> vector<8x32xf32>
    %c0_7 = arith.constant 0 : index
    %c0_8 = arith.constant 0 : index
    %6 = vector.load %arg4[%c0_7, %c0_8] : memref<1x32xf32, #tpu.memory_space<vmem>>, vector<1x32xf32>
    %7 = vector.broadcast %6 : vector<1x32xf32> to vector<8x32xf32>
    %8 = arith.addf %5, %7 : vector<8x32xf32>
    %c0_9 = arith.constant 0 : index
    %c0_10 = arith.constant 0 : index
    %9 = vector.load %arg5[%c0_9, %c0_10] : memref<32x64xbf16, #tpu.memory_space<vmem>>, vector<32x64xbf16>
    %cst_11 = arith.constant dense<0.000000e+00> : vector<8x64xf32>
    %10 = tpu.matmul %3, %9, %cst_11 {dimension_numbers = #tpu.dot_dimension_numbers<[1], [0], [0], [1], [0, 0, 1, 1], [], []>} : vector<8x32xbf16>, vector<32x64xbf16>, vector<8x64xf32> -> vector<8x64xf32>
    %c0_12 = arith.constant 0 : index
    %c0_13 = arith.constant 0 : index
    %11 = vector.load %arg6[%c0_12, %c0_13] : memref<1x64xf32, #tpu.memory_space<vmem>>, vector<1x64xf32>
    %12 = vector.broadcast %11 : vector<1x64xf32> to vector<8x64xf32>
    %13 = arith.addf %10, %12 : vector<8x64xf32>
    %14 = vector.extract_strided_slice %13 {offsets = [0, 0], sizes = [8, 32], strides = [1, 1]} : vector<8x64xf32> to vector<8x32xf32>
    %15 = vector.extract_strided_slice %13 {offsets = [0, 32], sizes = [8, 32], strides = [1, 1]} : vector<8x64xf32> to vector<8x32xf32>
    %c0_14 = arith.constant 0 : index
    %c0_15 = arith.constant 0 : index
    %c0_16 = arith.constant 0 : index
    %16 = vector.load %arg9[%c0_14, %c0_15, %c0_16] : memref<1x1x8xf32, #tpu.memory_space<vmem>>, vector<1x1x8xf32>
    %17 = vector.shape_cast %16 : vector<1x1x8xf32> to vector<1x8xf32>
    %c0_17 = arith.constant 0 : index
    %c0_18 = arith.constant 0 : index
    %18 = vector.load %arg7[%c0_17, %c0_18] : memref<32x32xbf16, #tpu.memory_space<vmem>>, vector<32x32xbf16>
    %c0_19 = arith.constant 0 : index
    %c0_20 = arith.constant 0 : index
    %19 = vector.load %arg8[%c0_19, %c0_20] : memref<1x32xf32, #tpu.memory_space<vmem>>, vector<1x32xf32>
    %20 = arith.truncf %8 : vector<8x32xf32> to vector<8x32xbf16>
    %21 = arith.truncf %14 : vector<8x32xf32> to vector<8x32xbf16>
    %22 = arith.truncf %15 : vector<8x32xf32> to vector<8x32xbf16>
    %23 = vector.extract_strided_slice %20 {offsets = [0, 0], sizes = [8, 8], strides = [1, 1]} : vector<8x32xbf16> to vector<8x8xbf16>
    %24 = vector.extract_strided_slice %21 {offsets = [0, 0], sizes = [8, 8], strides = [1, 1]} : vector<8x32xbf16> to vector<8x8xbf16>
    %cst_21 = arith.constant dense<0.000000e+00> : vector<8x8xf32>
    %25 = tpu.matmul %23, %24, %cst_21 {dimension_numbers = #tpu.dot_dimension_numbers<[1], [1], [0], [0], [0, 0, 1, 0], [], []>} : vector<8x8xbf16>, vector<8x8xbf16>, vector<8x8xf32> -> vector<8x8xf32>
    %26 = vector.broadcast %17 : vector<1x8xf32> to vector<8x8xf32>
    %27 = arith.addf %25, %26 : vector<8x8xf32>
    %cst_22 = arith.constant dense<0xFF800000> : vector<8xf32>
    %28 = vector.multi_reduction <maximumf>, %27, %cst_22 [1] : vector<8x8xf32> to vector<8xf32>
    %29 = vector.shape_cast %28 : vector<8xf32> to vector<8x1xf32>
    %30 = vector.broadcast %29 : vector<8x1xf32> to vector<8x8xf32>
    %31 = arith.subf %27, %30 : vector<8x8xf32>
    %32 = math.exp %31 : vector<8x8xf32>
    %cst_23 = arith.constant dense<0.000000e+00> : vector<8xf32>
    %33 = vector.multi_reduction <add>, %32, %cst_23 [1] : vector<8x8xf32> to vector<8xf32>
    %34 = vector.shape_cast %33 : vector<8xf32> to vector<8x1xf32>
    %35 = arith.truncf %32 : vector<8x8xf32> to vector<8x8xbf16>
    %36 = vector.extract_strided_slice %22 {offsets = [0, 0], sizes = [8, 8], strides = [1, 1]} : vector<8x32xbf16> to vector<8x8xbf16>
    %cst_24 = arith.constant dense<0.000000e+00> : vector<8x8xf32>
    %37 = tpu.matmul %35, %36, %cst_24 {dimension_numbers = #tpu.dot_dimension_numbers<[1], [0], [0], [1], [0, 0, 1, 1], [], []>} : vector<8x8xbf16>, vector<8x8xbf16>, vector<8x8xf32> -> vector<8x8xf32>
    %38 = vector.broadcast %34 : vector<8x1xf32> to vector<8x8xf32>
    %39 = arith.divf %37, %38 : vector<8x8xf32>
    %40 = vector.extract_strided_slice %20 {offsets = [0, 8], sizes = [8, 8], strides = [1, 1]} : vector<8x32xbf16> to vector<8x8xbf16>
    %41 = vector.extract_strided_slice %21 {offsets = [0, 8], sizes = [8, 8], strides = [1, 1]} : vector<8x32xbf16> to vector<8x8xbf16>
    %cst_25 = arith.constant dense<0.000000e+00> : vector<8x8xf32>
    %42 = tpu.matmul %40, %41, %cst_25 {dimension_numbers = #tpu.dot_dimension_numbers<[1], [1], [0], [0], [0, 0, 1, 0], [], []>} : vector<8x8xbf16>, vector<8x8xbf16>, vector<8x8xf32> -> vector<8x8xf32>
    %43 = vector.broadcast %17 : vector<1x8xf32> to vector<8x8xf32>
    %44 = arith.addf %42, %43 : vector<8x8xf32>
    %cst_26 = arith.constant dense<0xFF800000> : vector<8xf32>
    %45 = vector.multi_reduction <maximumf>, %44, %cst_26 [1] : vector<8x8xf32> to vector<8xf32>
    %46 = vector.shape_cast %45 : vector<8xf32> to vector<8x1xf32>
    %47 = vector.broadcast %46 : vector<8x1xf32> to vector<8x8xf32>
    %48 = arith.subf %44, %47 : vector<8x8xf32>
    %49 = math.exp %48 : vector<8x8xf32>
    %cst_27 = arith.constant dense<0.000000e+00> : vector<8xf32>
    %50 = vector.multi_reduction <add>, %49, %cst_27 [1] : vector<8x8xf32> to vector<8xf32>
    %51 = vector.shape_cast %50 : vector<8xf32> to vector<8x1xf32>
    %52 = arith.truncf %49 : vector<8x8xf32> to vector<8x8xbf16>
    %53 = vector.extract_strided_slice %22 {offsets = [0, 8], sizes = [8, 8], strides = [1, 1]} : vector<8x32xbf16> to vector<8x8xbf16>
    %cst_28 = arith.constant dense<0.000000e+00> : vector<8x8xf32>
    %54 = tpu.matmul %52, %53, %cst_28 {dimension_numbers = #tpu.dot_dimension_numbers<[1], [0], [0], [1], [0, 0, 1, 1], [], []>} : vector<8x8xbf16>, vector<8x8xbf16>, vector<8x8xf32> -> vector<8x8xf32>
    %55 = vector.broadcast %51 : vector<8x1xf32> to vector<8x8xf32>
    %56 = arith.divf %54, %55 : vector<8x8xf32>
    %57 = vector.extract_strided_slice %20 {offsets = [0, 16], sizes = [8, 8], strides = [1, 1]} : vector<8x32xbf16> to vector<8x8xbf16>
    %58 = vector.extract_strided_slice %21 {offsets = [0, 16], sizes = [8, 8], strides = [1, 1]} : vector<8x32xbf16> to vector<8x8xbf16>
    %cst_29 = arith.constant dense<0.000000e+00> : vector<8x8xf32>
    %59 = tpu.matmul %57, %58, %cst_29 {dimension_numbers = #tpu.dot_dimension_numbers<[1], [1], [0], [0], [0, 0, 1, 0], [], []>} : vector<8x8xbf16>, vector<8x8xbf16>, vector<8x8xf32> -> vector<8x8xf32>
    %60 = vector.broadcast %17 : vector<1x8xf32> to vector<8x8xf32>
    %61 = arith.addf %59, %60 : vector<8x8xf32>
    %cst_30 = arith.constant dense<0xFF800000> : vector<8xf32>
    %62 = vector.multi_reduction <maximumf>, %61, %cst_30 [1] : vector<8x8xf32> to vector<8xf32>
    %63 = vector.shape_cast %62 : vector<8xf32> to vector<8x1xf32>
    %64 = vector.broadcast %63 : vector<8x1xf32> to vector<8x8xf32>
    %65 = arith.subf %61, %64 : vector<8x8xf32>
    %66 = math.exp %65 : vector<8x8xf32>
    %cst_31 = arith.constant dense<0.000000e+00> : vector<8xf32>
    %67 = vector.multi_reduction <add>, %66, %cst_31 [1] : vector<8x8xf32> to vector<8xf32>
    %68 = vector.shape_cast %67 : vector<8xf32> to vector<8x1xf32>
    %69 = arith.truncf %66 : vector<8x8xf32> to vector<8x8xbf16>
    %70 = vector.extract_strided_slice %22 {offsets = [0, 16], sizes = [8, 8], strides = [1, 1]} : vector<8x32xbf16> to vector<8x8xbf16>
    %cst_32 = arith.constant dense<0.000000e+00> : vector<8x8xf32>
    %71 = tpu.matmul %69, %70, %cst_32 {dimension_numbers = #tpu.dot_dimension_numbers<[1], [0], [0], [1], [0, 0, 1, 1], [], []>} : vector<8x8xbf16>, vector<8x8xbf16>, vector<8x8xf32> -> vector<8x8xf32>
    %72 = vector.broadcast %68 : vector<8x1xf32> to vector<8x8xf32>
    %73 = arith.divf %71, %72 : vector<8x8xf32>
    %74 = vector.extract_strided_slice %20 {offsets = [0, 24], sizes = [8, 8], strides = [1, 1]} : vector<8x32xbf16> to vector<8x8xbf16>
    %75 = vector.extract_strided_slice %21 {offsets = [0, 24], sizes = [8, 8], strides = [1, 1]} : vector<8x32xbf16> to vector<8x8xbf16>
    %cst_33 = arith.constant dense<0.000000e+00> : vector<8x8xf32>
    %76 = tpu.matmul %74, %75, %cst_33 {dimension_numbers = #tpu.dot_dimension_numbers<[1], [1], [0], [0], [0, 0, 1, 0], [], []>} : vector<8x8xbf16>, vector<8x8xbf16>, vector<8x8xf32> -> vector<8x8xf32>
    %77 = vector.broadcast %17 : vector<1x8xf32> to vector<8x8xf32>
    %78 = arith.addf %76, %77 : vector<8x8xf32>
    %cst_34 = arith.constant dense<0xFF800000> : vector<8xf32>
    %79 = vector.multi_reduction <maximumf>, %78, %cst_34 [1] : vector<8x8xf32> to vector<8xf32>
    %80 = vector.shape_cast %79 : vector<8xf32> to vector<8x1xf32>
    %81 = vector.broadcast %80 : vector<8x1xf32> to vector<8x8xf32>
    %82 = arith.subf %78, %81 : vector<8x8xf32>
    %83 = math.exp %82 : vector<8x8xf32>
    %cst_35 = arith.constant dense<0.000000e+00> : vector<8xf32>
    %84 = vector.multi_reduction <add>, %83, %cst_35 [1] : vector<8x8xf32> to vector<8xf32>
    %85 = vector.shape_cast %84 : vector<8xf32> to vector<8x1xf32>
    %86 = arith.truncf %83 : vector<8x8xf32> to vector<8x8xbf16>
    %87 = vector.extract_strided_slice %22 {offsets = [0, 24], sizes = [8, 8], strides = [1, 1]} : vector<8x32xbf16> to vector<8x8xbf16>
    %cst_36 = arith.constant dense<0.000000e+00> : vector<8x8xf32>
    %88 = tpu.matmul %86, %87, %cst_36 {dimension_numbers = #tpu.dot_dimension_numbers<[1], [0], [0], [1], [0, 0, 1, 1], [], []>} : vector<8x8xbf16>, vector<8x8xbf16>, vector<8x8xf32> -> vector<8x8xf32>
    %89 = vector.broadcast %85 : vector<8x1xf32> to vector<8x8xf32>
    %90 = arith.divf %88, %89 : vector<8x8xf32>
    %91 = tpu.concatenate %39, %56, %73, %90 in 1 : vector<8x8xf32>, vector<8x8xf32>, vector<8x8xf32>, vector<8x8xf32> -> vector<8x32xf32>
    %92 = arith.truncf %91 : vector<8x32xf32> to vector<8x32xbf16>
    %cst_37 = arith.constant dense<0.000000e+00> : vector<8x32xf32>
    %93 = tpu.matmul %92, %18, %cst_37 {dimension_numbers = #tpu.dot_dimension_numbers<[1], [0], [0], [1], [0, 0, 1, 1], [], []>} : vector<8x32xbf16>, vector<32x32xbf16>, vector<8x32xf32> -> vector<8x32xf32>
    %94 = vector.broadcast %19 : vector<1x32xf32> to vector<8x32xf32>
    %95 = arith.addf %93, %94 : vector<8x32xf32>
    %96 = arith.extf %1 : vector<8x32xbf16> to vector<8x32xf32>
    %97 = arith.addf %96, %95 : vector<8x32xf32>
    %c0_38 = arith.constant 0 : index
    %c0_39 = arith.constant 0 : index
    %98 = vector.load %arg10[%c0_38, %c0_39] : memref<1x32xf32, #tpu.memory_space<vmem>>, vector<1x32xf32>
    %c0_40 = arith.constant 0 : index
    %c0_41 = arith.constant 0 : index
    %99 = vector.load %arg11[%c0_40, %c0_41] : memref<1x32xf32, #tpu.memory_space<vmem>>, vector<1x32xf32>
    %cst_42 = arith.constant dense<0.000000e+00> : vector<8xf32>
    %100 = vector.multi_reduction <add>, %97, %cst_42 [1] : vector<8x32xf32> to vector<8xf32>
    %101 = vector.shape_cast %100 : vector<8xf32> to vector<8x1xf32>
    %cst_43 = arith.constant 3.200000e+01 : f32
    %102 = vector.broadcast %cst_43 : f32 to vector<8x1xf32>
    %103 = arith.divf %101, %102 : vector<8x1xf32>
    %104 = vector.broadcast %103 : vector<8x1xf32> to vector<8x32xf32>
    %105 = arith.subf %97, %104 : vector<8x32xf32>
    %106 = arith.mulf %105, %105 : vector<8x32xf32>
    %cst_44 = arith.constant dense<0.000000e+00> : vector<8xf32>
    %107 = vector.multi_reduction <add>, %106, %cst_44 [1] : vector<8x32xf32> to vector<8xf32>
    %108 = vector.shape_cast %107 : vector<8xf32> to vector<8x1xf32>
    %cst_45 = arith.constant 3.200000e+01 : f32
    %109 = vector.broadcast %cst_45 : f32 to vector<8x1xf32>
    %110 = arith.divf %108, %109 : vector<8x1xf32>
    %cst_46 = arith.constant 9.99999974E-6 : f32
    %111 = vector.broadcast %cst_46 : f32 to vector<8x1xf32>
    %112 = arith.addf %110, %111 : vector<8x1xf32>
    %113 = math.rsqrt %112 : vector<8x1xf32>
    %114 = vector.broadcast %113 : vector<8x1xf32> to vector<8x32xf32>
    %115 = arith.mulf %105, %114 : vector<8x32xf32>
    %116 = vector.broadcast %98 : vector<1x32xf32> to vector<8x32xf32>
    %117 = arith.mulf %115, %116 : vector<8x32xf32>
    %118 = vector.broadcast %99 : vector<1x32xf32> to vector<8x32xf32>
    %119 = arith.addf %117, %118 : vector<8x32xf32>
    %120 = arith.truncf %119 : vector<8x32xf32> to vector<8x32xbf16>
    %c0_47 = arith.constant 0 : index
    %c0_48 = arith.constant 0 : index
    %c0_49 = arith.constant 0 : index
    %121 = vector.load %arg12[%c0_47, %c0_48, %c0_49] : memref<1x8x32xbf16, #tpu.memory_space<vmem>>, vector<1x8x32xbf16>
    %122 = vector.shape_cast %121 : vector<1x8x32xbf16> to vector<8x32xbf16>
    %123 = vector.shape_cast %120 : vector<8x32xbf16> to vector<1x8x32xbf16>
    tpu.vector_store %arg12[%c0_47, %c0_48, %c0_49], %123 {strides = array<i32>} : memref<1x8x32xbf16, #tpu.memory_space<vmem>>, vector<1x8x32xbf16>,
    return
  }
  func.func @transform_0(%arg0: i32) -> (i32, i32, i32) {
    %c0_i32 = arith.constant 0 : i32
    %c0_i32_0 = arith.constant 0 : i32
    %c0_i32_1 = arith.constant 0 : i32
    return %arg0, %c0_i32, %c0_i32_0 : i32, i32, i32
  }
  func.func @transform_1(%arg0: i32) -> (i32, i32, i32) {
    %c0_i32 = arith.constant 0 : i32
    %c0_i32_0 = arith.constant 0 : i32
    %c0_i32_1 = arith.constant 0 : i32
    return %arg0, %c0_i32, %c0_i32_0 : i32, i32, i32
  }
  func.func @transform_2(%arg0: i32) -> (i32, i32) {
    %c0_i32 = arith.constant 0 : i32
    %c0_i32_0 = arith.constant 0 : i32
    %c0_i32_1 = arith.constant 0 : i32
    return %c0_i32, %c0_i32_0 : i32, i32
  }
  func.func @transform_3(%arg0: i32) -> (i32, i32) {
    %c0_i32 = arith.constant 0 : i32
    %c0_i32_0 = arith.constant 0 : i32
    %c0_i32_1 = arith.constant 0 : i32
    return %c0_i32, %c0_i32_0 : i32, i32
  }
  func.func @transform_4(%arg0: i32) -> (i32, i32) {
    %c0_i32 = arith.constant 0 : i32
    %c0_i32_0 = arith.constant 0 : i32
    %c0_i32_1 = arith.constant 0 : i32
    return %c0_i32, %c0_i32_0 : i32, i32
  }
  func.func @transform_5(%arg0: i32) -> (i32, i32) {
    %c0_i32 = arith.constant 0 : i32
    %c0_i32_0 = arith.constant 0 : i32
    %c0_i32_1 = arith.constant 0 : i32
    return %c0_i32, %c0_i32_0 : i32, i32
  }
  func.func @transform_6(%arg0: i32) -> (i32, i32) {
    %c0_i32 = arith.constant 0 : i32
    %c0_i32_0 = arith.constant 0 : i32
    %c0_i32_1 = arith.constant 0 : i32
    return %c0_i32, %c0_i32_0 : i32, i32
  }
  func.func @transform_7(%arg0: i32) -> (i32, i32) {
    %c0_i32 = arith.constant 0 : i32
    %c0_i32_0 = arith.constant 0 : i32
    %c0_i32_1 = arith.constant 0 : i32
    return %c0_i32, %c0_i32_0 : i32, i32
  }
  func.func @transform_8(%arg0: i32) -> (i32, i32, i32) {
    %c0_i32 = arith.constant 0 : i32
    %c0_i32_0 = arith.constant 0 : i32
    %c0_i32_1 = arith.constant 0 : i32
    return %arg0, %c0_i32, %c0_i32_0 : i32, i32, i32
  }
  func.func @transform_9(%arg0: i32) -> (i32, i32) {
    %c0_i32 = arith.constant 0 : i32
    %c0_i32_0 = arith.constant 0 : i32
    %c0_i32_1 = arith.constant 0 : i32
    return %c0_i32, %c0_i32_0 : i32, i32
  }
  func.func @transform_10(%arg0: i32) -> (i32, i32) {
    %c0_i32 = arith.constant 0 : i32
    %c0_i32_0 = arith.constant 0 : i32
    %c0_i32_1 = arith.constant 0 : i32
    return %c0_i32, %c0_i32_0 : i32, i32
  }
  func.func @transform_11(%arg0: i32) -> (i32, i32, i32) {
    %c0_i32 = arith.constant 0 : i32
    %c0_i32_0 = arith.constant 0 : i32
    %c0_i32_1 = arith.constant 0 : i32
    return %arg0, %c0_i32, %c0_i32_0 : i32, i32, i32
  }
}

module attributes {stable_mosaic.version = 11 : i64} {
  func.func @_ln_generator_kernel(%arg0: i32, %arg1: memref<1x8x32xbf16, #tpu.memory_space<vmem>>, %arg2: memref<1x32xf32, #tpu.memory_space<vmem>>, %arg3: memref<1x32xf32, #tpu.memory_space<vmem>>, %arg4: memref<32x128xbf16, #tpu.memory_space<vmem>>, %arg5: memref<1x128xf32, #tpu.memory_space<vmem>>, %arg6: memref<1x8x128xf32, #tpu.memory_space<vmem>>) attributes {dimension_semantics = [#tpu.dimension_semantics<parallel>], iteration_bounds = array<i64: 2>, scalar_prefetch = 0 : i64, scratch_operands = 0 : i64, tpu.core_type = #tpu.core_type<tc>, window_params = [{transform_indices = @transform_0, window_bounds = array<i64: 1, 8, 32>}, {pipeline_mode = #tpu.pipeline_mode<synchronous>, transform_indices = @transform_1, window_bounds = array<i64: 1, 32>}, {pipeline_mode = #tpu.pipeline_mode<synchronous>, transform_indices = @transform_2, window_bounds = array<i64: 1, 32>}, {pipeline_mode = #tpu.pipeline_mode<synchronous>, transform_indices = @transform_3, window_bounds = array<i64: 32, 128>}, {pipeline_mode = #tpu.pipeline_mode<synchronous>, transform_indices = @transform_4, window_bounds = array<i64: 1, 128>}, {transform_indices = @transform_5, window_bounds = array<i64: 1, 8, 128>}]} {
    %c0 = arith.constant 0 : index
    %c0_0 = arith.constant 0 : index
    %c0_1 = arith.constant 0 : index
    %0 = vector.load %arg1[%c0, %c0_0, %c0_1] : memref<1x8x32xbf16, #tpu.memory_space<vmem>>, vector<1x8x32xbf16>
    %1 = vector.shape_cast %0 : vector<1x8x32xbf16> to vector<8x32xbf16>
    %2 = arith.extf %1 : vector<8x32xbf16> to vector<8x32xf32>
    %c0_2 = arith.constant 0 : index
    %c0_3 = arith.constant 0 : index
    %3 = vector.load %arg2[%c0_2, %c0_3] : memref<1x32xf32, #tpu.memory_space<vmem>>, vector<1x32xf32>
    %c0_4 = arith.constant 0 : index
    %c0_5 = arith.constant 0 : index
    %4 = vector.load %arg3[%c0_4, %c0_5] : memref<1x32xf32, #tpu.memory_space<vmem>>, vector<1x32xf32>
    %cst = arith.constant dense<0.000000e+00> : vector<8xf32>
    %5 = vector.multi_reduction <add>, %2, %cst [1] : vector<8x32xf32> to vector<8xf32>
    %6 = vector.shape_cast %5 : vector<8xf32> to vector<8x1xf32>
    %cst_6 = arith.constant 3.200000e+01 : f32
    %7 = vector.broadcast %cst_6 : f32 to vector<8x1xf32>
    %8 = arith.divf %6, %7 : vector<8x1xf32>
    %9 = vector.broadcast %8 : vector<8x1xf32> to vector<8x32xf32>
    %10 = arith.subf %2, %9 : vector<8x32xf32>
    %11 = arith.mulf %10, %10 : vector<8x32xf32>
    %cst_7 = arith.constant dense<0.000000e+00> : vector<8xf32>
    %12 = vector.multi_reduction <add>, %11, %cst_7 [1] : vector<8x32xf32> to vector<8xf32>
    %13 = vector.shape_cast %12 : vector<8xf32> to vector<8x1xf32>
    %cst_8 = arith.constant 3.200000e+01 : f32
    %14 = vector.broadcast %cst_8 : f32 to vector<8x1xf32>
    %15 = arith.divf %13, %14 : vector<8x1xf32>
    %cst_9 = arith.constant 9.99999974E-6 : f32
    %16 = vector.broadcast %cst_9 : f32 to vector<8x1xf32>
    %17 = arith.addf %15, %16 : vector<8x1xf32>
    %18 = math.rsqrt %17 : vector<8x1xf32>
    %19 = vector.broadcast %18 : vector<8x1xf32> to vector<8x32xf32>
    %20 = arith.mulf %10, %19 : vector<8x32xf32>
    %21 = vector.broadcast %3 : vector<1x32xf32> to vector<8x32xf32>
    %22 = arith.mulf %20, %21 : vector<8x32xf32>
    %23 = vector.broadcast %4 : vector<1x32xf32> to vector<8x32xf32>
    %24 = arith.addf %22, %23 : vector<8x32xf32>
    %25 = arith.truncf %24 : vector<8x32xf32> to vector<8x32xbf16>
    %c0_10 = arith.constant 0 : index
    %c0_11 = arith.constant 0 : index
    %26 = vector.load %arg4[%c0_10, %c0_11] : memref<32x128xbf16, #tpu.memory_space<vmem>>, vector<32x128xbf16>
    %cst_12 = arith.constant dense<0.000000e+00> : vector<8x128xf32>
    %27 = tpu.matmul %25, %26, %cst_12 {dimension_numbers = #tpu.dot_dimension_numbers<[1], [0], [0], [1], [0, 0, 1, 1], [], []>} : vector<8x32xbf16>, vector<32x128xbf16>, vector<8x128xf32> -> vector<8x128xf32>
    %c0_13 = arith.constant 0 : index
    %c0_14 = arith.constant 0 : index
    %28 = vector.load %arg5[%c0_13, %c0_14] : memref<1x128xf32, #tpu.memory_space<vmem>>, vector<1x128xf32>
    %29 = vector.broadcast %28 : vector<1x128xf32> to vector<8x128xf32>
    %30 = arith.addf %27, %29 : vector<8x128xf32>
    %c0_15 = arith.constant 0 : index
    %c0_16 = arith.constant 0 : index
    %c0_17 = arith.constant 0 : index
    %31 = vector.load %arg6[%c0_15, %c0_16, %c0_17] : memref<1x8x128xf32, #tpu.memory_space<vmem>>, vector<1x8x128xf32>
    %32 = vector.shape_cast %31 : vector<1x8x128xf32> to vector<8x128xf32>
    %33 = vector.shape_cast %30 : vector<8x128xf32> to vector<1x8x128xf32>
    tpu.vector_store %arg6[%c0_15, %c0_16, %c0_17], %33 {strides = array<i32>} : memref<1x8x128xf32, #tpu.memory_space<vmem>>, vector<1x8x128xf32>,
    return
  }
  func.func @transform_0(%arg0: i32) -> (i32, i32, i32) {
    %c0_i32 = arith.constant 0 : i32
    %c0_i32_0 = arith.constant 0 : i32
    %c0_i32_1 = arith.constant 0 : i32
    return %arg0, %c0_i32, %c0_i32_0 : i32, i32, i32
  }
  func.func @transform_1(%arg0: i32) -> (i32, i32) {
    %c0_i32 = arith.constant 0 : i32
    %c0_i32_0 = arith.constant 0 : i32
    %c0_i32_1 = arith.constant 0 : i32
    return %c0_i32, %c0_i32_0 : i32, i32
  }
  func.func @transform_2(%arg0: i32) -> (i32, i32) {
    %c0_i32 = arith.constant 0 : i32
    %c0_i32_0 = arith.constant 0 : i32
    %c0_i32_1 = arith.constant 0 : i32
    return %c0_i32, %c0_i32_0 : i32, i32
  }
  func.func @transform_3(%arg0: i32) -> (i32, i32) {
    %c0_i32 = arith.constant 0 : i32
    %c0_i32_0 = arith.constant 0 : i32
    %c0_i32_1 = arith.constant 0 : i32
    return %c0_i32, %c0_i32_0 : i32, i32
  }
  func.func @transform_4(%arg0: i32) -> (i32, i32) {
    %c0_i32 = arith.constant 0 : i32
    %c0_i32_0 = arith.constant 0 : i32
    %c0_i32_1 = arith.constant 0 : i32
    return %c0_i32, %c0_i32_0 : i32, i32
  }
  func.func @transform_5(%arg0: i32) -> (i32, i32, i32) {
    %c0_i32 = arith.constant 0 : i32
    %c0_i32_0 = arith.constant 0 : i32
    %c0_i32_1 = arith.constant 0 : i32
    return %arg0, %c0_i32, %c0_i32_0 : i32, i32, i32
  }
}

</mosaic_0001>

<llo_original>
// kernel: forward.16
$region0: #{forward.16}
  #allocation0 [shape = 'u32[]', space=smem, size = 0x4, offset = 0x4, fixed_abs, tag = 'smem constant byte address 0x4 - core index']
  #allocation1 [shape = 'u32[144,128]{1,0:T(1,128)}', space=vmem, size = 0x12000, scoped, tag = 'internal scratch']
  %s0 = inlined_call_operand.vmem [shape: bf16[2,8,32], index: 0, kind: input, shape index: {}]
  %s1 = inlined_call_operand.vmem [shape: f32[1,32], index: 1, kind: input, shape index: {}]
  %s2 = inlined_call_operand.vmem [shape: f32[1,32], index: 2, kind: input, shape index: {}]
  %s3 = inlined_call_operand.vmem [shape: bf16[2,8,32], index: 3, kind: output, shape index: {}]
  %s4 = sld [smem:[#allocation0]]
  $region45: #{forward.16} parent=0
    _
  %s6 = ssub.s32 1, %s4
  %s7 = scalar_select 0, %s6, %s4
  loop: start=0, step=1, limit=4
  $region2: #{forward.16} parent=0 // loop_pre_header
    _
  $region3: #{forward.16} parent=0 // loop_header
    %s9 = sphi 0, %s13
    %p10 = scmp.ge.s32.totalorder %s9, 4
    %s19 = sphi 0, %s21
    %s22 = sphi 0, %s19
    %s23 = sphi 0, %s22
    %s39 = sphi 0, %s23
    %s43 = sphi 0, %s43
    %s45 = sphi 0, %s43
    %s46 = sphi 0, %s45
    %s60 = sphi 0, %s46
    %s64 = sphi 0, %s64
    %s66 = sphi 0, %s64
    %s67 = sphi 0, %s66
    %s81 = sphi 0, %s67
    %s87 = sphi 0, %s89
    %s90 = sphi 0, %s87
    %s91 = sphi 0, %s90
    %s107 = sphi 0, %s91
  $region4: #{forward.16} parent=0 // loop_header_branch
    %12 = sbr.rel (%p10) target = $region8
  $region5: #{forward.16} parent=0 // loop_body
    %s14 = ssub.s32 %s9, 1
    %s15 = ssub.s32 %s9, 2
    %s16 = sadd.s32 %s9, 1
    %s17 = ssub.s32 %s9, %s16
    %p18 = scmp.eq.s32.totalorder %s17, 0
    %s20 = sadd.s32 %s19, 1
    %s21 = scalar_select %p18, %s19, %s20
    %p24 = pneg %p18
    %p25 = scmp.eq.s32.totalorder %s9, 1
    %p26 = por %p24, %p25
    %p27 = scmp.ne.s32.totalorder %s19, %s22
    %p28 = scmp.eq.s32.totalorder %s9, 0
    %p29 = por %p27, %p28
    %p30 = scmp.ne.s32.totalorder %s19, %s22
    %p31 = scmp.eq.s32.totalorder %s14, 1
    %p32 = por %p30, %p31
    %p33 = scmp.ne.s32.totalorder %s22, %s23
    %p34 = scmp.eq.s32.totalorder %s14, 0
    %p35 = por %p33, %p34
    %p36 = scmp.ne.s32.totalorder %s22, %s23
    %p37 = scmp.eq.s32.totalorder %s15, 1
    %p38 = por %p36, %p37
    %p40 = scmp.ne.s32.totalorder %s23, %s39
    %p41 = scmp.eq.s32.totalorder %s15, 0
    %p42 = por %p40, %p41
    %s44 = sadd.s32 %s43, 1
    %p47 = scmp.eq.s32.totalorder %s9, 1
    %p48 = scmp.ne.s32.totalorder %s43, %s45
    %p49 = scmp.eq.s32.totalorder %s9, 0
    %p50 = por %p48, %p49
    %p51 = scmp.ne.s32.totalorder %s43, %s45
    %p52 = scmp.eq.s32.totalorder %s14, 1
    %p53 = por %p51, %p52
    %p54 = scmp.ne.s32.totalorder %s45, %s46
    %p55 = scmp.eq.s32.totalorder %s14, 0
    %p56 = por %p54, %p55
    %p57 = scmp.ne.s32.totalorder %s45, %s46
    %p58 = scmp.eq.s32.totalorder %s15, 1
    %p59 = por %p57, %p58
    %p61 = scmp.ne.s32.totalorder %s46, %s60
    %p62 = scmp.eq.s32.totalorder %s15, 0
    %p63 = por %p61, %p62
    %s65 = sadd.s32 %s64, 1
    %p68 = scmp.eq.s32.totalorder %s9, 1
    %p69 = scmp.ne.s32.totalorder %s64, %s66
    %p70 = scmp.eq.s32.totalorder %s9, 0
    %p71 = por %p69, %p70
    %p72 = scmp.ne.s32.totalorder %s64, %s66
    %p73 = scmp.eq.s32.totalorder %s14, 1
    %p74 = por %p72, %p73
    %p75 = scmp.ne.s32.totalorder %s66, %s67
    %p76 = scmp.eq.s32.totalorder %s14, 0
    %p77 = por %p75, %p76
    %p78 = scmp.ne.s32.totalorder %s66, %s67
    %p79 = scmp.eq.s32.totalorder %s15, 1
    %p80 = por %p78, %p79
    %p82 = scmp.ne.s32.totalorder %s67, %s81
    %p83 = scmp.eq.s32.totalorder %s15, 0
    %p84 = por %p82, %p83
    %s85 = ssub.s32 %s9, %s16
    %p86 = scmp.eq.s32.totalorder %s85, 0
    %s88 = sadd.s32 %s87, 1
    %s89 = scalar_select %p86, %s87, %s88
    %p92 = pneg %p86
    %p93 = scmp.eq.s32.totalorder %s9, 1
    %p94 = por %p92, %p93
    %p95 = scmp.ne.s32.totalorder %s87, %s90
    %p96 = scmp.eq.s32.totalorder %s9, 0
    %p97 = por %p95, %p96
    %p98 = scmp.ne.s32.totalorder %s87, %s90
    %p99 = scmp.eq.s32.totalorder %s14, 1
    %p100 = por %p98, %p99
    %p101 = scmp.ne.s32.totalorder %s90, %s91
    %p102 = scmp.eq.s32.totalorder %s14, 0
    %p103 = por %p101, %p102
    %p104 = scmp.ne.s32.totalorder %s90, %s91
    %p105 = scmp.eq.s32.totalorder %s15, 1
    %p106 = por %p104, %p105
    %p108 = scmp.ne.s32.totalorder %s91, %s107
    %p109 = scmp.eq.s32.totalorder %s15, 0
    %p110 = por %p108, %p109
    %p111 = scmp.le.s32.totalorder 1, %s9
    %p112 = scmp.lt.s32.totalorder %s9, 3
    %p113 = pnand %p111, %p112
    %p114 = pneg %p113
    // Predicated region
    $region9: #{forward.16} parent=5 // pred_check
      _
    $region10: #{forward.16} parent=5 // pred_check_branch
      %116 = sbr.rel (%p113) target = $region12
    $region11: #{forward.16} parent=5 // pred_region
      %s117 = ssub.s32 %s9, 1
      // Predicated region
      $region13: #{forward.16} parent=11 // pred_check
        %p118 = pneg %p56
      $region14: #{forward.16} parent=11 // pred_check_branch
        %120 = sbr.rel (%p118) target = $region16
      $region15: #{forward.16} parent=11 // pred_region
        _
      $region16: #{forward.16} parent=11 // pred_fallthru
        _
      // Predicated region
      $region17: #{forward.16} parent=11 // pred_check
        %p121 = pneg %p77
      $region18: #{forward.16} parent=11 // pred_check_branch
        %123 = sbr.rel (%p121) target = $region20
      $region19: #{forward.16} parent=11 // pred_region
        _
      $region20: #{forward.16} parent=11 // pred_fallthru
        _
    $region12: #{forward.16} parent=5 // pred_fallthru
      _
    %p124 = scmp.lt.s32.totalorder %s9, 2
    // Predicated region
    $region21: #{forward.16} parent=5 // pred_check
      %p125 = pneg %p124
    $region22: #{forward.16} parent=5 // pred_check_branch
      %127 = sbr.rel (%p125) target = $region24
    $region23: #{forward.16} parent=5 // pred_region
      // Predicated region
      $region25: #{forward.16} parent=23 // pred_check
        %p128 = pneg %p29
      $region26: #{forward.16} parent=23 // pred_check_branch
        %130 = sbr.rel (%p128) target = $region28
      $region27: #{forward.16} parent=23 // pred_region
        %p131 = scmp.lt.s32.totalorder %s9, 1
        %s132 = scalar_select %p131, %s9, 1
        %s133 = smul.addr %s132, 4
        %s134 = scalar_lea.vmem %s0, %s133
      $region28: #{forward.16} parent=23 // pred_fallthru
        _
    $region24: #{forward.16} parent=5 // pred_fallthru
      _
    %p135 = scmp.le.s32.totalorder 1, %s9
    %p136 = scmp.lt.s32.totalorder %s9, 3
    %p137 = pnand %p135, %p136
    %p138 = pneg %p137
    // Predicated region
    $region29: #{forward.16} parent=5 // pred_check
      _
    $region30: #{forward.16} parent=5 // pred_check_branch
      %140 = sbr.rel (%p137) target = $region32
    $region31: #{forward.16} parent=5 // pred_region
      %s141 = ssub.s32 %s9, 1
      %p142 = scmp.lt.s32.totalorder %s14, 1
      %s143 = scalar_select %p142, %s14, 1
      %s144 = smul.addr %s143, 4
      %s145 = scalar_lea.vmem %s0, %s144
      %p146 = pneg %p35
      %p147 = pneg %p32
      %p148 = pneg %p56
      %p149 = pneg %p53
      %p150 = pneg %p77
      %p151 = pneg %p74
      %p152 = pneg %p103
      %p153 = pneg %p100
      %p154 = scmp.lt.s32.totalorder %s14, 1
      %s155 = scalar_select %p154, %s14, 1
      %s156 = smul.addr %s155, 4
      %s157 = scalar_lea.vmem %s3, %s156
      %p158 = scmp.lt.s32.totalorder %s14, 1
      %s159 = scalar_select %p158, %s14, 1
      %s160 = smul.addr %s159, 4
      %s161 = scalar_lea.vmem %s0, %s160
      %p162 = scmp.lt.s32.totalorder %s14, 1
      %s163 = scalar_select %p162, %s14, 1
      %s164 = smul.addr %s163, 4
      %s165 = scalar_lea.vmem %s3, %s164
      %v166 = vld [vmem:[%s161] sm:$0xf]
      %v167 = vunpack.c.l.bf16 %v166
      %v168 = vld [vmem:[%s1] sm:$0x1]
      %v169 = vld [vmem:[%s2] sm:$0x1]
      %vm170 = vcmask 261120
      %v171 = vsel %vm170, %v167, 0.0
      %172 = vadd.xlane.f32.xlu0 %v171
      %v173 = vpop.xlane.xlu0 %172
      %v174 = vrcp.pop 32.0
      %v175 = vmul.f32 %v173, %v174
      %v176 = vsub.f32 %v167, %v175
      %v177 = vmul.f32 %v176, %v176
      %v178 = vsel %vm170, %v177, 0.0
      %179 = vadd.xlane.f32.xlu0 %v178
      %v180 = vpop.xlane.xlu0 %179
      %v181 = vmul.f32 %v180, %v174
      %v182 = vadd.f32 %v181, 1e-05
      %v183 = vrsqrt.pop %v182
      %v184 = vmul.f32 %v176, %v183
      %v186 = vlaneseq
      %v187 = vshrl.u32 %v186, 7
      %v188 = vsub.s32 0, %v187
      %v189 = vrot.slane %v168, %v188
      %v191 = vmul.f32 %v184, %v189
      %v193 = vlaneseq
      %v194 = vshrl.u32 %v193, 7
      %v195 = vsub.s32 0, %v194
      %v196 = vrot.slane %v169, %v195
      %v198 = vadd.f32 %v191, %v196
      %v199 = vpack.c.bf16 %v198, %v198
      %vm200 = vcmask 257024
      %201 = vst.msk [vmem:[%s165] sm:$0xf] %vm200, %v199
      %p202 = scmp.lt.s32.totalorder %s14, 1
      %s203 = scalar_select %p202, %s14, 1
      %s204 = smul.addr %s203, 4
      %s205 = scalar_lea.vmem %s3, %s204
      // Predicated region
      $region33: #{forward.16} parent=31 // pred_check
        %p206 = pneg %p100
      $region34: #{forward.16} parent=31 // pred_check_branch
        %208 = sbr.rel (%p206) target = $region36
      $region35: #{forward.16} parent=31 // pred_region
        _
      $region36: #{forward.16} parent=31 // pred_fallthru
        _
    $region32: #{forward.16} parent=5 // pred_fallthru
      _
    %p209 = scmp.le.s32.totalorder 2, %s9
    // Predicated region
    $region37: #{forward.16} parent=5 // pred_check
      %p210 = pneg %p209
    $region38: #{forward.16} parent=5 // pred_check_branch
      %212 = sbr.rel (%p210) target = $region40
    $region39: #{forward.16} parent=5 // pred_region
      %s213 = ssub.s32 %s9, 2
      // Predicated region
      $region41: #{forward.16} parent=39 // pred_check
        %p214 = pneg %p106
      $region42: #{forward.16} parent=39 // pred_check_branch
        %216 = sbr.rel (%p214) target = $region44
      $region43: #{forward.16} parent=39 // pred_region
        %p217 = scmp.lt.s32.totalorder %s15, 1
        %s218 = scalar_select %p217, %s15, 1
        %s219 = smul.addr %s218, 4
        %s220 = scalar_lea.vmem %s3, %s219
      $region44: #{forward.16} parent=39 // pred_fallthru
        _
    $region40: #{forward.16} parent=5 // pred_fallthru
      _
  $region6: #{forward.16} parent=0 // loop_footer
    %s13 = sadd.s32 1, %s9
  $region7: #{forward.16} parent=0 // loop_footer_branch
    %8 = sbr.rel target = $region3
  $region8: #{forward.16} parent=0 // loop_exit
    _

// kernel: forward.13
$region0: #{forward.13}
  #allocation0 [shape = 'u32[]', space=smem, size = 0x4, offset = 0x4, fixed_abs, tag = 'smem constant byte address 0x4 - core index']
  #allocation1 [shape = 'u32[144,128]{1,0:T(1,128)}', space=vmem, size = 0x12000, scoped, tag = 'internal scratch']
  %s0 = inlined_call_operand.vmem [shape: bf16[2,8,32], index: 0, kind: input, shape index: {}]
  %s1 = inlined_call_operand.vmem [shape: bf16[32,64], index: 1, kind: input, shape index: {}]
  %s2 = inlined_call_operand.vmem [shape: f32[1,64], index: 2, kind: input, shape index: {}]
  %s3 = inlined_call_operand.vmem [shape: bf16[64,32], index: 3, kind: input, shape index: {}]
  %s4 = inlined_call_operand.vmem [shape: f32[1,32], index: 4, kind: input, shape index: {}, may-alias: {4,6}]
  %s5 = inlined_call_operand.vmem [shape: f32[1,32], index: 5, kind: input, shape index: {}]
  %s6 = inlined_call_operand.vmem [shape: f32[1,32], index: 6, kind: input, shape index: {}, may-alias: {4,6}]
  %s7 = inlined_call_operand.vmem [shape: bf16[2,8,32], index: 7, kind: output, shape index: {}]
  %s8 = sld [smem:[#allocation0]]
  $region61: #{forward.13} parent=0
    _
  %s10 = ssub.s32 1, %s8
  %s11 = scalar_select 0, %s10, %s8
  loop: start=0, step=1, limit=4
  $region2: #{forward.13} parent=0 // loop_pre_header
    _
  $region3: #{forward.13} parent=0 // loop_header
    %s13 = sphi 0, %s17
    %p14 = scmp.ge.s32.totalorder %s13, 4
    %s23 = sphi 0, %s25
    %s26 = sphi 0, %s23
    %s27 = sphi 0, %s26
    %s43 = sphi 0, %s27
    %s47 = sphi 0, %s47
    %s49 = sphi 0, %s47
    %s50 = sphi 0, %s49
    %s64 = sphi 0, %s50
    %s68 = sphi 0, %s68
    %s70 = sphi 0, %s68
    %s71 = sphi 0, %s70
    %s85 = sphi 0, %s71
    %s89 = sphi 0, %s89
    %s91 = sphi 0, %s89
    %s92 = sphi 0, %s91
    %s106 = sphi 0, %s92
    %s110 = sphi 0, %s110
    %s112 = sphi 0, %s110
    %s113 = sphi 0, %s112
    %s127 = sphi 0, %s113
    %s131 = sphi 0, %s131
    %s133 = sphi 0, %s131
    %s134 = sphi 0, %s133
    %s148 = sphi 0, %s134
    %s152 = sphi 0, %s152
    %s154 = sphi 0, %s152
    %s155 = sphi 0, %s154
    %s169 = sphi 0, %s155
    %s175 = sphi 0, %s177
    %s178 = sphi 0, %s175
    %s179 = sphi 0, %s178
    %s195 = sphi 0, %s179
  $region4: #{forward.13} parent=0 // loop_header_branch
    %16 = sbr.rel (%p14) target = $region8
  $region5: #{forward.13} parent=0 // loop_body
    %s18 = ssub.s32 %s13, 1
    %s19 = ssub.s32 %s13, 2
    %s20 = sadd.s32 %s13, 1
    %s21 = ssub.s32 %s13, %s20
    %p22 = scmp.eq.s32.totalorder %s21, 0
    %s24 = sadd.s32 %s23, 1
    %s25 = scalar_select %p22, %s23, %s24
    %p28 = pneg %p22
    %p29 = scmp.eq.s32.totalorder %s13, 1
    %p30 = por %p28, %p29
    %p31 = scmp.ne.s32.totalorder %s23, %s26
    %p32 = scmp.eq.s32.totalorder %s13, 0
    %p33 = por %p31, %p32
    %p34 = scmp.ne.s32.totalorder %s23, %s26
    %p35 = scmp.eq.s32.totalorder %s18, 1
    %p36 = por %p34, %p35
    %p37 = scmp.ne.s32.totalorder %s26, %s27
    %p38 = scmp.eq.s32.totalorder %s18, 0
    %p39 = por %p37, %p38
    %p40 = scmp.ne.s32.totalorder %s26, %s27
    %p41 = scmp.eq.s32.totalorder %s19, 1
    %p42 = por %p40, %p41
    %p44 = scmp.ne.s32.totalorder %s27, %s43
    %p45 = scmp.eq.s32.totalorder %s19, 0
    %p46 = por %p44, %p45
    %s48 = sadd.s32 %s47, 1
    %p51 = scmp.eq.s32.totalorder %s13, 1
    %p52 = scmp.ne.s32.totalorder %s47, %s49
    %p53 = scmp.eq.s32.totalorder %s13, 0
    %p54 = por %p52, %p53
    %p55 = scmp.ne.s32.totalorder %s47, %s49
    %p56 = scmp.eq.s32.totalorder %s18, 1
    %p57 = por %p55, %p56
    %p58 = scmp.ne.s32.totalorder %s49, %s50
    %p59 = scmp.eq.s32.totalorder %s18, 0
    %p60 = por %p58, %p59
    %p61 = scmp.ne.s32.totalorder %s49, %s50
    %p62 = scmp.eq.s32.totalorder %s19, 1
    %p63 = por %p61, %p62
    %p65 = scmp.ne.s32.totalorder %s50, %s64
    %p66 = scmp.eq.s32.totalorder %s19, 0
    %p67 = por %p65, %p66
    %s69 = sadd.s32 %s68, 1
    %p72 = scmp.eq.s32.totalorder %s13, 1
    %p73 = scmp.ne.s32.totalorder %s68, %s70
    %p74 = scmp.eq.s32.totalorder %s13, 0
    %p75 = por %p73, %p74
    %p76 = scmp.ne.s32.totalorder %s68, %s70
    %p77 = scmp.eq.s32.totalorder %s18, 1
    %p78 = por %p76, %p77
    %p79 = scmp.ne.s32.totalorder %s70, %s71
    %p80 = scmp.eq.s32.totalorder %s18, 0
    %p81 = por %p79, %p80
    %p82 = scmp.ne.s32.totalorder %s70, %s71
    %p83 = scmp.eq.s32.totalorder %s19, 1
    %p84 = por %p82, %p83
    %p86 = scmp.ne.s32.totalorder %s71, %s85
    %p87 = scmp.eq.s32.totalorder %s19, 0
    %p88 = por %p86, %p87
    %s90 = sadd.s32 %s89, 1
    %p93 = scmp.eq.s32.totalorder %s13, 1
    %p94 = scmp.ne.s32.totalorder %s89, %s91
    %p95 = scmp.eq.s32.totalorder %s13, 0
    %p96 = por %p94, %p95
    %p97 = scmp.ne.s32.totalorder %s89, %s91
    %p98 = scmp.eq.s32.totalorder %s18, 1
    %p99 = por %p97, %p98
    %p100 = scmp.ne.s32.totalorder %s91, %s92
    %p101 = scmp.eq.s32.totalorder %s18, 0
    %p102 = por %p100, %p101
    %p103 = scmp.ne.s32.totalorder %s91, %s92
    %p104 = scmp.eq.s32.totalorder %s19, 1
    %p105 = por %p103, %p104
    %p107 = scmp.ne.s32.totalorder %s92, %s106
    %p108 = scmp.eq.s32.totalorder %s19, 0
    %p109 = por %p107, %p108
    %s111 = sadd.s32 %s110, 1
    %p114 = scmp.eq.s32.totalorder %s13, 1
    %p115 = scmp.ne.s32.totalorder %s110, %s112
    %p116 = scmp.eq.s32.totalorder %s13, 0
    %p117 = por %p115, %p116
    %p118 = scmp.ne.s32.totalorder %s110, %s112
    %p119 = scmp.eq.s32.totalorder %s18, 1
    %p120 = por %p118, %p119
    %p121 = scmp.ne.s32.totalorder %s112, %s113
    %p122 = scmp.eq.s32.totalorder %s18, 0
    %p123 = por %p121, %p122
    %p124 = scmp.ne.s32.totalorder %s112, %s113
    %p125 = scmp.eq.s32.totalorder %s19, 1
    %p126 = por %p124, %p125
    %p128 = scmp.ne.s32.totalorder %s113, %s127
    %p129 = scmp.eq.s32.totalorder %s19, 0
    %p130 = por %p128, %p129
    %s132 = sadd.s32 %s131, 1
    %p135 = scmp.eq.s32.totalorder %s13, 1
    %p136 = scmp.ne.s32.totalorder %s131, %s133
    %p137 = scmp.eq.s32.totalorder %s13, 0
    %p138 = por %p136, %p137
    %p139 = scmp.ne.s32.totalorder %s131, %s133
    %p140 = scmp.eq.s32.totalorder %s18, 1
    %p141 = por %p139, %p140
    %p142 = scmp.ne.s32.totalorder %s133, %s134
    %p143 = scmp.eq.s32.totalorder %s18, 0
    %p144 = por %p142, %p143
    %p145 = scmp.ne.s32.totalorder %s133, %s134
    %p146 = scmp.eq.s32.totalorder %s19, 1
    %p147 = por %p145, %p146
    %p149 = scmp.ne.s32.totalorder %s134, %s148
    %p150 = scmp.eq.s32.totalorder %s19, 0
    %p151 = por %p149, %p150
    %s153 = sadd.s32 %s152, 1
    %p156 = scmp.eq.s32.totalorder %s13, 1
    %p157 = scmp.ne.s32.totalorder %s152, %s154
    %p158 = scmp.eq.s32.totalorder %s13, 0
    %p159 = por %p157, %p158
    %p160 = scmp.ne.s32.totalorder %s152, %s154
    %p161 = scmp.eq.s32.totalorder %s18, 1
    %p162 = por %p160, %p161
    %p163 = scmp.ne.s32.totalorder %s154, %s155
    %p164 = scmp.eq.s32.totalorder %s18, 0
    %p165 = por %p163, %p164
    %p166 = scmp.ne.s32.totalorder %s154, %s155
    %p167 = scmp.eq.s32.totalorder %s19, 1
    %p168 = por %p166, %p167
    %p170 = scmp.ne.s32.totalorder %s155, %s169
    %p171 = scmp.eq.s32.totalorder %s19, 0
    %p172 = por %p170, %p171
    %s173 = ssub.s32 %s13, %s20
    %p174 = scmp.eq.s32.totalorder %s173, 0
    %s176 = sadd.s32 %s175, 1
    %s177 = scalar_select %p174, %s175, %s176
    %p180 = pneg %p174
    %p181 = scmp.eq.s32.totalorder %s13, 1
    %p182 = por %p180, %p181
    %p183 = scmp.ne.s32.totalorder %s175, %s178
    %p184 = scmp.eq.s32.totalorder %s13, 0
    %p185 = por %p183, %p184
    %p186 = scmp.ne.s32.totalorder %s175, %s178
    %p187 = scmp.eq.s32.totalorder %s18, 1
    %p188 = por %p186, %p187
    %p189 = scmp.ne.s32.totalorder %s178, %s179
    %p190 = scmp.eq.s32.totalorder %s18, 0
    %p191 = por %p189, %p190
    %p192 = scmp.ne.s32.totalorder %s178, %s179
    %p193 = scmp.eq.s32.totalorder %s19, 1
    %p194 = por %p192, %p193
    %p196 = scmp.ne.s32.totalorder %s179, %s195
    %p197 = scmp.eq.s32.totalorder %s19, 0
    %p198 = por %p196, %p197
    %p199 = scmp.le.s32.totalorder 1, %s13
    %p200 = scmp.lt.s32.totalorder %s13, 3
    %p201 = pnand %p199, %p200
    %p202 = pneg %p201
    // Predicated region
    $region9: #{forward.13} parent=5 // pred_check
      _
    $region10: #{forward.13} parent=5 // pred_check_branch
      %204 = sbr.rel (%p201) target = $region12
    $region11: #{forward.13} parent=5 // pred_region
      %s205 = ssub.s32 %s13, 1
      // Predicated region
      $region13: #{forward.13} parent=11 // pred_check
        %p206 = pneg %p60
      $region14: #{forward.13} parent=11 // pred_check_branch
        %208 = sbr.rel (%p206) target = $region16
      $region15: #{forward.13} parent=11 // pred_region
        _
      $region16: #{forward.13} parent=11 // pred_fallthru
        _
      // Predicated region
      $region17: #{forward.13} parent=11 // pred_check
        %p209 = pneg %p81
      $region18: #{forward.13} parent=11 // pred_check_branch
        %211 = sbr.rel (%p209) target = $region20
      $region19: #{forward.13} parent=11 // pred_region
        _
      $region20: #{forward.13} parent=11 // pred_fallthru
        _
      // Predicated region
      $region21: #{forward.13} parent=11 // pred_check
        %p212 = pneg %p102
      $region22: #{forward.13} parent=11 // pred_check_branch
        %214 = sbr.rel (%p212) target = $region24
      $region23: #{forward.13} parent=11 // pred_region
        _
      $region24: #{forward.13} parent=11 // pred_fallthru
        _
      // Predicated region
      $region25: #{forward.13} parent=11 // pred_check
        %p215 = pneg %p123
      $region26: #{forward.13} parent=11 // pred_check_branch
        %217 = sbr.rel (%p215) target = $region28
      $region27: #{forward.13} parent=11 // pred_region
        _
      $region28: #{forward.13} parent=11 // pred_fallthru
        _
      // Predicated region
      $region29: #{forward.13} parent=11 // pred_check
        %p218 = pneg %p144
      $region30: #{forward.13} parent=11 // pred_check_branch
        %220 = sbr.rel (%p218) target = $region32
      $region31: #{forward.13} parent=11 // pred_region
        _
      $region32: #{forward.13} parent=11 // pred_fallthru
        _
      // Predicated region
      $region33: #{forward.13} parent=11 // pred_check
        %p221 = pneg %p165
      $region34: #{forward.13} parent=11 // pred_check_branch
        %223 = sbr.rel (%p221) target = $region36
      $region35: #{forward.13} parent=11 // pred_region
        _
      $region36: #{forward.13} parent=11 // pred_fallthru
        _
    $region12: #{forward.13} parent=5 // pred_fallthru
      _
    %p224 = scmp.lt.s32.totalorder %s13, 2
    // Predicated region
    $region37: #{forward.13} parent=5 // pred_check
      %p225 = pneg %p224
    $region38: #{forward.13} parent=5 // pred_check_branch
      %227 = sbr.rel (%p225) target = $region40
    $region39: #{forward.13} parent=5 // pred_region
      // Predicated region
      $region41: #{forward.13} parent=39 // pred_check
        %p228 = pneg %p33
      $region42: #{forward.13} parent=39 // pred_check_branch
        %230 = sbr.rel (%p228) target = $region44
      $region43: #{forward.13} parent=39 // pred_region
        %p231 = scmp.lt.s32.totalorder %s13, 1
        %s232 = scalar_select %p231, %s13, 1
        %s233 = smul.addr %s232, 4
        %s234 = scalar_lea.vmem %s0, %s233
      $region44: #{forward.13} parent=39 // pred_fallthru
        _
    $region40: #{forward.13} parent=5 // pred_fallthru
      _
    %p235 = scmp.le.s32.totalorder 1, %s13
    %p236 = scmp.lt.s32.totalorder %s13, 3
    %p237 = pnand %p235, %p236
    %p238 = pneg %p237
    // Predicated region
    $region45: #{forward.13} parent=5 // pred_check
      _
    $region46: #{forward.13} parent=5 // pred_check_branch
      %240 = sbr.rel (%p237) target = $region48
    $region47: #{forward.13} parent=5 // pred_region
      %s241 = ssub.s32 %s13, 1
      %p242 = scmp.lt.s32.totalorder %s18, 1
      %s243 = scalar_select %p242, %s18, 1
      %s244 = smul.addr %s243, 4
      %s245 = scalar_lea.vmem %s0, %s244
      %p246 = pneg %p39
      %p247 = pneg %p36
      %p248 = pneg %p60
      %p249 = pneg %p57
      %p250 = pneg %p81
      %p251 = pneg %p78
      %p252 = pneg %p102
      %p253 = pneg %p99
      %p254 = pneg %p123
      %p255 = pneg %p120
      %p256 = pneg %p144
      %p257 = pneg %p141
      %p258 = pneg %p165
      %p259 = pneg %p162
      %p260 = pneg %p191
      %p261 = pneg %p188
      %p262 = scmp.lt.s32.totalorder %s18, 1
      %s263 = scalar_select %p262, %s18, 1
      %s264 = smul.addr %s263, 4
      %s265 = scalar_lea.vmem %s7, %s264
      %p266 = scmp.lt.s32.totalorder %s18, 1
      %s267 = scalar_select %p266, %s18, 1
      %s268 = smul.addr %s267, 4
      %s269 = scalar_lea.vmem %s0, %s268
      %p270 = scmp.lt.s32.totalorder %s18, 1
      %s271 = scalar_select %p270, %s18, 1
      %s272 = smul.addr %s271, 4
      %s273 = scalar_lea.vmem %s7, %s272
      %v275 = vld [vmem:[%s269] sm:$0xf]
      %v276 = vld [vmem:[%s1] sm:$0xf]
      %v277 = vld [vmem:[%s1 + $0x4] sm:$0xf]
      %v278 = vld [vmem:[%s1 + $0x8] sm:$0xf]
      %v279 = vld [vmem:[%s1 + $0xc] sm:$0xf]
      %v280 = vld [vmem:[%s2] sm:$0x1]
      %v282 = vlaneseq
      %v283 = vshrl.u32 %v282, 7
      %v284 = vsub.s32 0, %v283
      %v285 = vrot.slane %v280, %v284
      %v291 = vunpack.c.l.b16 %v276
      %v292 = vunpack.c.l.b16 %v277
      %v293 = vunpack.c.l.b16 %v278
      %v294 = vunpack.c.l.b16 %v279
      %v295 = vpack.c.b16 %v292, %v291
      %v296 = vpack.c.b16 %v294, %v293
      %vm299 = vcmask 261120
      %v301 = vsel %vm299, %v275, 0
      %303 = vmatprep.subr.bf16.mxu0 0
      %304 = vmatpush1.bf16.msra.mxu0 %v295
      %305 = vmatprep.subr.bf16.mxu0 0
      %306 = vmatpush1.bf16.msra.mxu0 %v296
      %307 = vmatprep.subr.bf16.mxu0 0
      %308 = vmatpush1.bf16.msra.mxu0 0
      %309 = vmatprep.subr.bf16.mxu0 0
      %310 = vmatpush1.bf16.msra.mxu0 0
      %311 = vmatprep.subr.bf16.mxu0 0
      %312 = vmatpush1.bf16.msra.mxu0 0
      %313 = vmatprep.subr.bf16.mxu0 0
      %314 = vmatpush1.bf16.msra.mxu0 0
      %315 = vmatprep.subr.bf16.mxu0 0
      %316 = vmatpush1.bf16.msra.mxu0 0
      %317 = vmatprep.subr.bf16.mxu0 0
      %318 = vmatpush1.bf16.msra.mxu0 0
      %319 = vmatprep.subr.bf16.mxu0 0
      %320 = vmatpush1.bf16.msra.mxu0 0
      %321 = vmatprep.subr.bf16.mxu0 0
      %322 = vmatpush1.bf16.msra.mxu0 0
      %323 = vmatprep.subr.bf16.mxu0 0
      %324 = vmatpush1.bf16.msra.mxu0 0
      %325 = vmatprep.subr.bf16.mxu0 0
      %326 = vmatpush1.bf16.msra.mxu0 0
      %327 = vmatprep.subr.bf16.mxu0 0
      %328 = vmatpush1.bf16.msra.mxu0 0
      %329 = vmatprep.subr.bf16.mxu0 0
      %330 = vmatpush1.bf16.msra.mxu0 0
      %331 = vmatprep.subr.bf16.mxu0 0
      %332 = vmatpush1.bf16.msra.mxu0 0
      %333 = vmatprep.subr.bf16.mxu0 0
      %334 = vmatpush1.bf16.msra.mxu0 0
      %335 = vmatprep.mubr.bf16.mxu0 0
      %336 = vmatmul.mubr.bf16.gmra.mrb[0].mxu0 %v301
      %v337 = vpop.f32.mrb[0].mxu0
      %v338 = vadd.f32 %v285, %v337
      %v339 = vpop.f32.mrb[0].mxu0
      %v340 = vpop.f32.mrb[0].mxu0
      %v341 = vpop.f32.mrb[0].mxu0
      %342 = vdwg.mxu0
      %v343 = vmax.f32 %v338, 0.0
      %v344 = vpack.c.bf16 %v343, %v343
      %v345 = vld [vmem:[%s3] sm:$0xf]
      %v346 = vld [vmem:[%s3 + $0x4] sm:$0xf]
      %v347 = vld [vmem:[%s3 + $0x8] sm:$0xf]
      %v348 = vld [vmem:[%s3 + $0xc] sm:$0xf]
      %v349 = vld [vmem:[%s3 + $0x10] sm:$0xf]
      %v350 = vld [vmem:[%s3 + $0x14] sm:$0xf]
      %v351 = vld [vmem:[%s3 + $0x18] sm:$0xf]
      %v352 = vld [vmem:[%s3 + $0x1c] sm:$0xf]
      %v353 = vld [vmem:[%s4] sm:$0x1]
      %v355 = vlaneseq
      %v356 = vshrl.u32 %v355, 7
      %v357 = vsub.s32 0, %v356
      %v358 = vrot.slane %v353, %v357
      %v368 = vunpack.c.l.b16 %v345
      %v369 = vunpack.c.l.b16 %v346
      %v370 = vunpack.c.l.b16 %v347
      %v371 = vunpack.c.l.b16 %v348
      %v372 = vunpack.c.l.b16 %v349
      %v373 = vunpack.c.l.b16 %v350
      %v374 = vunpack.c.l.b16 %v351
      %v375 = vunpack.c.l.b16 %v352
      %v376 = vpack.c.b16 %v369, %v368
      %v377 = vpack.c.b16 %v371, %v370
      %v378 = vpack.c.b16 %v373, %v372
      %v379 = vpack.c.b16 %v375, %v374
      %vm384 = vcmask 523264
      %v386 = vsel %vm384, %v344, 0
      %388 = vmatprep.subr.bf16.mxu0 0
      %389 = vmatpush1.bf16.msra.mxu0 %v376
      %390 = vmatprep.subr.bf16.mxu0 0
      %391 = vmatpush1.bf16.msra.mxu0 %v377
      %392 = vmatprep.subr.bf16.mxu0 0
      %393 = vmatpush1.bf16.msra.mxu0 %v378
      %394 = vmatprep.subr.bf16.mxu0 0
      %395 = vmatpush1.bf16.msra.mxu0 %v379
      %396 = vmatprep.subr.bf16.mxu0 0
      %397 = vmatpush1.bf16.msra.mxu0 0
      %398 = vmatprep.subr.bf16.mxu0 0
      %399 = vmatpush1.bf16.msra.mxu0 0
      %400 = vmatprep.subr.bf16.mxu0 0
      %401 = vmatpush1.bf16.msra.mxu0 0
      %402 = vmatprep.subr.bf16.mxu0 0
      %403 = vmatpush1.bf16.msra.mxu0 0
      %404 = vmatprep.subr.bf16.mxu0 0
      %405 = vmatpush1.bf16.msra.mxu0 0
      %406 = vmatprep.subr.bf16.mxu0 0
      %407 = vmatpush1.bf16.msra.mxu0 0
      %408 = vmatprep.subr.bf16.mxu0 0
      %409 = vmatpush1.bf16.msra.mxu0 0
      %410 = vmatprep.subr.bf16.mxu0 0
      %411 = vmatpush1.bf16.msra.mxu0 0
      %412 = vmatprep.subr.bf16.mxu0 0
      %413 = vmatpush1.bf16.msra.mxu0 0
      %414 = vmatprep.subr.bf16.mxu0 0
      %415 = vmatpush1.bf16.msra.mxu0 0
      %416 = vmatprep.subr.bf16.mxu0 0
      %417 = vmatpush1.bf16.msra.mxu0 0
      %418 = vmatprep.subr.bf16.mxu0 0
      %419 = vmatpush1.bf16.msra.mxu0 0
      %420 = vmatprep.mubr.bf16.mxu0 0
      %421 = vmatmul.mubr.bf16.gmra.mrb[0].mxu0 %v386
      %v422 = vpop.f32.mrb[0].mxu0
      %v423 = vadd.f32 %v358, %v422
      %v424 = vpop.f32.mrb[0].mxu0
      %v425 = vpop.f32.mrb[0].mxu0
      %v426 = vpop.f32.mrb[0].mxu0
      %427 = vdwg.mxu0
      %v428 = vunpack.c.l.bf16 %v275
      %v429 = vadd.f32 %v428, %v423
      %v430 = vld [vmem:[%s5] sm:$0x1]
      %v431 = vld [vmem:[%s6] sm:$0x1]
      %v432 = vsel %vm299, %v429, 0.0
      %433 = vadd.xlane.f32.xlu0 %v432
      %v434 = vpop.xlane.xlu0 %433
      %v435 = vrcp.pop 32.0
      %v436 = vmul.f32 %v434, %v435
      %v437 = vsub.f32 %v429, %v436
      %v438 = vmul.f32 %v437, %v437
      %v439 = vsel %vm299, %v438, 0.0
      %440 = vadd.xlane.f32.xlu0 %v439
      %v441 = vpop.xlane.xlu0 %440
      %v442 = vmul.f32 %v441, %v435
      %v443 = vadd.f32 %v442, 1e-05
      %v444 = vrsqrt.pop %v443
      %v445 = vmul.f32 %v437, %v444
      %v447 = vlaneseq
      %v448 = vshrl.u32 %v447, 7
      %v449 = vsub.s32 0, %v448
      %v450 = vrot.slane %v430, %v449
      %v452 = vmul.f32 %v445, %v450
      %v454 = vlaneseq
      %v455 = vshrl.u32 %v454, 7
      %v456 = vsub.s32 0, %v455
      %v457 = vrot.slane %v431, %v456
      %v459 = vadd.f32 %v452, %v457
      %v460 = vpack.c.bf16 %v459, %v459
      %vm461 = vcmask 257024
      %462 = vst.msk [vmem:[%s273] sm:$0xf] %vm461, %v460
      %p463 = scmp.lt.s32.totalorder %s18, 1
      %s464 = scalar_select %p463, %s18, 1
      %s465 = smul.addr %s464, 4
      %s466 = scalar_lea.vmem %s7, %s465
      // Predicated region
      $region49: #{forward.13} parent=47 // pred_check
        %p467 = pneg %p188
      $region50: #{forward.13} parent=47 // pred_check_branch
        %469 = sbr.rel (%p467) target = $region52
      $region51: #{forward.13} parent=47 // pred_region
        _
      $region52: #{forward.13} parent=47 // pred_fallthru
        _
    $region48: #{forward.13} parent=5 // pred_fallthru
      _
    %p470 = scmp.le.s32.totalorder 2, %s13
    // Predicated region
    $region53: #{forward.13} parent=5 // pred_check
      %p471 = pneg %p470
    $region54: #{forward.13} parent=5 // pred_check_branch
      %473 = sbr.rel (%p471) target = $region56
    $region55: #{forward.13} parent=5 // pred_region
      %s474 = ssub.s32 %s13, 2
      // Predicated region
      $region57: #{forward.13} parent=55 // pred_check
        %p475 = pneg %p194
      $region58: #{forward.13} parent=55 // pred_check_branch
        %477 = sbr.rel (%p475) target = $region60
      $region59: #{forward.13} parent=55 // pred_region
        %p478 = scmp.lt.s32.totalorder %s19, 1
        %s479 = scalar_select %p478, %s19, 1
        %s480 = smul.addr %s479, 4
        %s481 = scalar_lea.vmem %s7, %s480
      $region60: #{forward.13} parent=55 // pred_fallthru
        _
    $region56: #{forward.13} parent=5 // pred_fallthru
      _
  $region6: #{forward.13} parent=0 // loop_footer
    %s17 = sadd.s32 1, %s13
  $region7: #{forward.13} parent=0 // loop_footer_branch
    %12 = sbr.rel target = $region3
  $region8: #{forward.13} parent=0 // loop_exit
    _

// kernel: forward.17
$region0: #{forward.17}
  #allocation0 [shape = 'u32[]', space=smem, size = 0x4, offset = 0x4, fixed_abs, tag = 'smem constant byte address 0x4 - core index']
  #allocation1 [shape = 'u32[144,128]{1,0:T(1,128)}', space=vmem, size = 0x12000, scoped, tag = 'internal scratch']
  %s0 = inlined_call_operand.vmem [shape: bf16[2,8,32], index: 0, kind: input, shape index: {}]
  %s1 = inlined_call_operand.vmem [shape: bf16[32,96], index: 1, kind: input, shape index: {}]
  %s2 = inlined_call_operand.vmem [shape: f32[1,96], index: 2, kind: input, shape index: {}]
  %s3 = inlined_call_operand.vmem [shape: bf16[32,32], index: 3, kind: input, shape index: {}]
  %s4 = inlined_call_operand.vmem [shape: f32[1,32], index: 4, kind: input, shape index: {}, may-alias: {4,8}]
  %s5 = inlined_call_operand.vmem [shape: f32[8,8], index: 5, kind: input, shape index: {}]
  %s6 = inlined_call_operand.vmem [shape: f32[2,1,8], index: 6, kind: input, shape index: {}]
  %s7 = inlined_call_operand.vmem [shape: f32[1,32], index: 7, kind: input, shape index: {}]
  %s8 = inlined_call_operand.vmem [shape: f32[1,32], index: 8, kind: input, shape index: {}, may-alias: {4,8}]
  %s9 = inlined_call_operand.vmem [shape: bf16[2,8,32], index: 9, kind: output, shape index: {}]
  %s10 = sld [smem:[#allocation0]]
  $region69: #{forward.17} parent=0
    _
  %s12 = ssub.s32 1, %s10
  %s13 = scalar_select 0, %s12, %s10
  loop: start=0, step=1, limit=4
  $region2: #{forward.17} parent=0 // loop_pre_header
    _
  $region3: #{forward.17} parent=0 // loop_header
    %s15 = sphi 0, %s19
    %p16 = scmp.ge.s32.totalorder %s15, 4
    %s25 = sphi 0, %s27
    %s28 = sphi 0, %s25
    %s29 = sphi 0, %s28
    %s45 = sphi 0, %s29
    %s49 = sphi 0, %s49
    %s51 = sphi 0, %s49
    %s52 = sphi 0, %s51
    %s66 = sphi 0, %s52
    %s70 = sphi 0, %s70
    %s72 = sphi 0, %s70
    %s73 = sphi 0, %s72
    %s87 = sphi 0, %s73
    %s91 = sphi 0, %s91
    %s93 = sphi 0, %s91
    %s94 = sphi 0, %s93
    %s108 = sphi 0, %s94
    %s112 = sphi 0, %s112
    %s114 = sphi 0, %s112
    %s115 = sphi 0, %s114
    %s129 = sphi 0, %s115
    %s133 = sphi 0, %s133
    %s135 = sphi 0, %s133
    %s136 = sphi 0, %s135
    %s150 = sphi 0, %s136
    %s156 = sphi 0, %s158
    %s159 = sphi 0, %s156
    %s160 = sphi 0, %s159
    %s176 = sphi 0, %s160
    %s180 = sphi 0, %s180
    %s182 = sphi 0, %s180
    %s183 = sphi 0, %s182
    %s197 = sphi 0, %s183
    %s201 = sphi 0, %s201
    %s203 = sphi 0, %s201
    %s204 = sphi 0, %s203
    %s218 = sphi 0, %s204
    %s224 = sphi 0, %s226
    %s227 = sphi 0, %s224
    %s228 = sphi 0, %s227
    %s244 = sphi 0, %s228
  $region4: #{forward.17} parent=0 // loop_header_branch
    %18 = sbr.rel (%p16) target = $region8
  $region5: #{forward.17} parent=0 // loop_body
    %s20 = ssub.s32 %s15, 1
    %s21 = ssub.s32 %s15, 2
    %s22 = sadd.s32 %s15, 1
    %s23 = ssub.s32 %s15, %s22
    %p24 = scmp.eq.s32.totalorder %s23, 0
    %s26 = sadd.s32 %s25, 1
    %s27 = scalar_select %p24, %s25, %s26
    %p30 = pneg %p24
    %p31 = scmp.eq.s32.totalorder %s15, 1
    %p32 = por %p30, %p31
    %p33 = scmp.ne.s32.totalorder %s25, %s28
    %p34 = scmp.eq.s32.totalorder %s15, 0
    %p35 = por %p33, %p34
    %p36 = scmp.ne.s32.totalorder %s25, %s28
    %p37 = scmp.eq.s32.totalorder %s20, 1
    %p38 = por %p36, %p37
    %p39 = scmp.ne.s32.totalorder %s28, %s29
    %p40 = scmp.eq.s32.totalorder %s20, 0
    %p41 = por %p39, %p40
    %p42 = scmp.ne.s32.totalorder %s28, %s29
    %p43 = scmp.eq.s32.totalorder %s21, 1
    %p44 = por %p42, %p43
    %p46 = scmp.ne.s32.totalorder %s29, %s45
    %p47 = scmp.eq.s32.totalorder %s21, 0
    %p48 = por %p46, %p47
    %s50 = sadd.s32 %s49, 1
    %p53 = scmp.eq.s32.totalorder %s15, 1
    %p54 = scmp.ne.s32.totalorder %s49, %s51
    %p55 = scmp.eq.s32.totalorder %s15, 0
    %p56 = por %p54, %p55
    %p57 = scmp.ne.s32.totalorder %s49, %s51
    %p58 = scmp.eq.s32.totalorder %s20, 1
    %p59 = por %p57, %p58
    %p60 = scmp.ne.s32.totalorder %s51, %s52
    %p61 = scmp.eq.s32.totalorder %s20, 0
    %p62 = por %p60, %p61
    %p63 = scmp.ne.s32.totalorder %s51, %s52
    %p64 = scmp.eq.s32.totalorder %s21, 1
    %p65 = por %p63, %p64
    %p67 = scmp.ne.s32.totalorder %s52, %s66
    %p68 = scmp.eq.s32.totalorder %s21, 0
    %p69 = por %p67, %p68
    %s71 = sadd.s32 %s70, 1
    %p74 = scmp.eq.s32.totalorder %s15, 1
    %p75 = scmp.ne.s32.totalorder %s70, %s72
    %p76 = scmp.eq.s32.totalorder %s15, 0
    %p77 = por %p75, %p76
    %p78 = scmp.ne.s32.totalorder %s70, %s72
    %p79 = scmp.eq.s32.totalorder %s20, 1
    %p80 = por %p78, %p79
    %p81 = scmp.ne.s32.totalorder %s72, %s73
    %p82 = scmp.eq.s32.totalorder %s20, 0
    %p83 = por %p81, %p82
    %p84 = scmp.ne.s32.totalorder %s72, %s73
    %p85 = scmp.eq.s32.totalorder %s21, 1
    %p86 = por %p84, %p85
    %p88 = scmp.ne.s32.totalorder %s73, %s87
    %p89 = scmp.eq.s32.totalorder %s21, 0
    %p90 = por %p88, %p89
    %s92 = sadd.s32 %s91, 1
    %p95 = scmp.eq.s32.totalorder %s15, 1
    %p96 = scmp.ne.s32.totalorder %s91, %s93
    %p97 = scmp.eq.s32.totalorder %s15, 0
    %p98 = por %p96, %p97
    %p99 = scmp.ne.s32.totalorder %s91, %s93
    %p100 = scmp.eq.s32.totalorder %s20, 1
    %p101 = por %p99, %p100
    %p102 = scmp.ne.s32.totalorder %s93, %s94
    %p103 = scmp.eq.s32.totalorder %s20, 0
    %p104 = por %p102, %p103
    %p105 = scmp.ne.s32.totalorder %s93, %s94
    %p106 = scmp.eq.s32.totalorder %s21, 1
    %p107 = por %p105, %p106
    %p109 = scmp.ne.s32.totalorder %s94, %s108
    %p110 = scmp.eq.s32.totalorder %s21, 0
    %p111 = por %p109, %p110
    %s113 = sadd.s32 %s112, 1
    %p116 = scmp.eq.s32.totalorder %s15, 1
    %p117 = scmp.ne.s32.totalorder %s112, %s114
    %p118 = scmp.eq.s32.totalorder %s15, 0
    %p119 = por %p117, %p118
    %p120 = scmp.ne.s32.totalorder %s112, %s114
    %p121 = scmp.eq.s32.totalorder %s20, 1
    %p122 = por %p120, %p121
    %p123 = scmp.ne.s32.totalorder %s114, %s115
    %p124 = scmp.eq.s32.totalorder %s20, 0
    %p125 = por %p123, %p124
    %p126 = scmp.ne.s32.totalorder %s114, %s115
    %p127 = scmp.eq.s32.totalorder %s21, 1
    %p128 = por %p126, %p127
    %p130 = scmp.ne.s32.totalorder %s115, %s129
    %p131 = scmp.eq.s32.totalorder %s21, 0
    %p132 = por %p130, %p131
    %s134 = sadd.s32 %s133, 1
    %p137 = scmp.eq.s32.totalorder %s15, 1
    %p138 = scmp.ne.s32.totalorder %s133, %s135
    %p139 = scmp.eq.s32.totalorder %s15, 0
    %p140 = por %p138, %p139
    %p141 = scmp.ne.s32.totalorder %s133, %s135
    %p142 = scmp.eq.s32.totalorder %s20, 1
    %p143 = por %p141, %p142
    %p144 = scmp.ne.s32.totalorder %s135, %s136
    %p145 = scmp.eq.s32.totalorder %s20, 0
    %p146 = por %p144, %p145
    %p147 = scmp.ne.s32.totalorder %s135, %s136
    %p148 = scmp.eq.s32.totalorder %s21, 1
    %p149 = por %p147, %p148
    %p151 = scmp.ne.s32.totalorder %s136, %s150
    %p152 = scmp.eq.s32.totalorder %s21, 0
    %p153 = por %p151, %p152
    %s154 = ssub.s32 %s15, %s22
    %p155 = scmp.eq.s32.totalorder %s154, 0
    %s157 = sadd.s32 %s156, 1
    %s158 = scalar_select %p155, %s156, %s157
    %p161 = pneg %p155
    %p162 = scmp.eq.s32.totalorder %s15, 1
    %p163 = por %p161, %p162
    %p164 = scmp.ne.s32.totalorder %s156, %s159
    %p165 = scmp.eq.s32.totalorder %s15, 0
    %p166 = por %p164, %p165
    %p167 = scmp.ne.s32.totalorder %s156, %s159
    %p168 = scmp.eq.s32.totalorder %s20, 1
    %p169 = por %p167, %p168
    %p170 = scmp.ne.s32.totalorder %s159, %s160
    %p171 = scmp.eq.s32.totalorder %s20, 0
    %p172 = por %p170, %p171
    %p173 = scmp.ne.s32.totalorder %s159, %s160
    %p174 = scmp.eq.s32.totalorder %s21, 1
    %p175 = por %p173, %p174
    %p177 = scmp.ne.s32.totalorder %s160, %s176
    %p178 = scmp.eq.s32.totalorder %s21, 0
    %p179 = por %p177, %p178
    %s181 = sadd.s32 %s180, 1
    %p184 = scmp.eq.s32.totalorder %s15, 1
    %p185 = scmp.ne.s32.totalorder %s180, %s182
    %p186 = scmp.eq.s32.totalorder %s15, 0
    %p187 = por %p185, %p186
    %p188 = scmp.ne.s32.totalorder %s180, %s182
    %p189 = scmp.eq.s32.totalorder %s20, 1
    %p190 = por %p188, %p189
    %p191 = scmp.ne.s32.totalorder %s182, %s183
    %p192 = scmp.eq.s32.totalorder %s20, 0
    %p193 = por %p191, %p192
    %p194 = scmp.ne.s32.totalorder %s182, %s183
    %p195 = scmp.eq.s32.totalorder %s21, 1
    %p196 = por %p194, %p195
    %p198 = scmp.ne.s32.totalorder %s183, %s197
    %p199 = scmp.eq.s32.totalorder %s21, 0
    %p200 = por %p198, %p199
    %s202 = sadd.s32 %s201, 1
    %p205 = scmp.eq.s32.totalorder %s15, 1
    %p206 = scmp.ne.s32.totalorder %s201, %s203
    %p207 = scmp.eq.s32.totalorder %s15, 0
    %p208 = por %p206, %p207
    %p209 = scmp.ne.s32.totalorder %s201, %s203
    %p210 = scmp.eq.s32.totalorder %s20, 1
    %p211 = por %p209, %p210
    %p212 = scmp.ne.s32.totalorder %s203, %s204
    %p213 = scmp.eq.s32.totalorder %s20, 0
    %p214 = por %p212, %p213
    %p215 = scmp.ne.s32.totalorder %s203, %s204
    %p216 = scmp.eq.s32.totalorder %s21, 1
    %p217 = por %p215, %p216
    %p219 = scmp.ne.s32.totalorder %s204, %s218
    %p220 = scmp.eq.s32.totalorder %s21, 0
    %p221 = por %p219, %p220
    %s222 = ssub.s32 %s15, %s22
    %p223 = scmp.eq.s32.totalorder %s222, 0
    %s225 = sadd.s32 %s224, 1
    %s226 = scalar_select %p223, %s224, %s225
    %p229 = pneg %p223
    %p230 = scmp.eq.s32.totalorder %s15, 1
    %p231 = por %p229, %p230
    %p232 = scmp.ne.s32.totalorder %s224, %s227
    %p233 = scmp.eq.s32.totalorder %s15, 0
    %p234 = por %p232, %p233
    %p235 = scmp.ne.s32.totalorder %s224, %s227
    %p236 = scmp.eq.s32.totalorder %s20, 1
    %p237 = por %p235, %p236
    %p238 = scmp.ne.s32.totalorder %s227, %s228
    %p239 = scmp.eq.s32.totalorder %s20, 0
    %p240 = por %p238, %p239
    %p241 = scmp.ne.s32.totalorder %s227, %s228
    %p242 = scmp.eq.s32.totalorder %s21, 1
    %p243 = por %p241, %p242
    %p245 = scmp.ne.s32.totalorder %s228, %s244
    %p246 = scmp.eq.s32.totalorder %s21, 0
    %p247 = por %p245, %p246
    %p248 = scmp.le.s32.totalorder 1, %s15
    %p249 = scmp.lt.s32.totalorder %s15, 3
    %p250 = pnand %p248, %p249
    %p251 = pneg %p250
    // Predicated region
    $region9: #{forward.17} parent=5 // pred_check
      _
    $region10: #{forward.17} parent=5 // pred_check_branch
      %253 = sbr.rel (%p250) target = $region12
    $region11: #{forward.17} parent=5 // pred_region
      %s254 = ssub.s32 %s15, 1
      // Predicated region
      $region13: #{forward.17} parent=11 // pred_check
        %p255 = pneg %p62
      $region14: #{forward.17} parent=11 // pred_check_branch
        %257 = sbr.rel (%p255) target = $region16
      $region15: #{forward.17} parent=11 // pred_region
        _
      $region16: #{forward.17} parent=11 // pred_fallthru
        _
      // Predicated region
      $region17: #{forward.17} parent=11 // pred_check
        %p258 = pneg %p83
      $region18: #{forward.17} parent=11 // pred_check_branch
        %260 = sbr.rel (%p258) target = $region20
      $region19: #{forward.17} parent=11 // pred_region
        _
      $region20: #{forward.17} parent=11 // pred_fallthru
        _
      // Predicated region
      $region21: #{forward.17} parent=11 // pred_check
        %p261 = pneg %p104
      $region22: #{forward.17} parent=11 // pred_check_branch
        %263 = sbr.rel (%p261) target = $region24
      $region23: #{forward.17} parent=11 // pred_region
        _
      $region24: #{forward.17} parent=11 // pred_fallthru
        _
      // Predicated region
      $region25: #{forward.17} parent=11 // pred_check
        %p264 = pneg %p125
      $region26: #{forward.17} parent=11 // pred_check_branch
        %266 = sbr.rel (%p264) target = $region28
      $region27: #{forward.17} parent=11 // pred_region
        _
      $region28: #{forward.17} parent=11 // pred_fallthru
        _
      // Predicated region
      $region29: #{forward.17} parent=11 // pred_check
        %p267 = pneg %p146
      $region30: #{forward.17} parent=11 // pred_check_branch
        %269 = sbr.rel (%p267) target = $region32
      $region31: #{forward.17} parent=11 // pred_region
        _
      $region32: #{forward.17} parent=11 // pred_fallthru
        _
      // Predicated region
      $region33: #{forward.17} parent=11 // pred_check
        %p270 = pneg %p193
      $region34: #{forward.17} parent=11 // pred_check_branch
        %272 = sbr.rel (%p270) target = $region36
      $region35: #{forward.17} parent=11 // pred_region
        _
      $region36: #{forward.17} parent=11 // pred_fallthru
        _
      // Predicated region
      $region37: #{forward.17} parent=11 // pred_check
        %p273 = pneg %p214
      $region38: #{forward.17} parent=11 // pred_check_branch
        %275 = sbr.rel (%p273) target = $region40
      $region39: #{forward.17} parent=11 // pred_region
        _
      $region40: #{forward.17} parent=11 // pred_fallthru
        _
    $region12: #{forward.17} parent=5 // pred_fallthru
      _
    %p276 = scmp.lt.s32.totalorder %s15, 2
    // Predicated region
    $region41: #{forward.17} parent=5 // pred_check
      %p277 = pneg %p276
    $region42: #{forward.17} parent=5 // pred_check_branch
      %279 = sbr.rel (%p277) target = $region44
    $region43: #{forward.17} parent=5 // pred_region
      // Predicated region
      $region45: #{forward.17} parent=43 // pred_check
        %p280 = pneg %p35
      $region46: #{forward.17} parent=43 // pred_check_branch
        %282 = sbr.rel (%p280) target = $region48
      $region47: #{forward.17} parent=43 // pred_region
        %p283 = scmp.lt.s32.totalorder %s15, 1
        %s284 = scalar_select %p283, %s15, 1
        %s285 = smul.addr %s284, 4
        %s286 = scalar_lea.vmem %s0, %s285
      $region48: #{forward.17} parent=43 // pred_fallthru
        _
      // Predicated region
      $region49: #{forward.17} parent=43 // pred_check
        %p287 = pneg %p166
      $region50: #{forward.17} parent=43 // pred_check_branch
        %289 = sbr.rel (%p287) target = $region52
      $region51: #{forward.17} parent=43 // pred_region
        %p290 = scmp.lt.s32.totalorder %s15, 1
        %s291 = scalar_select %p290, %s15, 1
        %s292 = scalar_lea.vmem %s6, %s291
      $region52: #{forward.17} parent=43 // pred_fallthru
        _
    $region44: #{forward.17} parent=5 // pred_fallthru
      _
    %p293 = scmp.le.s32.totalorder 1, %s15
    %p294 = scmp.lt.s32.totalorder %s15, 3
    %p295 = pnand %p293, %p294
    %p296 = pneg %p295
    // Predicated region
    $region53: #{forward.17} parent=5 // pred_check
      _
    $region54: #{forward.17} parent=5 // pred_check_branch
      %298 = sbr.rel (%p295) target = $region56
    $region55: #{forward.17} parent=5 // pred_region
      %s299 = ssub.s32 %s15, 1
      %p300 = scmp.lt.s32.totalorder %s20, 1
      %s301 = scalar_select %p300, %s20, 1
      %s302 = smul.addr %s301, 4
      %s303 = scalar_lea.vmem %s0, %s302
      %p304 = pneg %p41
      %p305 = pneg %p38
      %p306 = pneg %p62
      %p307 = pneg %p59
      %p308 = pneg %p83
      %p309 = pneg %p80
      %p310 = pneg %p104
      %p311 = pneg %p101
      %p312 = pneg %p125
      %p313 = pneg %p122
      %p314 = pneg %p146
      %p315 = pneg %p143
      %p316 = scmp.lt.s32.totalorder %s20, 1
      %s317 = scalar_select %p316, %s20, 1
      %s318 = scalar_lea.vmem %s6, %s317
      %p319 = pneg %p172
      %p320 = pneg %p169
      %p321 = pneg %p193
      %p322 = pneg %p190
      %p323 = pneg %p214
      %p324 = pneg %p211
      %p325 = pneg %p240
      %p326 = pneg %p237
      %p327 = scmp.lt.s32.totalorder %s20, 1
      %s328 = scalar_select %p327, %s20, 1
      %s329 = smul.addr %s328, 4
      %s330 = scalar_lea.vmem %s9, %s329
      %p331 = scmp.lt.s32.totalorder %s20, 1
      %s332 = scalar_select %p331, %s20, 1
      %s333 = smul.addr %s332, 4
      %s334 = scalar_lea.vmem %s0, %s333
      %p335 = scmp.lt.s32.totalorder %s20, 1
      %s336 = scalar_select %p335, %s20, 1
      %s337 = scalar_lea.vmem %s6, %s336
      %p338 = scmp.lt.s32.totalorder %s20, 1
      %s339 = scalar_select %p338, %s20, 1
      %s340 = smul.addr %s339, 4
      %s341 = scalar_lea.vmem %s9, %s340
      %v343 = vld [vmem:[%s334] sm:$0xf]
      %v344 = vld [vmem:[%s1] sm:$0xf]
      %v345 = vld [vmem:[%s1 + $0x4] sm:$0xf]
      %v346 = vld [vmem:[%s1 + $0x8] sm:$0xf]
      %v347 = vld [vmem:[%s1 + $0xc] sm:$0xf]
      %v348 = vld [vmem:[%s2] sm:$0x1]
      %v350 = vlaneseq
      %v351 = vshrl.u32 %v350, 7
      %v352 = vsub.s32 0, %v351
      %v353 = vrot.slane %v348, %v352
      %v359 = vunpack.c.l.b16 %v344
      %v360 = vunpack.c.l.b16 %v345
      %v361 = vunpack.c.l.b16 %v346
      %v362 = vunpack.c.l.b16 %v347
      %v363 = vpack.c.b16 %v360, %v359
      %v364 = vpack.c.b16 %v362, %v361
      %vm367 = vcmask 261120
      %v369 = vsel %vm367, %v343, 0
      %371 = vmatprep.subr.bf16.mxu0 0
      %372 = vmatpush1.bf16.msra.mxu0 %v363
      %373 = vmatprep.subr.bf16.mxu0 0
      %374 = vmatpush1.bf16.msra.mxu0 %v364
      %375 = vmatprep.subr.bf16.mxu0 0
      %376 = vmatpush1.bf16.msra.mxu0 0
      %377 = vmatprep.subr.bf16.mxu0 0
      %378 = vmatpush1.bf16.msra.mxu0 0
      %379 = vmatprep.subr.bf16.mxu0 0
      %380 = vmatpush1.bf16.msra.mxu0 0
      %381 = vmatprep.subr.bf16.mxu0 0
      %382 = vmatpush1.bf16.msra.mxu0 0
      %383 = vmatprep.subr.bf16.mxu0 0
      %384 = vmatpush1.bf16.msra.mxu0 0
      %385 = vmatprep.subr.bf16.mxu0 0
      %386 = vmatpush1.bf16.msra.mxu0 0
      %387 = vmatprep.subr.bf16.mxu0 0
      %388 = vmatpush1.bf16.msra.mxu0 0
      %389 = vmatprep.subr.bf16.mxu0 0
      %390 = vmatpush1.bf16.msra.mxu0 0
      %391 = vmatprep.subr.bf16.mxu0 0
      %392 = vmatpush1.bf16.msra.mxu0 0
      %393 = vmatprep.subr.bf16.mxu0 0
      %394 = vmatpush1.bf16.msra.mxu0 0
      %395 = vmatprep.subr.bf16.mxu0 0
      %396 = vmatpush1.bf16.msra.mxu0 0
      %397 = vmatprep.subr.bf16.mxu0 0
      %398 = vmatpush1.bf16.msra.mxu0 0
      %399 = vmatprep.subr.bf16.mxu0 0
      %400 = vmatpush1.bf16.msra.mxu0 0
      %401 = vmatprep.subr.bf16.mxu0 0
      %402 = vmatpush1.bf16.msra.mxu0 0
      %403 = vmatprep.mubr.bf16.mxu0 0
      %404 = vmatmul.mubr.bf16.gmra.mrb[0].mxu0 %v369
      %v405 = vpop.f32.mrb[0].mxu0
      %v406 = vadd.f32 %v353, %v405
      %v407 = vpop.f32.mrb[0].mxu0
      %v408 = vpop.f32.mrb[0].mxu0
      %v409 = vpop.f32.mrb[0].mxu0
      %410 = vdwg.mxu0
      %v411 = vld [vmem:[%s5] sm:$0xff]
      %v412 = vld [vmem:[%s337] sm:$0x1]
      %v414 = vlaneseq
      %v415 = vshrl.u32 %v414, 7
      %v416 = vsub.s32 0, %v415
      %v417 = vrot.slane %v412, %v416
      %v419 = vadd.f32 %v411, %v417
      %v420 = vld [vmem:[%s3] sm:$0xf]
      %v421 = vld [vmem:[%s3 + $0x4] sm:$0xf]
      %v422 = vld [vmem:[%s3 + $0x8] sm:$0xf]
      %v423 = vld [vmem:[%s3 + $0xc] sm:$0xf]
      %v424 = vld [vmem:[%s4] sm:$0x1]
      %v425 = vpack.c.bf16 %v406, %v406
      %427 = vrot.lane.b32.xlu0 %v425, 96
      %v428 = vpop.permute.xlu0 %427
      %vm429 = vcmask 64512
      %v431 = vsel %vm429, %v425, 0
      %v434 = vsel %vm429, %v428, 0
      %436 = vmatprep.subr.bf16.mxu0 0
      %437 = vmatpush1.bf16.xpose.msra.mxu0 %v434
      %438 = vmatprep.subr.bf16.mxu0 0
      %439 = vmatpush1.bf16.xpose.msra.mxu0 0
      %440 = vmatprep.subr.bf16.mxu0 0
      %441 = vmatpush1.bf16.xpose.msra.mxu0 0
      %442 = vmatprep.subr.bf16.mxu0 0
      %443 = vmatpush1.bf16.xpose.msra.mxu0 0
      %444 = vmatprep.subr.bf16.mxu0 0
      %445 = vmatpush1.bf16.xpose.msra.mxu0 0
      %446 = vmatprep.subr.bf16.mxu0 0
      %447 = vmatpush1.bf16.xpose.msra.mxu0 0
      %448 = vmatprep.subr.bf16.mxu0 0
      %449 = vmatpush1.bf16.xpose.msra.mxu0 0
      %450 = vmatprep.subr.bf16.mxu0 0
      %451 = vmatpush1.bf16.xpose.msra.mxu0 0
      %452 = vmatprep.subr.bf16.mxu0 0
      %453 = vmatpush1.bf16.xpose.msra.mxu0 0
      %454 = vmatprep.subr.bf16.mxu0 0
      %455 = vmatpush1.bf16.xpose.msra.mxu0 0
      %456 = vmatprep.subr.bf16.mxu0 0
      %457 = vmatpush1.bf16.xpose.msra.mxu0 0
      %458 = vmatprep.subr.bf16.mxu0 0
      %459 = vmatpush1.bf16.xpose.msra.mxu0 0
      %460 = vmatprep.subr.bf16.mxu0 0
      %461 = vmatpush1.bf16.xpose.msra.mxu0 0
      %462 = vmatprep.subr.bf16.mxu0 0
      %463 = vmatpush1.bf16.xpose.msra.mxu0 0
      %464 = vmatprep.subr.bf16.mxu0 0
      %465 = vmatpush1.bf16.xpose.msra.mxu0 0
      %466 = vmatprep.subr.bf16.mxu0 0
      %467 = vmatpush1.bf16.xpose.msra.mxu0 0
      %468 = vmatprep.mubr.bf16.mxu0 0
      %469 = vmatmul.mubr.bf16.gmra.mrb[0].mxu0 %v431
      %v470 = vpop.f32.mrb[0].mxu0
      %v471 = vadd.f32 %v419, %v470
      %v472 = vpop.f32.mrb[0].mxu0
      %v473 = vpop.f32.mrb[0].mxu0
      %v474 = vpop.f32.mrb[0].mxu0
      %475 = vdwg.mxu0
      %v476 = vsel %vm429, %v471, -inf
      %477 = vmax.xlane.f32.xlu0 %v476
      %v478 = vpop.xlane.xlu0 %477
      %v479 = vsub.f32 %v471, %v478
      %v480 = vmul.f32 %v479, 1.442695
      %v481 = vpow.pop %v480
      %v482 = vsel %vm429, %v481, 0.0
      %483 = vadd.xlane.f32.xlu0 %v482
      %v484 = vpop.xlane.xlu0 %483
      %v485 = vpack.c.bf16 %v481, %v481
      %486 = vrot.lane.b32.xlu0 %v425, 64
      %v487 = vpop.permute.xlu0 %486
      %v489 = vsel %vm429, %v485, 0
      %vm491 = vcmask 1043456
      %v493 = vsel %vm491, %v487, 0
      %495 = vmatprep.subr.bf16.mxu0 0
      %496 = vmatpush1.bf16.msra.mxu0 %v493
      %497 = vmatprep.subr.bf16.mxu0 0
      %498 = vmatpush1.bf16.msra.mxu0 0
      %499 = vmatprep.subr.bf16.mxu0 0
      %500 = vmatpush1.bf16.msra.mxu0 0
      %501 = vmatprep.subr.bf16.mxu0 0
      %502 = vmatpush1.bf16.msra.mxu0 0
      %503 = vmatprep.subr.bf16.mxu0 0
      %504 = vmatpush1.bf16.msra.mxu0 0
      %505 = vmatprep.subr.bf16.mxu0 0
      %506 = vmatpush1.bf16.msra.mxu0 0
      %507 = vmatprep.subr.bf16.mxu0 0
      %508 = vmatpush1.bf16.msra.mxu0 0
      %509 = vmatprep.subr.bf16.mxu0 0
      %510 = vmatpush1.bf16.msra.mxu0 0
      %511 = vmatprep.subr.bf16.mxu0 0
      %512 = vmatpush1.bf16.msra.mxu0 0
      %513 = vmatprep.subr.bf16.mxu0 0
      %514 = vmatpush1.bf16.msra.mxu0 0
      %515 = vmatprep.subr.bf16.mxu0 0
      %516 = vmatpush1.bf16.msra.mxu0 0
      %517 = vmatprep.subr.bf16.mxu0 0
      %518 = vmatpush1.bf16.msra.mxu0 0
      %519 = vmatprep.subr.bf16.mxu0 0
      %520 = vmatpush1.bf16.msra.mxu0 0
      %521 = vmatprep.subr.bf16.mxu0 0
      %522 = vmatpush1.bf16.msra.mxu0 0
      %523 = vmatprep.subr.bf16.mxu0 0
      %524 = vmatpush1.bf16.msra.mxu0 0
      %525 = vmatprep.subr.bf16.mxu0 0
      %526 = vmatpush1.bf16.msra.mxu0 0
      %527 = vmatprep.mubr.bf16.mxu0 0
      %528 = vmatmul.mubr.bf16.gmra.mrb[0].mxu0 %v489
      %v529 = vpop.f32.mrb[0].mxu0
      %v530 = vadd.f32 0.0, %v529
      %v531 = vpop.f32.mrb[0].mxu0
      %v532 = vpop.f32.mrb[0].mxu0
      %v533 = vpop.f32.mrb[0].mxu0
      %534 = vdwg.mxu0
      %v535 = vrcp.pop %v484
      %v536 = vmul.f32 %v530, %v535
      %537 = vrot.lane.b32.xlu0 %v425, 120
      %v538 = vpop.permute.xlu0 %537
      %539 = vrot.lane.b32.xlu0 %v425, 88
      %v540 = vpop.permute.xlu0 %539
      %v542 = vsel %vm429, %v538, 0
      %v545 = vsel %vm429, %v540, 0
      %547 = vmatprep.subr.bf16.mxu0 0
      %548 = vmatpush1.bf16.xpose.msra.mxu0 %v545
      %549 = vmatprep.subr.bf16.mxu0 0
      %550 = vmatpush1.bf16.xpose.msra.mxu0 0
      %551 = vmatprep.subr.bf16.mxu0 0
      %552 = vmatpush1.bf16.xpose.msra.mxu0 0
      %553 = vmatprep.subr.bf16.mxu0 0
      %554 = vmatpush1.bf16.xpose.msra.mxu0 0
      %555 = vmatprep.subr.bf16.mxu0 0
      %556 = vmatpush1.bf16.xpose.msra.mxu0 0
      %557 = vmatprep.subr.bf16.mxu0 0
      %558 = vmatpush1.bf16.xpose.msra.mxu0 0
      %559 = vmatprep.subr.bf16.mxu0 0
      %560 = vmatpush1.bf16.xpose.msra.mxu0 0
      %561 = vmatprep.subr.bf16.mxu0 0
      %562 = vmatpush1.bf16.xpose.msra.mxu0 0
      %563 = vmatprep.subr.bf16.mxu0 0
      %564 = vmatpush1.bf16.xpose.msra.mxu0 0
      %565 = vmatprep.subr.bf16.mxu0 0
      %566 = vmatpush1.bf16.xpose.msra.mxu0 0
      %567 = vmatprep.subr.bf16.mxu0 0
      %568 = vmatpush1.bf16.xpose.msra.mxu0 0
      %569 = vmatprep.subr.bf16.mxu0 0
      %570 = vmatpush1.bf16.xpose.msra.mxu0 0
      %571 = vmatprep.subr.bf16.mxu0 0
      %572 = vmatpush1.bf16.xpose.msra.mxu0 0
      %573 = vmatprep.subr.bf16.mxu0 0
      %574 = vmatpush1.bf16.xpose.msra.mxu0 0
      %575 = vmatprep.subr.bf16.mxu0 0
      %576 = vmatpush1.bf16.xpose.msra.mxu0 0
      %577 = vmatprep.subr.bf16.mxu0 0
      %578 = vmatpush1.bf16.xpose.msra.mxu0 0
      %579 = vmatprep.mubr.bf16.mxu0 0
      %580 = vmatmul.mubr.bf16.gmra.mrb[0].mxu0 %v542
      %v581 = vpop.f32.mrb[0].mxu0
      %v582 = vadd.f32 %v419, %v581
      %v583 = vpop.f32.mrb[0].mxu0
      %v584 = vpop.f32.mrb[0].mxu0
      %v585 = vpop.f32.mrb[0].mxu0
      %586 = vdwg.mxu0
      %v587 = vsel %vm429, %v582, -inf
      %588 = vmax.xlane.f32.xlu0 %v587
      %v589 = vpop.xlane.xlu0 %588
      %v590 = vsub.f32 %v582, %v589
      %v591 = vmul.f32 %v590, 1.442695
      %v592 = vpow.pop %v591
      %v593 = vsel %vm429, %v592, 0.0
      %594 = vadd.xlane.f32.xlu0 %v593
      %v595 = vpop.xlane.xlu0 %594
      %v596 = vpack.c.bf16 %v592, %v592
      %597 = vrot.lane.b32.xlu0 %v425, 56
      %v598 = vpop.permute.xlu0 %597
      %v600 = vsel %vm429, %v596, 0
      %v603 = vsel %vm491, %v598, 0
      %605 = vmatprep.subr.bf16.mxu0 0
      %606 = vmatpush1.bf16.msra.mxu0 %v603
      %607 = vmatprep.subr.bf16.mxu0 0
      %608 = vmatpush1.bf16.msra.mxu0 0
      %609 = vmatprep.subr.bf16.mxu0 0
      %610 = vmatpush1.bf16.msra.mxu0 0
      %611 = vmatprep.subr.bf16.mxu0 0
      %612 = vmatpush1.bf16.msra.mxu0 0
      %613 = vmatprep.subr.bf16.mxu0 0
      %614 = vmatpush1.bf16.msra.mxu0 0
      %615 = vmatprep.subr.bf16.mxu0 0
      %616 = vmatpush1.bf16.msra.mxu0 0
      %617 = vmatprep.subr.bf16.mxu0 0
      %618 = vmatpush1.bf16.msra.mxu0 0
      %619 = vmatprep.subr.bf16.mxu0 0
      %620 = vmatpush1.bf16.msra.mxu0 0
      %621 = vmatprep.subr.bf16.mxu0 0
      %622 = vmatpush1.bf16.msra.mxu0 0
      %623 = vmatprep.subr.bf16.mxu0 0
      %624 = vmatpush1.bf16.msra.mxu0 0
      %625 = vmatprep.subr.bf16.mxu0 0
      %626 = vmatpush1.bf16.msra.mxu0 0
      %627 = vmatprep.subr.bf16.mxu0 0
      %628 = vmatpush1.bf16.msra.mxu0 0
      %629 = vmatprep.subr.bf16.mxu0 0
      %630 = vmatpush1.bf16.msra.mxu0 0
      %631 = vmatprep.subr.bf16.mxu0 0
      %632 = vmatpush1.bf16.msra.mxu0 0
      %633 = vmatprep.subr.bf16.mxu0 0
      %634 = vmatpush1.bf16.msra.mxu0 0
      %635 = vmatprep.subr.bf16.mxu0 0
      %636 = vmatpush1.bf16.msra.mxu0 0
      %637 = vmatprep.mubr.bf16.mxu0 0
      %638 = vmatmul.mubr.bf16.gmra.mrb[0].mxu0 %v600
      %v639 = vpop.f32.mrb[0].mxu0
      %v640 = vadd.f32 0.0, %v639
      %v641 = vpop.f32.mrb[0].mxu0
      %v642 = vpop.f32.mrb[0].mxu0
      %v643 = vpop.f32.mrb[0].mxu0
      %644 = vdwg.mxu0
      %v645 = vrcp.pop %v595
      %v646 = vmul.f32 %v640, %v645
      %647 = vrot.lane.b32.xlu0 %v425, 112
      %v648 = vpop.permute.xlu0 %647
      %649 = vrot.lane.b32.xlu0 %v425, 80
      %v650 = vpop.permute.xlu0 %649
      %v652 = vsel %vm429, %v648, 0
      %v655 = vsel %vm429, %v650, 0
      %657 = vmatprep.subr.bf16.mxu0 0
      %658 = vmatpush1.bf16.xpose.msra.mxu0 %v655
      %659 = vmatprep.subr.bf16.mxu0 0
      %660 = vmatpush1.bf16.xpose.msra.mxu0 0
      %661 = vmatprep.subr.bf16.mxu0 0
      %662 = vmatpush1.bf16.xpose.msra.mxu0 0
      %663 = vmatprep.subr.bf16.mxu0 0
      %664 = vmatpush1.bf16.xpose.msra.mxu0 0
      %665 = vmatprep.subr.bf16.mxu0 0
      %666 = vmatpush1.bf16.xpose.msra.mxu0 0
      %667 = vmatprep.subr.bf16.mxu0 0
      %668 = vmatpush1.bf16.xpose.msra.mxu0 0
      %669 = vmatprep.subr.bf16.mxu0 0
      %670 = vmatpush1.bf16.xpose.msra.mxu0 0
      %671 = vmatprep.subr.bf16.mxu0 0
      %672 = vmatpush1.bf16.xpose.msra.mxu0 0
      %673 = vmatprep.subr.bf16.mxu0 0
      %674 = vmatpush1.bf16.xpose.msra.mxu0 0
      %675 = vmatprep.subr.bf16.mxu0 0
      %676 = vmatpush1.bf16.xpose.msra.mxu0 0
      %677 = vmatprep.subr.bf16.mxu0 0
      %678 = vmatpush1.bf16.xpose.msra.mxu0 0
      %679 = vmatprep.subr.bf16.mxu0 0
      %680 = vmatpush1.bf16.xpose.msra.mxu0 0
      %681 = vmatprep.subr.bf16.mxu0 0
      %682 = vmatpush1.bf16.xpose.msra.mxu0 0
      %683 = vmatprep.subr.bf16.mxu0 0
      %684 = vmatpush1.bf16.xpose.msra.mxu0 0
      %685 = vmatprep.subr.bf16.mxu0 0
      %686 = vmatpush1.bf16.xpose.msra.mxu0 0
      %687 = vmatprep.subr.bf16.mxu0 0
      %688 = vmatpush1.bf16.xpose.msra.mxu0 0
      %689 = vmatprep.mubr.bf16.mxu0 0
      %690 = vmatmul.mubr.bf16.gmra.mrb[0].mxu0 %v652
      %v691 = vpop.f32.mrb[0].mxu0
      %v692 = vadd.f32 %v419, %v691
      %v693 = vpop.f32.mrb[0].mxu0
      %v694 = vpop.f32.mrb[0].mxu0
      %v695 = vpop.f32.mrb[0].mxu0
      %696 = vdwg.mxu0
      %v697 = vsel %vm429, %v692, -inf
      %698 = vmax.xlane.f32.xlu0 %v697
      %v699 = vpop.xlane.xlu0 %698
      %v700 = vsub.f32 %v692, %v699
      %v701 = vmul.f32 %v700, 1.442695
      %v702 = vpow.pop %v701
      %v703 = vsel %vm429, %v702, 0.0
      %704 = vadd.xlane.f32.xlu0 %v703
      %v705 = vpop.xlane.xlu0 %704
      %v706 = vpack.c.bf16 %v702, %v702
      %707 = vrot.lane.b32.xlu0 %v425, 48
      %v708 = vpop.permute.xlu0 %707
      %v710 = vsel %vm429, %v706, 0
      %v713 = vsel %vm491, %v708, 0
      %715 = vmatprep.subr.bf16.mxu0 0
      %716 = vmatpush1.bf16.msra.mxu0 %v713
      %717 = vmatprep.subr.bf16.mxu0 0
      %718 = vmatpush1.bf16.msra.mxu0 0
      %719 = vmatprep.subr.bf16.mxu0 0
      %720 = vmatpush1.bf16.msra.mxu0 0
      %721 = vmatprep.subr.bf16.mxu0 0
      %722 = vmatpush1.bf16.msra.mxu0 0
      %723 = vmatprep.subr.bf16.mxu0 0
      %724 = vmatpush1.bf16.msra.mxu0 0
      %725 = vmatprep.subr.bf16.mxu0 0
      %726 = vmatpush1.bf16.msra.mxu0 0
      %727 = vmatprep.subr.bf16.mxu0 0
      %728 = vmatpush1.bf16.msra.mxu0 0
      %729 = vmatprep.subr.bf16.mxu0 0
      %730 = vmatpush1.bf16.msra.mxu0 0
      %731 = vmatprep.subr.bf16.mxu0 0
      %732 = vmatpush1.bf16.msra.mxu0 0
      %733 = vmatprep.subr.bf16.mxu0 0
      %734 = vmatpush1.bf16.msra.mxu0 0
      %735 = vmatprep.subr.bf16.mxu0 0
      %736 = vmatpush1.bf16.msra.mxu0 0
      %737 = vmatprep.subr.bf16.mxu0 0
      %738 = vmatpush1.bf16.msra.mxu0 0
      %739 = vmatprep.subr.bf16.mxu0 0
      %740 = vmatpush1.bf16.msra.mxu0 0
      %741 = vmatprep.subr.bf16.mxu0 0
      %742 = vmatpush1.bf16.msra.mxu0 0
      %743 = vmatprep.subr.bf16.mxu0 0
      %744 = vmatpush1.bf16.msra.mxu0 0
      %745 = vmatprep.subr.bf16.mxu0 0
      %746 = vmatpush1.bf16.msra.mxu0 0
      %747 = vmatprep.mubr.bf16.mxu0 0
      %748 = vmatmul.mubr.bf16.gmra.mrb[0].mxu0 %v710
      %v749 = vpop.f32.mrb[0].mxu0
      %v750 = vadd.f32 0.0, %v749
      %v751 = vpop.f32.mrb[0].mxu0
      %v752 = vpop.f32.mrb[0].mxu0
      %v753 = vpop.f32.mrb[0].mxu0
      %754 = vdwg.mxu0
      %v755 = vrcp.pop %v705
      %v756 = vmul.f32 %v750, %v755
      %757 = vrot.lane.b32.xlu0 %v425, 104
      %v758 = vpop.permute.xlu0 %757
      %759 = vrot.lane.b32.xlu0 %v425, 72
      %v760 = vpop.permute.xlu0 %759
      %v762 = vsel %vm429, %v758, 0
      %v765 = vsel %vm429, %v760, 0
      %767 = vmatprep.subr.bf16.mxu0 0
      %768 = vmatpush1.bf16.xpose.msra.mxu0 %v765
      %769 = vmatprep.subr.bf16.mxu0 0
      %770 = vmatpush1.bf16.xpose.msra.mxu0 0
      %771 = vmatprep.subr.bf16.mxu0 0
      %772 = vmatpush1.bf16.xpose.msra.mxu0 0
      %773 = vmatprep.subr.bf16.mxu0 0
      %774 = vmatpush1.bf16.xpose.msra.mxu0 0
      %775 = vmatprep.subr.bf16.mxu0 0
      %776 = vmatpush1.bf16.xpose.msra.mxu0 0
      %777 = vmatprep.subr.bf16.mxu0 0
      %778 = vmatpush1.bf16.xpose.msra.mxu0 0
      %779 = vmatprep.subr.bf16.mxu0 0
      %780 = vmatpush1.bf16.xpose.msra.mxu0 0
      %781 = vmatprep.subr.bf16.mxu0 0
      %782 = vmatpush1.bf16.xpose.msra.mxu0 0
      %783 = vmatprep.subr.bf16.mxu0 0
      %784 = vmatpush1.bf16.xpose.msra.mxu0 0
      %785 = vmatprep.subr.bf16.mxu0 0
      %786 = vmatpush1.bf16.xpose.msra.mxu0 0
      %787 = vmatprep.subr.bf16.mxu0 0
      %788 = vmatpush1.bf16.xpose.msra.mxu0 0
      %789 = vmatprep.subr.bf16.mxu0 0
      %790 = vmatpush1.bf16.xpose.msra.mxu0 0
      %791 = vmatprep.subr.bf16.mxu0 0
      %792 = vmatpush1.bf16.xpose.msra.mxu0 0
      %793 = vmatprep.subr.bf16.mxu0 0
      %794 = vmatpush1.bf16.xpose.msra.mxu0 0
      %795 = vmatprep.subr.bf16.mxu0 0
      %796 = vmatpush1.bf16.xpose.msra.mxu0 0
      %797 = vmatprep.subr.bf16.mxu0 0
      %798 = vmatpush1.bf16.xpose.msra.mxu0 0
      %799 = vmatprep.mubr.bf16.mxu0 0
      %800 = vmatmul.mubr.bf16.gmra.mrb[0].mxu0 %v762
      %v801 = vpop.f32.mrb[0].mxu0
      %v802 = vadd.f32 %v419, %v801
      %v803 = vpop.f32.mrb[0].mxu0
      %v804 = vpop.f32.mrb[0].mxu0
      %v805 = vpop.f32.mrb[0].mxu0
      %806 = vdwg.mxu0
      %v807 = vsel %vm429, %v802, -inf
      %808 = vmax.xlane.f32.xlu0 %v807
      %v809 = vpop.xlane.xlu0 %808
      %v810 = vsub.f32 %v802, %v809
      %v811 = vmul.f32 %v810, 1.442695
      %v812 = vpow.pop %v811
      %v813 = vsel %vm429, %v812, 0.0
      %814 = vadd.xlane.f32.xlu0 %v813
      %v815 = vpop.xlane.xlu0 %814
      %v816 = vpack.c.bf16 %v812, %v812
      %817 = vrot.lane.b32.xlu0 %v425, 40
      %v818 = vpop.permute.xlu0 %817
      %v820 = vsel %vm429, %v816, 0
      %v823 = vsel %vm491, %v818, 0
      %825 = vmatprep.subr.bf16.mxu0 0
      %826 = vmatpush1.bf16.msra.mxu0 %v823
      %827 = vmatprep.subr.bf16.mxu0 0
      %828 = vmatpush1.bf16.msra.mxu0 0
      %829 = vmatprep.subr.bf16.mxu0 0
      %830 = vmatpush1.bf16.msra.mxu0 0
      %831 = vmatprep.subr.bf16.mxu0 0
      %832 = vmatpush1.bf16.msra.mxu0 0
      %833 = vmatprep.subr.bf16.mxu0 0
      %834 = vmatpush1.bf16.msra.mxu0 0
      %835 = vmatprep.subr.bf16.mxu0 0
      %836 = vmatpush1.bf16.msra.mxu0 0
      %837 = vmatprep.subr.bf16.mxu0 0
      %838 = vmatpush1.bf16.msra.mxu0 0
      %839 = vmatprep.subr.bf16.mxu0 0
      %840 = vmatpush1.bf16.msra.mxu0 0
      %841 = vmatprep.subr.bf16.mxu0 0
      %842 = vmatpush1.bf16.msra.mxu0 0
      %843 = vmatprep.subr.bf16.mxu0 0
      %844 = vmatpush1.bf16.msra.mxu0 0
      %845 = vmatprep.subr.bf16.mxu0 0
      %846 = vmatpush1.bf16.msra.mxu0 0
      %847 = vmatprep.subr.bf16.mxu0 0
      %848 = vmatpush1.bf16.msra.mxu0 0
      %849 = vmatprep.subr.bf16.mxu0 0
      %850 = vmatpush1.bf16.msra.mxu0 0
      %851 = vmatprep.subr.bf16.mxu0 0
      %852 = vmatpush1.bf16.msra.mxu0 0
      %853 = vmatprep.subr.bf16.mxu0 0
      %854 = vmatpush1.bf16.msra.mxu0 0
      %855 = vmatprep.subr.bf16.mxu0 0
      %856 = vmatpush1.bf16.msra.mxu0 0
      %857 = vmatprep.mubr.bf16.mxu0 0
      %858 = vmatmul.mubr.bf16.gmra.mrb[0].mxu0 %v820
      %v859 = vpop.f32.mrb[0].mxu0
      %v860 = vadd.f32 0.0, %v859
      %v861 = vpop.f32.mrb[0].mxu0
      %v862 = vpop.f32.mrb[0].mxu0
      %v863 = vpop.f32.mrb[0].mxu0
      %864 = vdwg.mxu0
      %v865 = vrcp.pop %v815
      %v866 = vmul.f32 %v860, %v865
      %868 = vrot.lane.b32.xlu0 %v646, 8
      %v869 = vpop.permute.xlu0 %868
      %872 = vrot.lane.b32.xlu0 %v756, 16
      %v873 = vpop.permute.xlu0 %872
      %876 = vrot.lane.b32.xlu0 %v866, 24
      %v877 = vpop.permute.xlu0 %876
      %v879 = vsel %vm429, %v536, %v869
      %vm880 = vcmask 130048
      %v881 = vsel %vm880, %v879, %v873
      %vm882 = vcmask 195584
      %v883 = vsel %vm882, %v881, %v877
      %v884 = vpack.c.bf16 %v883, %v883
      %v886 = vlaneseq
      %v887 = vshrl.u32 %v886, 7
      %v888 = vsub.s32 0, %v887
      %v889 = vrot.slane %v424, %v888
      %v895 = vunpack.c.l.b16 %v420
      %v896 = vunpack.c.l.b16 %v421
      %v897 = vunpack.c.l.b16 %v422
      %v898 = vunpack.c.l.b16 %v423
      %v899 = vpack.c.b16 %v896, %v895
      %v900 = vpack.c.b16 %v898, %v897
      %v904 = vsel %vm367, %v884, 0
      %906 = vmatprep.subr.bf16.mxu0 0
      %907 = vmatpush1.bf16.msra.mxu0 %v899
      %908 = vmatprep.subr.bf16.mxu0 0
      %909 = vmatpush1.bf16.msra.mxu0 %v900
      %910 = vmatprep.subr.bf16.mxu0 0
      %911 = vmatpush1.bf16.msra.mxu0 0
      %912 = vmatprep.subr.bf16.mxu0 0
      %913 = vmatpush1.bf16.msra.mxu0 0
      %914 = vmatprep.subr.bf16.mxu0 0
      %915 = vmatpush1.bf16.msra.mxu0 0
      %916 = vmatprep.subr.bf16.mxu0 0
      %917 = vmatpush1.bf16.msra.mxu0 0
      %918 = vmatprep.subr.bf16.mxu0 0
      %919 = vmatpush1.bf16.msra.mxu0 0
      %920 = vmatprep.subr.bf16.mxu0 0
      %921 = vmatpush1.bf16.msra.mxu0 0
      %922 = vmatprep.subr.bf16.mxu0 0
      %923 = vmatpush1.bf16.msra.mxu0 0
      %924 = vmatprep.subr.bf16.mxu0 0
      %925 = vmatpush1.bf16.msra.mxu0 0
      %926 = vmatprep.subr.bf16.mxu0 0
      %927 = vmatpush1.bf16.msra.mxu0 0
      %928 = vmatprep.subr.bf16.mxu0 0
      %929 = vmatpush1.bf16.msra.mxu0 0
      %930 = vmatprep.subr.bf16.mxu0 0
      %931 = vmatpush1.bf16.msra.mxu0 0
      %932 = vmatprep.subr.bf16.mxu0 0
      %933 = vmatpush1.bf16.msra.mxu0 0
      %934 = vmatprep.subr.bf16.mxu0 0
      %935 = vmatpush1.bf16.msra.mxu0 0
      %936 = vmatprep.subr.bf16.mxu0 0
      %937 = vmatpush1.bf16.msra.mxu0 0
      %938 = vmatprep.mubr.bf16.mxu0 0
      %939 = vmatmul.mubr.bf16.gmra.mrb[0].mxu0 %v904
      %v940 = vpop.f32.mrb[0].mxu0
      %v941 = vadd.f32 %v889, %v940
      %v942 = vpop.f32.mrb[0].mxu0
      %v943 = vpop.f32.mrb[0].mxu0
      %v944 = vpop.f32.mrb[0].mxu0
      %945 = vdwg.mxu0
      %v946 = vunpack.c.l.bf16 %v343
      %v947 = vadd.f32 %v946, %v941
      %v948 = vld [vmem:[%s7] sm:$0x1]
      %v949 = vld [vmem:[%s8] sm:$0x1]
      %v950 = vsel %vm367, %v947, 0.0
      %951 = vadd.xlane.f32.xlu0 %v950
      %v952 = vpop.xlane.xlu0 %951
      %v953 = vrcp.pop 32.0
      %v954 = vmul.f32 %v952, %v953
      %v955 = vsub.f32 %v947, %v954
      %v956 = vmul.f32 %v955, %v955
      %v957 = vsel %vm367, %v956, 0.0
      %958 = vadd.xlane.f32.xlu0 %v957
      %v959 = vpop.xlane.xlu0 %958
      %v960 = vmul.f32 %v959, %v953
      %v961 = vadd.f32 %v960, 1e-05
      %v962 = vrsqrt.pop %v961
      %v963 = vmul.f32 %v955, %v962
      %v965 = vlaneseq
      %v966 = vshrl.u32 %v965, 7
      %v967 = vsub.s32 0, %v966
      %v968 = vrot.slane %v948, %v967
      %v970 = vmul.f32 %v963, %v968
      %v972 = vlaneseq
      %v973 = vshrl.u32 %v972, 7
      %v974 = vsub.s32 0, %v973
      %v975 = vrot.slane %v949, %v974
      %v977 = vadd.f32 %v970, %v975
      %v978 = vpack.c.bf16 %v977, %v977
      %vm979 = vcmask 257024
      %980 = vst.msk [vmem:[%s341] sm:$0xf] %vm979, %v978
      %p981 = scmp.lt.s32.totalorder %s20, 1
      %s982 = scalar_select %p981, %s20, 1
      %s983 = smul.addr %s982, 4
      %s984 = scalar_lea.vmem %s9, %s983
      // Predicated region
      $region57: #{forward.17} parent=55 // pred_check
        %p985 = pneg %p237
      $region58: #{forward.17} parent=55 // pred_check_branch
        %987 = sbr.rel (%p985) target = $region60
      $region59: #{forward.17} parent=55 // pred_region
        _
      $region60: #{forward.17} parent=55 // pred_fallthru
        _
    $region56: #{forward.17} parent=5 // pred_fallthru
      _
    %p988 = scmp.le.s32.totalorder 2, %s15
    // Predicated region
    $region61: #{forward.17} parent=5 // pred_check
      %p989 = pneg %p988
    $region62: #{forward.17} parent=5 // pred_check_branch
      %991 = sbr.rel (%p989) target = $region64
    $region63: #{forward.17} parent=5 // pred_region
      %s992 = ssub.s32 %s15, 2
      // Predicated region
      $region65: #{forward.17} parent=63 // pred_check
        %p993 = pneg %p243
      $region66: #{forward.17} parent=63 // pred_check_branch
        %995 = sbr.rel (%p993) target = $region68
      $region67: #{forward.17} parent=63 // pred_region
        %p996 = scmp.lt.s32.totalorder %s21, 1
        %s997 = scalar_select %p996, %s21, 1
        %s998 = smul.addr %s997, 4
        %s999 = scalar_lea.vmem %s9, %s998
      $region68: #{forward.17} parent=63 // pred_fallthru
        _
    $region64: #{forward.17} parent=5 // pred_fallthru
      _
  $region6: #{forward.17} parent=0 // loop_footer
    %s19 = sadd.s32 1, %s15
  $region7: #{forward.17} parent=0 // loop_footer_branch
    %14 = sbr.rel target = $region3
  $region8: #{forward.17} parent=0 // loop_exit
    _

// kernel: forward.18
$region0: #{forward.18}
  #allocation0 [shape = 'u32[]', space=smem, size = 0x4, offset = 0x4, fixed_abs, tag = 'smem constant byte address 0x4 - core index']
  #allocation1 [shape = 'u32[144,128]{1,0:T(1,128)}', space=vmem, size = 0x12000, scoped, tag = 'internal scratch']
  %s0 = inlined_call_operand.vmem [shape: bf16[2,8,32], index: 0, kind: input, shape index: {}]
  %s1 = inlined_call_operand.vmem [shape: bf16[2,8,32], index: 1, kind: input, shape index: {}]
  %s2 = inlined_call_operand.vmem [shape: bf16[32,32], index: 2, kind: input, shape index: {}]
  %s3 = inlined_call_operand.vmem [shape: f32[1,32], index: 3, kind: input, shape index: {}, may-alias: {3,7,10}]
  %s4 = inlined_call_operand.vmem [shape: bf16[32,64], index: 4, kind: input, shape index: {}]
  %s5 = inlined_call_operand.vmem [shape: f32[1,64], index: 5, kind: input, shape index: {}]
  %s6 = inlined_call_operand.vmem [shape: bf16[32,32], index: 6, kind: input, shape index: {}]
  %s7 = inlined_call_operand.vmem [shape: f32[1,32], index: 7, kind: input, shape index: {}, may-alias: {3,7,10}]
  %s8 = inlined_call_operand.vmem [shape: f32[2,1,8], index: 8, kind: input, shape index: {}]
  %s9 = inlined_call_operand.vmem [shape: f32[1,32], index: 9, kind: input, shape index: {}]
  %s10 = inlined_call_operand.vmem [shape: f32[1,32], index: 10, kind: input, shape index: {}, may-alias: {3,7,10}]
  %s11 = inlined_call_operand.vmem [shape: bf16[2,8,32], index: 11, kind: output, shape index: {}]
  %s12 = sld [smem:[#allocation0]]
  $region77: #{forward.18} parent=0
    _
  %s14 = ssub.s32 1, %s12
  %s15 = scalar_select 0, %s14, %s12
  loop: start=0, step=1, limit=4
  $region2: #{forward.18} parent=0 // loop_pre_header
    _
  $region3: #{forward.18} parent=0 // loop_header
    %s17 = sphi 0, %s21
    %p18 = scmp.ge.s32.totalorder %s17, 4
    %s27 = sphi 0, %s29
    %s30 = sphi 0, %s27
    %s31 = sphi 0, %s30
    %s47 = sphi 0, %s31
    %s53 = sphi 0, %s55
    %s56 = sphi 0, %s53
    %s57 = sphi 0, %s56
    %s73 = sphi 0, %s57
    %s77 = sphi 0, %s77
    %s79 = sphi 0, %s77
    %s80 = sphi 0, %s79
    %s94 = sphi 0, %s80
    %s98 = sphi 0, %s98
    %s100 = sphi 0, %s98
    %s101 = sphi 0, %s100
    %s115 = sphi 0, %s101
    %s119 = sphi 0, %s119
    %s121 = sphi 0, %s119
    %s122 = sphi 0, %s121
    %s136 = sphi 0, %s122
    %s140 = sphi 0, %s140
    %s142 = sphi 0, %s140
    %s143 = sphi 0, %s142
    %s157 = sphi 0, %s143
    %s161 = sphi 0, %s161
    %s163 = sphi 0, %s161
    %s164 = sphi 0, %s163
    %s178 = sphi 0, %s164
    %s182 = sphi 0, %s182
    %s184 = sphi 0, %s182
    %s185 = sphi 0, %s184
    %s199 = sphi 0, %s185
    %s205 = sphi 0, %s207
    %s208 = sphi 0, %s205
    %s209 = sphi 0, %s208
    %s225 = sphi 0, %s209
    %s229 = sphi 0, %s229
    %s231 = sphi 0, %s229
    %s232 = sphi 0, %s231
    %s246 = sphi 0, %s232
    %s250 = sphi 0, %s250
    %s252 = sphi 0, %s250
    %s253 = sphi 0, %s252
    %s267 = sphi 0, %s253
    %s273 = sphi 0, %s275
    %s276 = sphi 0, %s273
    %s277 = sphi 0, %s276
    %s293 = sphi 0, %s277
  $region4: #{forward.18} parent=0 // loop_header_branch
    %20 = sbr.rel (%p18) target = $region8
  $region5: #{forward.18} parent=0 // loop_body
    %s22 = ssub.s32 %s17, 1
    %s23 = ssub.s32 %s17, 2
    %s24 = sadd.s32 %s17, 1
    %s25 = ssub.s32 %s17, %s24
    %p26 = scmp.eq.s32.totalorder %s25, 0
    %s28 = sadd.s32 %s27, 1
    %s29 = scalar_select %p26, %s27, %s28
    %p32 = pneg %p26
    %p33 = scmp.eq.s32.totalorder %s17, 1
    %p34 = por %p32, %p33
    %p35 = scmp.ne.s32.totalorder %s27, %s30
    %p36 = scmp.eq.s32.totalorder %s17, 0
    %p37 = por %p35, %p36
    %p38 = scmp.ne.s32.totalorder %s27, %s30
    %p39 = scmp.eq.s32.totalorder %s22, 1
    %p40 = por %p38, %p39
    %p41 = scmp.ne.s32.totalorder %s30, %s31
    %p42 = scmp.eq.s32.totalorder %s22, 0
    %p43 = por %p41, %p42
    %p44 = scmp.ne.s32.totalorder %s30, %s31
    %p45 = scmp.eq.s32.totalorder %s23, 1
    %p46 = por %p44, %p45
    %p48 = scmp.ne.s32.totalorder %s31, %s47
    %p49 = scmp.eq.s32.totalorder %s23, 0
    %p50 = por %p48, %p49
    %s51 = ssub.s32 %s17, %s24
    %p52 = scmp.eq.s32.totalorder %s51, 0
    %s54 = sadd.s32 %s53, 1
    %s55 = scalar_select %p52, %s53, %s54
    %p58 = pneg %p52
    %p59 = scmp.eq.s32.totalorder %s17, 1
    %p60 = por %p58, %p59
    %p61 = scmp.ne.s32.totalorder %s53, %s56
    %p62 = scmp.eq.s32.totalorder %s17, 0
    %p63 = por %p61, %p62
    %p64 = scmp.ne.s32.totalorder %s53, %s56
    %p65 = scmp.eq.s32.totalorder %s22, 1
    %p66 = por %p64, %p65
    %p67 = scmp.ne.s32.totalorder %s56, %s57
    %p68 = scmp.eq.s32.totalorder %s22, 0
    %p69 = por %p67, %p68
    %p70 = scmp.ne.s32.totalorder %s56, %s57
    %p71 = scmp.eq.s32.totalorder %s23, 1
    %p72 = por %p70, %p71
    %p74 = scmp.ne.s32.totalorder %s57, %s73
    %p75 = scmp.eq.s32.totalorder %s23, 0
    %p76 = por %p74, %p75
    %s78 = sadd.s32 %s77, 1
    %p81 = scmp.eq.s32.totalorder %s17, 1
    %p82 = scmp.ne.s32.totalorder %s77, %s79
    %p83 = scmp.eq.s32.totalorder %s17, 0
    %p84 = por %p82, %p83
    %p85 = scmp.ne.s32.totalorder %s77, %s79
    %p86 = scmp.eq.s32.totalorder %s22, 1
    %p87 = por %p85, %p86
    %p88 = scmp.ne.s32.totalorder %s79, %s80
    %p89 = scmp.eq.s32.totalorder %s22, 0
    %p90 = por %p88, %p89
    %p91 = scmp.ne.s32.totalorder %s79, %s80
    %p92 = scmp.eq.s32.totalorder %s23, 1
    %p93 = por %p91, %p92
    %p95 = scmp.ne.s32.totalorder %s80, %s94
    %p96 = scmp.eq.s32.totalorder %s23, 0
    %p97 = por %p95, %p96
    %s99 = sadd.s32 %s98, 1
    %p102 = scmp.eq.s32.totalorder %s17, 1
    %p103 = scmp.ne.s32.totalorder %s98, %s100
    %p104 = scmp.eq.s32.totalorder %s17, 0
    %p105 = por %p103, %p104
    %p106 = scmp.ne.s32.totalorder %s98, %s100
    %p107 = scmp.eq.s32.totalorder %s22, 1
    %p108 = por %p106, %p107
    %p109 = scmp.ne.s32.totalorder %s100, %s101
    %p110 = scmp.eq.s32.totalorder %s22, 0
    %p111 = por %p109, %p110
    %p112 = scmp.ne.s32.totalorder %s100, %s101
    %p113 = scmp.eq.s32.totalorder %s23, 1
    %p114 = por %p112, %p113
    %p116 = scmp.ne.s32.totalorder %s101, %s115
    %p117 = scmp.eq.s32.totalorder %s23, 0
    %p118 = por %p116, %p117
    %s120 = sadd.s32 %s119, 1
    %p123 = scmp.eq.s32.totalorder %s17, 1
    %p124 = scmp.ne.s32.totalorder %s119, %s121
    %p125 = scmp.eq.s32.totalorder %s17, 0
    %p126 = por %p124, %p125
    %p127 = scmp.ne.s32.totalorder %s119, %s121
    %p128 = scmp.eq.s32.totalorder %s22, 1
    %p129 = por %p127, %p128
    %p130 = scmp.ne.s32.totalorder %s121, %s122
    %p131 = scmp.eq.s32.totalorder %s22, 0
    %p132 = por %p130, %p131
    %p133 = scmp.ne.s32.totalorder %s121, %s122
    %p134 = scmp.eq.s32.totalorder %s23, 1
    %p135 = por %p133, %p134
    %p137 = scmp.ne.s32.totalorder %s122, %s136
    %p138 = scmp.eq.s32.totalorder %s23, 0
    %p139 = por %p137, %p138
    %s141 = sadd.s32 %s140, 1
    %p144 = scmp.eq.s32.totalorder %s17, 1
    %p145 = scmp.ne.s32.totalorder %s140, %s142
    %p146 = scmp.eq.s32.totalorder %s17, 0
    %p147 = por %p145, %p146
    %p148 = scmp.ne.s32.totalorder %s140, %s142
    %p149 = scmp.eq.s32.totalorder %s22, 1
    %p150 = por %p148, %p149
    %p151 = scmp.ne.s32.totalorder %s142, %s143
    %p152 = scmp.eq.s32.totalorder %s22, 0
    %p153 = por %p151, %p152
    %p154 = scmp.ne.s32.totalorder %s142, %s143
    %p155 = scmp.eq.s32.totalorder %s23, 1
    %p156 = por %p154, %p155
    %p158 = scmp.ne.s32.totalorder %s143, %s157
    %p159 = scmp.eq.s32.totalorder %s23, 0
    %p160 = por %p158, %p159
    %s162 = sadd.s32 %s161, 1
    %p165 = scmp.eq.s32.totalorder %s17, 1
    %p166 = scmp.ne.s32.totalorder %s161, %s163
    %p167 = scmp.eq.s32.totalorder %s17, 0
    %p168 = por %p166, %p167
    %p169 = scmp.ne.s32.totalorder %s161, %s163
    %p170 = scmp.eq.s32.totalorder %s22, 1
    %p171 = por %p169, %p170
    %p172 = scmp.ne.s32.totalorder %s163, %s164
    %p173 = scmp.eq.s32.totalorder %s22, 0
    %p174 = por %p172, %p173
    %p175 = scmp.ne.s32.totalorder %s163, %s164
    %p176 = scmp.eq.s32.totalorder %s23, 1
    %p177 = por %p175, %p176
    %p179 = scmp.ne.s32.totalorder %s164, %s178
    %p180 = scmp.eq.s32.totalorder %s23, 0
    %p181 = por %p179, %p180
    %s183 = sadd.s32 %s182, 1
    %p186 = scmp.eq.s32.totalorder %s17, 1
    %p187 = scmp.ne.s32.totalorder %s182, %s184
    %p188 = scmp.eq.s32.totalorder %s17, 0
    %p189 = por %p187, %p188
    %p190 = scmp.ne.s32.totalorder %s182, %s184
    %p191 = scmp.eq.s32.totalorder %s22, 1
    %p192 = por %p190, %p191
    %p193 = scmp.ne.s32.totalorder %s184, %s185
    %p194 = scmp.eq.s32.totalorder %s22, 0
    %p195 = por %p193, %p194
    %p196 = scmp.ne.s32.totalorder %s184, %s185
    %p197 = scmp.eq.s32.totalorder %s23, 1
    %p198 = por %p196, %p197
    %p200 = scmp.ne.s32.totalorder %s185, %s199
    %p201 = scmp.eq.s32.totalorder %s23, 0
    %p202 = por %p200, %p201
    %s203 = ssub.s32 %s17, %s24
    %p204 = scmp.eq.s32.totalorder %s203, 0
    %s206 = sadd.s32 %s205, 1
    %s207 = scalar_select %p204, %s205, %s206
    %p210 = pneg %p204
    %p211 = scmp.eq.s32.totalorder %s17, 1
    %p212 = por %p210, %p211
    %p213 = scmp.ne.s32.totalorder %s205, %s208
    %p214 = scmp.eq.s32.totalorder %s17, 0
    %p215 = por %p213, %p214
    %p216 = scmp.ne.s32.totalorder %s205, %s208
    %p217 = scmp.eq.s32.totalorder %s22, 1
    %p218 = por %p216, %p217
    %p219 = scmp.ne.s32.totalorder %s208, %s209
    %p220 = scmp.eq.s32.totalorder %s22, 0
    %p221 = por %p219, %p220
    %p222 = scmp.ne.s32.totalorder %s208, %s209
    %p223 = scmp.eq.s32.totalorder %s23, 1
    %p224 = por %p222, %p223
    %p226 = scmp.ne.s32.totalorder %s209, %s225
    %p227 = scmp.eq.s32.totalorder %s23, 0
    %p228 = por %p226, %p227
    %s230 = sadd.s32 %s229, 1
    %p233 = scmp.eq.s32.totalorder %s17, 1
    %p234 = scmp.ne.s32.totalorder %s229, %s231
    %p235 = scmp.eq.s32.totalorder %s17, 0
    %p236 = por %p234, %p235
    %p237 = scmp.ne.s32.totalorder %s229, %s231
    %p238 = scmp.eq.s32.totalorder %s22, 1
    %p239 = por %p237, %p238
    %p240 = scmp.ne.s32.totalorder %s231, %s232
    %p241 = scmp.eq.s32.totalorder %s22, 0
    %p242 = por %p240, %p241
    %p243 = scmp.ne.s32.totalorder %s231, %s232
    %p244 = scmp.eq.s32.totalorder %s23, 1
    %p245 = por %p243, %p244
    %p247 = scmp.ne.s32.totalorder %s232, %s246
    %p248 = scmp.eq.s32.totalorder %s23, 0
    %p249 = por %p247, %p248
    %s251 = sadd.s32 %s250, 1
    %p254 = scmp.eq.s32.totalorder %s17, 1
    %p255 = scmp.ne.s32.totalorder %s250, %s252
    %p256 = scmp.eq.s32.totalorder %s17, 0
    %p257 = por %p255, %p256
    %p258 = scmp.ne.s32.totalorder %s250, %s252
    %p259 = scmp.eq.s32.totalorder %s22, 1
    %p260 = por %p258, %p259
    %p261 = scmp.ne.s32.totalorder %s252, %s253
    %p262 = scmp.eq.s32.totalorder %s22, 0
    %p263 = por %p261, %p262
    %p264 = scmp.ne.s32.totalorder %s252, %s253
    %p265 = scmp.eq.s32.totalorder %s23, 1
    %p266 = por %p264, %p265
    %p268 = scmp.ne.s32.totalorder %s253, %s267
    %p269 = scmp.eq.s32.totalorder %s23, 0
    %p270 = por %p268, %p269
    %s271 = ssub.s32 %s17, %s24
    %p272 = scmp.eq.s32.totalorder %s271, 0
    %s274 = sadd.s32 %s273, 1
    %s275 = scalar_select %p272, %s273, %s274
    %p278 = pneg %p272
    %p279 = scmp.eq.s32.totalorder %s17, 1
    %p280 = por %p278, %p279
    %p281 = scmp.ne.s32.totalorder %s273, %s276
    %p282 = scmp.eq.s32.totalorder %s17, 0
    %p283 = por %p281, %p282
    %p284 = scmp.ne.s32.totalorder %s273, %s276
    %p285 = scmp.eq.s32.totalorder %s22, 1
    %p286 = por %p284, %p285
    %p287 = scmp.ne.s32.totalorder %s276, %s277
    %p288 = scmp.eq.s32.totalorder %s22, 0
    %p289 = por %p287, %p288
    %p290 = scmp.ne.s32.totalorder %s276, %s277
    %p291 = scmp.eq.s32.totalorder %s23, 1
    %p292 = por %p290, %p291
    %p294 = scmp.ne.s32.totalorder %s277, %s293
    %p295 = scmp.eq.s32.totalorder %s23, 0
    %p296 = por %p294, %p295
    %p297 = scmp.le.s32.totalorder 1, %s17
    %p298 = scmp.lt.s32.totalorder %s17, 3
    %p299 = pnand %p297, %p298
    %p300 = pneg %p299
    // Predicated region
    $region9: #{forward.18} parent=5 // pred_check
      _
    $region10: #{forward.18} parent=5 // pred_check_branch
      %302 = sbr.rel (%p299) target = $region12
    $region11: #{forward.18} parent=5 // pred_region
      %s303 = ssub.s32 %s17, 1
      // Predicated region
      $region13: #{forward.18} parent=11 // pred_check
        %p304 = pneg %p90
      $region14: #{forward.18} parent=11 // pred_check_branch
        %306 = sbr.rel (%p304) target = $region16
      $region15: #{forward.18} parent=11 // pred_region
        _
      $region16: #{forward.18} parent=11 // pred_fallthru
        _
      // Predicated region
      $region17: #{forward.18} parent=11 // pred_check
        %p307 = pneg %p111
      $region18: #{forward.18} parent=11 // pred_check_branch
        %309 = sbr.rel (%p307) target = $region20
      $region19: #{forward.18} parent=11 // pred_region
        _
      $region20: #{forward.18} parent=11 // pred_fallthru
        _
      // Predicated region
      $region21: #{forward.18} parent=11 // pred_check
        %p310 = pneg %p132
      $region22: #{forward.18} parent=11 // pred_check_branch
        %312 = sbr.rel (%p310) target = $region24
      $region23: #{forward.18} parent=11 // pred_region
        _
      $region24: #{forward.18} parent=11 // pred_fallthru
        _
      // Predicated region
      $region25: #{forward.18} parent=11 // pred_check
        %p313 = pneg %p153
      $region26: #{forward.18} parent=11 // pred_check_branch
        %315 = sbr.rel (%p313) target = $region28
      $region27: #{forward.18} parent=11 // pred_region
        _
      $region28: #{forward.18} parent=11 // pred_fallthru
        _
      // Predicated region
      $region29: #{forward.18} parent=11 // pred_check
        %p316 = pneg %p174
      $region30: #{forward.18} parent=11 // pred_check_branch
        %318 = sbr.rel (%p316) target = $region32
      $region31: #{forward.18} parent=11 // pred_region
        _
      $region32: #{forward.18} parent=11 // pred_fallthru
        _
      // Predicated region
      $region33: #{forward.18} parent=11 // pred_check
        %p319 = pneg %p195
      $region34: #{forward.18} parent=11 // pred_check_branch
        %321 = sbr.rel (%p319) target = $region36
      $region35: #{forward.18} parent=11 // pred_region
        _
      $region36: #{forward.18} parent=11 // pred_fallthru
        _
      // Predicated region
      $region37: #{forward.18} parent=11 // pred_check
        %p322 = pneg %p242
      $region38: #{forward.18} parent=11 // pred_check_branch
        %324 = sbr.rel (%p322) target = $region40
      $region39: #{forward.18} parent=11 // pred_region
        _
      $region40: #{forward.18} parent=11 // pred_fallthru
        _
      // Predicated region
      $region41: #{forward.18} parent=11 // pred_check
        %p325 = pneg %p263
      $region42: #{forward.18} parent=11 // pred_check_branch
        %327 = sbr.rel (%p325) target = $region44
      $region43: #{forward.18} parent=11 // pred_region
        _
      $region44: #{forward.18} parent=11 // pred_fallthru
        _
    $region12: #{forward.18} parent=5 // pred_fallthru
      _
    %p328 = scmp.lt.s32.totalorder %s17, 2
    // Predicated region
    $region45: #{forward.18} parent=5 // pred_check
      %p329 = pneg %p328
    $region46: #{forward.18} parent=5 // pred_check_branch
      %331 = sbr.rel (%p329) target = $region48
    $region47: #{forward.18} parent=5 // pred_region
      // Predicated region
      $region49: #{forward.18} parent=47 // pred_check
        %p332 = pneg %p37
      $region50: #{forward.18} parent=47 // pred_check_branch
        %334 = sbr.rel (%p332) target = $region52
      $region51: #{forward.18} parent=47 // pred_region
        %p335 = scmp.lt.s32.totalorder %s17, 1
        %s336 = scalar_select %p335, %s17, 1
        %s337 = smul.addr %s336, 4
        %s338 = scalar_lea.vmem %s0, %s337
      $region52: #{forward.18} parent=47 // pred_fallthru
        _
      // Predicated region
      $region53: #{forward.18} parent=47 // pred_check
        %p339 = pneg %p63
      $region54: #{forward.18} parent=47 // pred_check_branch
        %341 = sbr.rel (%p339) target = $region56
      $region55: #{forward.18} parent=47 // pred_region
        %p342 = scmp.lt.s32.totalorder %s17, 1
        %s343 = scalar_select %p342, %s17, 1
        %s344 = smul.addr %s343, 4
        %s345 = scalar_lea.vmem %s1, %s344
      $region56: #{forward.18} parent=47 // pred_fallthru
        _
      // Predicated region
      $region57: #{forward.18} parent=47 // pred_check
        %p346 = pneg %p215
      $region58: #{forward.18} parent=47 // pred_check_branch
        %348 = sbr.rel (%p346) target = $region60
      $region59: #{forward.18} parent=47 // pred_region
        %p349 = scmp.lt.s32.totalorder %s17, 1
        %s350 = scalar_select %p349, %s17, 1
        %s351 = scalar_lea.vmem %s8, %s350
      $region60: #{forward.18} parent=47 // pred_fallthru
        _
    $region48: #{forward.18} parent=5 // pred_fallthru
      _
    %p352 = scmp.le.s32.totalorder 1, %s17
    %p353 = scmp.lt.s32.totalorder %s17, 3
    %p354 = pnand %p352, %p353
    %p355 = pneg %p354
    // Predicated region
    $region61: #{forward.18} parent=5 // pred_check
      _
    $region62: #{forward.18} parent=5 // pred_check_branch
      %357 = sbr.rel (%p354) target = $region64
    $region63: #{forward.18} parent=5 // pred_region
      %s358 = ssub.s32 %s17, 1
      %p359 = scmp.lt.s32.totalorder %s22, 1
      %s360 = scalar_select %p359, %s22, 1
      %s361 = smul.addr %s360, 4
      %s362 = scalar_lea.vmem %s0, %s361
      %p363 = pneg %p43
      %p364 = pneg %p40
      %p365 = scmp.lt.s32.totalorder %s22, 1
      %s366 = scalar_select %p365, %s22, 1
      %s367 = smul.addr %s366, 4
      %s368 = scalar_lea.vmem %s1, %s367
      %p369 = pneg %p69
      %p370 = pneg %p66
      %p371 = pneg %p90
      %p372 = pneg %p87
      %p373 = pneg %p111
      %p374 = pneg %p108
      %p375 = pneg %p132
      %p376 = pneg %p129
      %p377 = pneg %p153
      %p378 = pneg %p150
      %p379 = pneg %p174
      %p380 = pneg %p171
      %p381 = pneg %p195
      %p382 = pneg %p192
      %p383 = scmp.lt.s32.totalorder %s22, 1
      %s384 = scalar_select %p383, %s22, 1
      %s385 = scalar_lea.vmem %s8, %s384
      %p386 = pneg %p221
      %p387 = pneg %p218
      %p388 = pneg %p242
      %p389 = pneg %p239
      %p390 = pneg %p263
      %p391 = pneg %p260
      %p392 = pneg %p289
      %p393 = pneg %p286
      %p394 = scmp.lt.s32.totalorder %s22, 1
      %s395 = scalar_select %p394, %s22, 1
      %s396 = smul.addr %s395, 4
      %s397 = scalar_lea.vmem %s11, %s396
      %p398 = scmp.lt.s32.totalorder %s22, 1
      %s399 = scalar_select %p398, %s22, 1
      %s400 = smul.addr %s399, 4
      %s401 = scalar_lea.vmem %s0, %s400
      %p402 = scmp.lt.s32.totalorder %s22, 1
      %s403 = scalar_select %p402, %s22, 1
      %s404 = smul.addr %s403, 4
      %s405 = scalar_lea.vmem %s1, %s404
      %p406 = scmp.lt.s32.totalorder %s22, 1
      %s407 = scalar_select %p406, %s22, 1
      %s408 = scalar_lea.vmem %s8, %s407
      %p409 = scmp.lt.s32.totalorder %s22, 1
      %s410 = scalar_select %p409, %s22, 1
      %s411 = smul.addr %s410, 4
      %s412 = scalar_lea.vmem %s11, %s411
      %v414 = vld [vmem:[%s401] sm:$0xf]
      %v415 = vld [vmem:[%s405] sm:$0xf]
      %v416 = vld [vmem:[%s2] sm:$0xf]
      %v417 = vld [vmem:[%s2 + $0x4] sm:$0xf]
      %v418 = vld [vmem:[%s2 + $0x8] sm:$0xf]
      %v419 = vld [vmem:[%s2 + $0xc] sm:$0xf]
      %v420 = vld [vmem:[%s3] sm:$0x1]
      %v422 = vlaneseq
      %v423 = vshrl.u32 %v422, 7
      %v424 = vsub.s32 0, %v423
      %v425 = vrot.slane %v420, %v424
      %v431 = vunpack.c.l.b16 %v416
      %v432 = vunpack.c.l.b16 %v417
      %v433 = vunpack.c.l.b16 %v418
      %v434 = vunpack.c.l.b16 %v419
      %v435 = vpack.c.b16 %v432, %v431
      %v436 = vpack.c.b16 %v434, %v433
      %vm439 = vcmask 261120
      %v441 = vsel %vm439, %v414, 0
      %443 = vmatprep.subr.bf16.mxu0 0
      %444 = vmatpush1.bf16.msra.mxu0 %v435
      %445 = vmatprep.subr.bf16.mxu0 0
      %446 = vmatpush1.bf16.msra.mxu0 %v436
      %447 = vmatprep.subr.bf16.mxu0 0
      %448 = vmatpush1.bf16.msra.mxu0 0
      %449 = vmatprep.subr.bf16.mxu0 0
      %450 = vmatpush1.bf16.msra.mxu0 0
      %451 = vmatprep.subr.bf16.mxu0 0
      %452 = vmatpush1.bf16.msra.mxu0 0
      %453 = vmatprep.subr.bf16.mxu0 0
      %454 = vmatpush1.bf16.msra.mxu0 0
      %455 = vmatprep.subr.bf16.mxu0 0
      %456 = vmatpush1.bf16.msra.mxu0 0
      %457 = vmatprep.subr.bf16.mxu0 0
      %458 = vmatpush1.bf16.msra.mxu0 0
      %459 = vmatprep.subr.bf16.mxu0 0
      %460 = vmatpush1.bf16.msra.mxu0 0
      %461 = vmatprep.subr.bf16.mxu0 0
      %462 = vmatpush1.bf16.msra.mxu0 0
      %463 = vmatprep.subr.bf16.mxu0 0
      %464 = vmatpush1.bf16.msra.mxu0 0
      %465 = vmatprep.subr.bf16.mxu0 0
      %466 = vmatpush1.bf16.msra.mxu0 0
      %467 = vmatprep.subr.bf16.mxu0 0
      %468 = vmatpush1.bf16.msra.mxu0 0
      %469 = vmatprep.subr.bf16.mxu0 0
      %470 = vmatpush1.bf16.msra.mxu0 0
      %471 = vmatprep.subr.bf16.mxu0 0
      %472 = vmatpush1.bf16.msra.mxu0 0
      %473 = vmatprep.subr.bf16.mxu0 0
      %474 = vmatpush1.bf16.msra.mxu0 0
      %475 = vmatprep.mubr.bf16.mxu0 0
      %476 = vmatmul.mubr.bf16.gmra.mrb[0].mxu0 %v441
      %v477 = vpop.f32.mrb[0].mxu0
      %v478 = vadd.f32 %v425, %v477
      %v479 = vpop.f32.mrb[0].mxu0
      %v480 = vpop.f32.mrb[0].mxu0
      %v481 = vpop.f32.mrb[0].mxu0
      %482 = vdwg.mxu0
      %v483 = vld [vmem:[%s4] sm:$0xf]
      %v484 = vld [vmem:[%s4 + $0x4] sm:$0xf]
      %v485 = vld [vmem:[%s4 + $0x8] sm:$0xf]
      %v486 = vld [vmem:[%s4 + $0xc] sm:$0xf]
      %v487 = vld [vmem:[%s5] sm:$0x1]
      %v489 = vlaneseq
      %v490 = vshrl.u32 %v489, 7
      %v491 = vsub.s32 0, %v490
      %v492 = vrot.slane %v487, %v491
      %v498 = vunpack.c.l.b16 %v483
      %v499 = vunpack.c.l.b16 %v484
      %v500 = vunpack.c.l.b16 %v485
      %v501 = vunpack.c.l.b16 %v486
      %v502 = vpack.c.b16 %v499, %v498
      %v503 = vpack.c.b16 %v501, %v500
      %v507 = vsel %vm439, %v415, 0
      %509 = vmatprep.subr.bf16.mxu0 0
      %510 = vmatpush1.bf16.msra.mxu0 %v502
      %511 = vmatprep.subr.bf16.mxu0 0
      %512 = vmatpush1.bf16.msra.mxu0 %v503
      %513 = vmatprep.subr.bf16.mxu0 0
      %514 = vmatpush1.bf16.msra.mxu0 0
      %515 = vmatprep.subr.bf16.mxu0 0
      %516 = vmatpush1.bf16.msra.mxu0 0
      %517 = vmatprep.subr.bf16.mxu0 0
      %518 = vmatpush1.bf16.msra.mxu0 0
      %519 = vmatprep.subr.bf16.mxu0 0
      %520 = vmatpush1.bf16.msra.mxu0 0
      %521 = vmatprep.subr.bf16.mxu0 0
      %522 = vmatpush1.bf16.msra.mxu0 0
      %523 = vmatprep.subr.bf16.mxu0 0
      %524 = vmatpush1.bf16.msra.mxu0 0
      %525 = vmatprep.subr.bf16.mxu0 0
      %526 = vmatpush1.bf16.msra.mxu0 0
      %527 = vmatprep.subr.bf16.mxu0 0
      %528 = vmatpush1.bf16.msra.mxu0 0
      %529 = vmatprep.subr.bf16.mxu0 0
      %530 = vmatpush1.bf16.msra.mxu0 0
      %531 = vmatprep.subr.bf16.mxu0 0
      %532 = vmatpush1.bf16.msra.mxu0 0
      %533 = vmatprep.subr.bf16.mxu0 0
      %534 = vmatpush1.bf16.msra.mxu0 0
      %535 = vmatprep.subr.bf16.mxu0 0
      %536 = vmatpush1.bf16.msra.mxu0 0
      %537 = vmatprep.subr.bf16.mxu0 0
      %538 = vmatpush1.bf16.msra.mxu0 0
      %539 = vmatprep.subr.bf16.mxu0 0
      %540 = vmatpush1.bf16.msra.mxu0 0
      %541 = vmatprep.mubr.bf16.mxu0 0
      %542 = vmatmul.mubr.bf16.gmra.mrb[0].mxu0 %v507
      %v543 = vpop.f32.mrb[0].mxu0
      %v544 = vadd.f32 %v492, %v543
      %v545 = vpop.f32.mrb[0].mxu0
      %v546 = vpop.f32.mrb[0].mxu0
      %v547 = vpop.f32.mrb[0].mxu0
      %548 = vdwg.mxu0
      %v549 = vld [vmem:[%s408] sm:$0x1]
      %v550 = vld [vmem:[%s6] sm:$0xf]
      %v551 = vld [vmem:[%s6 + $0x4] sm:$0xf]
      %v552 = vld [vmem:[%s6 + $0x8] sm:$0xf]
      %v553 = vld [vmem:[%s6 + $0xc] sm:$0xf]
      %v554 = vld [vmem:[%s7] sm:$0x1]
      %v555 = vpack.c.bf16 %v478, %v478
      %v556 = vpack.c.bf16 %v544, %v544
      %v558 = vlaneseq
      %v559 = vshrl.u32 %v558, 7
      %v560 = vsub.s32 0, %v559
      %v561 = vrot.slane %v549, %v560
      %vm563 = vcmask 64512
      %v565 = vsel %vm563, %v555, 0
      %v568 = vsel %vm563, %v556, 0
      %570 = vmatprep.subr.bf16.mxu0 0
      %571 = vmatpush1.bf16.xpose.msra.mxu0 %v568
      %572 = vmatprep.subr.bf16.mxu0 0
      %573 = vmatpush1.bf16.xpose.msra.mxu0 0
      %574 = vmatprep.subr.bf16.mxu0 0
      %575 = vmatpush1.bf16.xpose.msra.mxu0 0
      %576 = vmatprep.subr.bf16.mxu0 0
      %577 = vmatpush1.bf16.xpose.msra.mxu0 0
      %578 = vmatprep.subr.bf16.mxu0 0
      %579 = vmatpush1.bf16.xpose.msra.mxu0 0
      %580 = vmatprep.subr.bf16.mxu0 0
      %581 = vmatpush1.bf16.xpose.msra.mxu0 0
      %582 = vmatprep.subr.bf16.mxu0 0
      %583 = vmatpush1.bf16.xpose.msra.mxu0 0
      %584 = vmatprep.subr.bf16.mxu0 0
      %585 = vmatpush1.bf16.xpose.msra.mxu0 0
      %586 = vmatprep.subr.bf16.mxu0 0
      %587 = vmatpush1.bf16.xpose.msra.mxu0 0
      %588 = vmatprep.subr.bf16.mxu0 0
      %589 = vmatpush1.bf16.xpose.msra.mxu0 0
      %590 = vmatprep.subr.bf16.mxu0 0
      %591 = vmatpush1.bf16.xpose.msra.mxu0 0
      %592 = vmatprep.subr.bf16.mxu0 0
      %593 = vmatpush1.bf16.xpose.msra.mxu0 0
      %594 = vmatprep.subr.bf16.mxu0 0
      %595 = vmatpush1.bf16.xpose.msra.mxu0 0
      %596 = vmatprep.subr.bf16.mxu0 0
      %597 = vmatpush1.bf16.xpose.msra.mxu0 0
      %598 = vmatprep.subr.bf16.mxu0 0
      %599 = vmatpush1.bf16.xpose.msra.mxu0 0
      %600 = vmatprep.subr.bf16.mxu0 0
      %601 = vmatpush1.bf16.xpose.msra.mxu0 0
      %602 = vmatprep.mubr.bf16.mxu0 0
      %603 = vmatmul.mubr.bf16.gmra.mrb[0].mxu0 %v565
      %v604 = vpop.f32.mrb[0].mxu0
      %v605 = vadd.f32 %v561, %v604
      %v606 = vpop.f32.mrb[0].mxu0
      %v607 = vpop.f32.mrb[0].mxu0
      %v608 = vpop.f32.mrb[0].mxu0
      %609 = vdwg.mxu0
      %v610 = vsel %vm563, %v605, -inf
      %611 = vmax.xlane.f32.xlu0 %v610
      %v612 = vpop.xlane.xlu0 %611
      %v613 = vsub.f32 %v605, %v612
      %v614 = vmul.f32 %v613, 1.442695
      %v615 = vpow.pop %v614
      %v616 = vsel %vm563, %v615, 0.0
      %617 = vadd.xlane.f32.xlu0 %v616
      %v618 = vpop.xlane.xlu0 %617
      %v619 = vpack.c.bf16 %v615, %v615
      %621 = vrot.lane.b32.xlu0 %v556, 96
      %v622 = vpop.permute.xlu0 %621
      %v624 = vsel %vm563, %v619, 0
      %vm626 = vcmask 1043456
      %v628 = vsel %vm626, %v622, 0
      %630 = vmatprep.subr.bf16.mxu0 0
      %631 = vmatpush1.bf16.msra.mxu0 %v628
      %632 = vmatprep.subr.bf16.mxu0 0
      %633 = vmatpush1.bf16.msra.mxu0 0
      %634 = vmatprep.subr.bf16.mxu0 0
      %635 = vmatpush1.bf16.msra.mxu0 0
      %636 = vmatprep.subr.bf16.mxu0 0
      %637 = vmatpush1.bf16.msra.mxu0 0
      %638 = vmatprep.subr.bf16.mxu0 0
      %639 = vmatpush1.bf16.msra.mxu0 0
      %640 = vmatprep.subr.bf16.mxu0 0
      %641 = vmatpush1.bf16.msra.mxu0 0
      %642 = vmatprep.subr.bf16.mxu0 0
      %643 = vmatpush1.bf16.msra.mxu0 0
      %644 = vmatprep.subr.bf16.mxu0 0
      %645 = vmatpush1.bf16.msra.mxu0 0
      %646 = vmatprep.subr.bf16.mxu0 0
      %647 = vmatpush1.bf16.msra.mxu0 0
      %648 = vmatprep.subr.bf16.mxu0 0
      %649 = vmatpush1.bf16.msra.mxu0 0
      %650 = vmatprep.subr.bf16.mxu0 0
      %651 = vmatpush1.bf16.msra.mxu0 0
      %652 = vmatprep.subr.bf16.mxu0 0
      %653 = vmatpush1.bf16.msra.mxu0 0
      %654 = vmatprep.subr.bf16.mxu0 0
      %655 = vmatpush1.bf16.msra.mxu0 0
      %656 = vmatprep.subr.bf16.mxu0 0
      %657 = vmatpush1.bf16.msra.mxu0 0
      %658 = vmatprep.subr.bf16.mxu0 0
      %659 = vmatpush1.bf16.msra.mxu0 0
      %660 = vmatprep.subr.bf16.mxu0 0
      %661 = vmatpush1.bf16.msra.mxu0 0
      %662 = vmatprep.mubr.bf16.mxu0 0
      %663 = vmatmul.mubr.bf16.gmra.mrb[0].mxu0 %v624
      %v664 = vpop.f32.mrb[0].mxu0
      %v665 = vadd.f32 0.0, %v664
      %v666 = vpop.f32.mrb[0].mxu0
      %v667 = vpop.f32.mrb[0].mxu0
      %v668 = vpop.f32.mrb[0].mxu0
      %669 = vdwg.mxu0
      %v670 = vrcp.pop %v618
      %v671 = vmul.f32 %v665, %v670
      %673 = vrot.lane.b32.xlu0 %v555, 120
      %v674 = vpop.permute.xlu0 %673
      %675 = vrot.lane.b32.xlu0 %v556, 120
      %v676 = vpop.permute.xlu0 %675
      %v678 = vsel %vm563, %v674, 0
      %v681 = vsel %vm563, %v676, 0
      %683 = vmatprep.subr.bf16.mxu0 0
      %684 = vmatpush1.bf16.xpose.msra.mxu0 %v681
      %685 = vmatprep.subr.bf16.mxu0 0
      %686 = vmatpush1.bf16.xpose.msra.mxu0 0
      %687 = vmatprep.subr.bf16.mxu0 0
      %688 = vmatpush1.bf16.xpose.msra.mxu0 0
      %689 = vmatprep.subr.bf16.mxu0 0
      %690 = vmatpush1.bf16.xpose.msra.mxu0 0
      %691 = vmatprep.subr.bf16.mxu0 0
      %692 = vmatpush1.bf16.xpose.msra.mxu0 0
      %693 = vmatprep.subr.bf16.mxu0 0
      %694 = vmatpush1.bf16.xpose.msra.mxu0 0
      %695 = vmatprep.subr.bf16.mxu0 0
      %696 = vmatpush1.bf16.xpose.msra.mxu0 0
      %697 = vmatprep.subr.bf16.mxu0 0
      %698 = vmatpush1.bf16.xpose.msra.mxu0 0
      %699 = vmatprep.subr.bf16.mxu0 0
      %700 = vmatpush1.bf16.xpose.msra.mxu0 0
      %701 = vmatprep.subr.bf16.mxu0 0
      %702 = vmatpush1.bf16.xpose.msra.mxu0 0
      %703 = vmatprep.subr.bf16.mxu0 0
      %704 = vmatpush1.bf16.xpose.msra.mxu0 0
      %705 = vmatprep.subr.bf16.mxu0 0
      %706 = vmatpush1.bf16.xpose.msra.mxu0 0
      %707 = vmatprep.subr.bf16.mxu0 0
      %708 = vmatpush1.bf16.xpose.msra.mxu0 0
      %709 = vmatprep.subr.bf16.mxu0 0
      %710 = vmatpush1.bf16.xpose.msra.mxu0 0
      %711 = vmatprep.subr.bf16.mxu0 0
      %712 = vmatpush1.bf16.xpose.msra.mxu0 0
      %713 = vmatprep.subr.bf16.mxu0 0
      %714 = vmatpush1.bf16.xpose.msra.mxu0 0
      %715 = vmatprep.mubr.bf16.mxu0 0
      %716 = vmatmul.mubr.bf16.gmra.mrb[0].mxu0 %v678
      %v717 = vpop.f32.mrb[0].mxu0
      %v718 = vadd.f32 %v561, %v717
      %v719 = vpop.f32.mrb[0].mxu0
      %v720 = vpop.f32.mrb[0].mxu0
      %v721 = vpop.f32.mrb[0].mxu0
      %722 = vdwg.mxu0
      %v723 = vsel %vm563, %v718, -inf
      %724 = vmax.xlane.f32.xlu0 %v723
      %v725 = vpop.xlane.xlu0 %724
      %v726 = vsub.f32 %v718, %v725
      %v727 = vmul.f32 %v726, 1.442695
      %v728 = vpow.pop %v727
      %v729 = vsel %vm563, %v728, 0.0
      %730 = vadd.xlane.f32.xlu0 %v729
      %v731 = vpop.xlane.xlu0 %730
      %v732 = vpack.c.bf16 %v728, %v728
      %733 = vrot.lane.b32.xlu0 %v556, 88
      %v734 = vpop.permute.xlu0 %733
      %v736 = vsel %vm563, %v732, 0
      %v739 = vsel %vm626, %v734, 0
      %741 = vmatprep.subr.bf16.mxu0 0
      %742 = vmatpush1.bf16.msra.mxu0 %v739
      %743 = vmatprep.subr.bf16.mxu0 0
      %744 = vmatpush1.bf16.msra.mxu0 0
      %745 = vmatprep.subr.bf16.mxu0 0
      %746 = vmatpush1.bf16.msra.mxu0 0
      %747 = vmatprep.subr.bf16.mxu0 0
      %748 = vmatpush1.bf16.msra.mxu0 0
      %749 = vmatprep.subr.bf16.mxu0 0
      %750 = vmatpush1.bf16.msra.mxu0 0
      %751 = vmatprep.subr.bf16.mxu0 0
      %752 = vmatpush1.bf16.msra.mxu0 0
      %753 = vmatprep.subr.bf16.mxu0 0
      %754 = vmatpush1.bf16.msra.mxu0 0
      %755 = vmatprep.subr.bf16.mxu0 0
      %756 = vmatpush1.bf16.msra.mxu0 0
      %757 = vmatprep.subr.bf16.mxu0 0
      %758 = vmatpush1.bf16.msra.mxu0 0
      %759 = vmatprep.subr.bf16.mxu0 0
      %760 = vmatpush1.bf16.msra.mxu0 0
      %761 = vmatprep.subr.bf16.mxu0 0
      %762 = vmatpush1.bf16.msra.mxu0 0
      %763 = vmatprep.subr.bf16.mxu0 0
      %764 = vmatpush1.bf16.msra.mxu0 0
      %765 = vmatprep.subr.bf16.mxu0 0
      %766 = vmatpush1.bf16.msra.mxu0 0
      %767 = vmatprep.subr.bf16.mxu0 0
      %768 = vmatpush1.bf16.msra.mxu0 0
      %769 = vmatprep.subr.bf16.mxu0 0
      %770 = vmatpush1.bf16.msra.mxu0 0
      %771 = vmatprep.subr.bf16.mxu0 0
      %772 = vmatpush1.bf16.msra.mxu0 0
      %773 = vmatprep.mubr.bf16.mxu0 0
      %774 = vmatmul.mubr.bf16.gmra.mrb[0].mxu0 %v736
      %v775 = vpop.f32.mrb[0].mxu0
      %v776 = vadd.f32 0.0, %v775
      %v777 = vpop.f32.mrb[0].mxu0
      %v778 = vpop.f32.mrb[0].mxu0
      %v779 = vpop.f32.mrb[0].mxu0
      %780 = vdwg.mxu0
      %v781 = vrcp.pop %v731
      %v782 = vmul.f32 %v776, %v781
      %783 = vrot.lane.b32.xlu0 %v555, 112
      %v784 = vpop.permute.xlu0 %783
      %785 = vrot.lane.b32.xlu0 %v556, 112
      %v786 = vpop.permute.xlu0 %785
      %v788 = vsel %vm563, %v784, 0
      %v791 = vsel %vm563, %v786, 0
      %793 = vmatprep.subr.bf16.mxu0 0
      %794 = vmatpush1.bf16.xpose.msra.mxu0 %v791
      %795 = vmatprep.subr.bf16.mxu0 0
      %796 = vmatpush1.bf16.xpose.msra.mxu0 0
      %797 = vmatprep.subr.bf16.mxu0 0
      %798 = vmatpush1.bf16.xpose.msra.mxu0 0
      %799 = vmatprep.subr.bf16.mxu0 0
      %800 = vmatpush1.bf16.xpose.msra.mxu0 0
      %801 = vmatprep.subr.bf16.mxu0 0
      %802 = vmatpush1.bf16.xpose.msra.mxu0 0
      %803 = vmatprep.subr.bf16.mxu0 0
      %804 = vmatpush1.bf16.xpose.msra.mxu0 0
      %805 = vmatprep.subr.bf16.mxu0 0
      %806 = vmatpush1.bf16.xpose.msra.mxu0 0
      %807 = vmatprep.subr.bf16.mxu0 0
      %808 = vmatpush1.bf16.xpose.msra.mxu0 0
      %809 = vmatprep.subr.bf16.mxu0 0
      %810 = vmatpush1.bf16.xpose.msra.mxu0 0
      %811 = vmatprep.subr.bf16.mxu0 0
      %812 = vmatpush1.bf16.xpose.msra.mxu0 0
      %813 = vmatprep.subr.bf16.mxu0 0
      %814 = vmatpush1.bf16.xpose.msra.mxu0 0
      %815 = vmatprep.subr.bf16.mxu0 0
      %816 = vmatpush1.bf16.xpose.msra.mxu0 0
      %817 = vmatprep.subr.bf16.mxu0 0
      %818 = vmatpush1.bf16.xpose.msra.mxu0 0
      %819 = vmatprep.subr.bf16.mxu0 0
      %820 = vmatpush1.bf16.xpose.msra.mxu0 0
      %821 = vmatprep.subr.bf16.mxu0 0
      %822 = vmatpush1.bf16.xpose.msra.mxu0 0
      %823 = vmatprep.subr.bf16.mxu0 0
      %824 = vmatpush1.bf16.xpose.msra.mxu0 0
      %825 = vmatprep.mubr.bf16.mxu0 0
      %826 = vmatmul.mubr.bf16.gmra.mrb[0].mxu0 %v788
      %v827 = vpop.f32.mrb[0].mxu0
      %v828 = vadd.f32 %v561, %v827
      %v829 = vpop.f32.mrb[0].mxu0
      %v830 = vpop.f32.mrb[0].mxu0
      %v831 = vpop.f32.mrb[0].mxu0
      %832 = vdwg.mxu0
      %v833 = vsel %vm563, %v828, -inf
      %834 = vmax.xlane.f32.xlu0 %v833
      %v835 = vpop.xlane.xlu0 %834
      %v836 = vsub.f32 %v828, %v835
      %v837 = vmul.f32 %v836, 1.442695
      %v838 = vpow.pop %v837
      %v839 = vsel %vm563, %v838, 0.0
      %840 = vadd.xlane.f32.xlu0 %v839
      %v841 = vpop.xlane.xlu0 %840
      %v842 = vpack.c.bf16 %v838, %v838
      %843 = vrot.lane.b32.xlu0 %v556, 80
      %v844 = vpop.permute.xlu0 %843
      %v846 = vsel %vm563, %v842, 0
      %v849 = vsel %vm626, %v844, 0
      %851 = vmatprep.subr.bf16.mxu0 0
      %852 = vmatpush1.bf16.msra.mxu0 %v849
      %853 = vmatprep.subr.bf16.mxu0 0
      %854 = vmatpush1.bf16.msra.mxu0 0
      %855 = vmatprep.subr.bf16.mxu0 0
      %856 = vmatpush1.bf16.msra.mxu0 0
      %857 = vmatprep.subr.bf16.mxu0 0
      %858 = vmatpush1.bf16.msra.mxu0 0
      %859 = vmatprep.subr.bf16.mxu0 0
      %860 = vmatpush1.bf16.msra.mxu0 0
      %861 = vmatprep.subr.bf16.mxu0 0
      %862 = vmatpush1.bf16.msra.mxu0 0
      %863 = vmatprep.subr.bf16.mxu0 0
      %864 = vmatpush1.bf16.msra.mxu0 0
      %865 = vmatprep.subr.bf16.mxu0 0
      %866 = vmatpush1.bf16.msra.mxu0 0
      %867 = vmatprep.subr.bf16.mxu0 0
      %868 = vmatpush1.bf16.msra.mxu0 0
      %869 = vmatprep.subr.bf16.mxu0 0
      %870 = vmatpush1.bf16.msra.mxu0 0
      %871 = vmatprep.subr.bf16.mxu0 0
      %872 = vmatpush1.bf16.msra.mxu0 0
      %873 = vmatprep.subr.bf16.mxu0 0
      %874 = vmatpush1.bf16.msra.mxu0 0
      %875 = vmatprep.subr.bf16.mxu0 0
      %876 = vmatpush1.bf16.msra.mxu0 0
      %877 = vmatprep.subr.bf16.mxu0 0
      %878 = vmatpush1.bf16.msra.mxu0 0
      %879 = vmatprep.subr.bf16.mxu0 0
      %880 = vmatpush1.bf16.msra.mxu0 0
      %881 = vmatprep.subr.bf16.mxu0 0
      %882 = vmatpush1.bf16.msra.mxu0 0
      %883 = vmatprep.mubr.bf16.mxu0 0
      %884 = vmatmul.mubr.bf16.gmra.mrb[0].mxu0 %v846
      %v885 = vpop.f32.mrb[0].mxu0
      %v886 = vadd.f32 0.0, %v885
      %v887 = vpop.f32.mrb[0].mxu0
      %v888 = vpop.f32.mrb[0].mxu0
      %v889 = vpop.f32.mrb[0].mxu0
      %890 = vdwg.mxu0
      %v891 = vrcp.pop %v841
      %v892 = vmul.f32 %v886, %v891
      %893 = vrot.lane.b32.xlu0 %v555, 104
      %v894 = vpop.permute.xlu0 %893
      %895 = vrot.lane.b32.xlu0 %v556, 104
      %v896 = vpop.permute.xlu0 %895
      %v898 = vsel %vm563, %v894, 0
      %v901 = vsel %vm563, %v896, 0
      %903 = vmatprep.subr.bf16.mxu0 0
      %904 = vmatpush1.bf16.xpose.msra.mxu0 %v901
      %905 = vmatprep.subr.bf16.mxu0 0
      %906 = vmatpush1.bf16.xpose.msra.mxu0 0
      %907 = vmatprep.subr.bf16.mxu0 0
      %908 = vmatpush1.bf16.xpose.msra.mxu0 0
      %909 = vmatprep.subr.bf16.mxu0 0
      %910 = vmatpush1.bf16.xpose.msra.mxu0 0
      %911 = vmatprep.subr.bf16.mxu0 0
      %912 = vmatpush1.bf16.xpose.msra.mxu0 0
      %913 = vmatprep.subr.bf16.mxu0 0
      %914 = vmatpush1.bf16.xpose.msra.mxu0 0
      %915 = vmatprep.subr.bf16.mxu0 0
      %916 = vmatpush1.bf16.xpose.msra.mxu0 0
      %917 = vmatprep.subr.bf16.mxu0 0
      %918 = vmatpush1.bf16.xpose.msra.mxu0 0
      %919 = vmatprep.subr.bf16.mxu0 0
      %920 = vmatpush1.bf16.xpose.msra.mxu0 0
      %921 = vmatprep.subr.bf16.mxu0 0
      %922 = vmatpush1.bf16.xpose.msra.mxu0 0
      %923 = vmatprep.subr.bf16.mxu0 0
      %924 = vmatpush1.bf16.xpose.msra.mxu0 0
      %925 = vmatprep.subr.bf16.mxu0 0
      %926 = vmatpush1.bf16.xpose.msra.mxu0 0
      %927 = vmatprep.subr.bf16.mxu0 0
      %928 = vmatpush1.bf16.xpose.msra.mxu0 0
      %929 = vmatprep.subr.bf16.mxu0 0
      %930 = vmatpush1.bf16.xpose.msra.mxu0 0
      %931 = vmatprep.subr.bf16.mxu0 0
      %932 = vmatpush1.bf16.xpose.msra.mxu0 0
      %933 = vmatprep.subr.bf16.mxu0 0
      %934 = vmatpush1.bf16.xpose.msra.mxu0 0
      %935 = vmatprep.mubr.bf16.mxu0 0
      %936 = vmatmul.mubr.bf16.gmra.mrb[0].mxu0 %v898
      %v937 = vpop.f32.mrb[0].mxu0
      %v938 = vadd.f32 %v561, %v937
      %v939 = vpop.f32.mrb[0].mxu0
      %v940 = vpop.f32.mrb[0].mxu0
      %v941 = vpop.f32.mrb[0].mxu0
      %942 = vdwg.mxu0
      %v943 = vsel %vm563, %v938, -inf
      %944 = vmax.xlane.f32.xlu0 %v943
      %v945 = vpop.xlane.xlu0 %944
      %v946 = vsub.f32 %v938, %v945
      %v947 = vmul.f32 %v946, 1.442695
      %v948 = vpow.pop %v947
      %v949 = vsel %vm563, %v948, 0.0
      %950 = vadd.xlane.f32.xlu0 %v949
      %v951 = vpop.xlane.xlu0 %950
      %v952 = vpack.c.bf16 %v948, %v948
      %953 = vrot.lane.b32.xlu0 %v556, 72
      %v954 = vpop.permute.xlu0 %953
      %v956 = vsel %vm563, %v952, 0
      %v959 = vsel %vm626, %v954, 0
      %961 = vmatprep.subr.bf16.mxu0 0
      %962 = vmatpush1.bf16.msra.mxu0 %v959
      %963 = vmatprep.subr.bf16.mxu0 0
      %964 = vmatpush1.bf16.msra.mxu0 0
      %965 = vmatprep.subr.bf16.mxu0 0
      %966 = vmatpush1.bf16.msra.mxu0 0
      %967 = vmatprep.subr.bf16.mxu0 0
      %968 = vmatpush1.bf16.msra.mxu0 0
      %969 = vmatprep.subr.bf16.mxu0 0
      %970 = vmatpush1.bf16.msra.mxu0 0
      %971 = vmatprep.subr.bf16.mxu0 0
      %972 = vmatpush1.bf16.msra.mxu0 0
      %973 = vmatprep.subr.bf16.mxu0 0
      %974 = vmatpush1.bf16.msra.mxu0 0
      %975 = vmatprep.subr.bf16.mxu0 0
      %976 = vmatpush1.bf16.msra.mxu0 0
      %977 = vmatprep.subr.bf16.mxu0 0
      %978 = vmatpush1.bf16.msra.mxu0 0
      %979 = vmatprep.subr.bf16.mxu0 0
      %980 = vmatpush1.bf16.msra.mxu0 0
      %981 = vmatprep.subr.bf16.mxu0 0
      %982 = vmatpush1.bf16.msra.mxu0 0
      %983 = vmatprep.subr.bf16.mxu0 0
      %984 = vmatpush1.bf16.msra.mxu0 0
      %985 = vmatprep.subr.bf16.mxu0 0
      %986 = vmatpush1.bf16.msra.mxu0 0
      %987 = vmatprep.subr.bf16.mxu0 0
      %988 = vmatpush1.bf16.msra.mxu0 0
      %989 = vmatprep.subr.bf16.mxu0 0
      %990 = vmatpush1.bf16.msra.mxu0 0
      %991 = vmatprep.subr.bf16.mxu0 0
      %992 = vmatpush1.bf16.msra.mxu0 0
      %993 = vmatprep.mubr.bf16.mxu0 0
      %994 = vmatmul.mubr.bf16.gmra.mrb[0].mxu0 %v956
      %v995 = vpop.f32.mrb[0].mxu0
      %v996 = vadd.f32 0.0, %v995
      %v997 = vpop.f32.mrb[0].mxu0
      %v998 = vpop.f32.mrb[0].mxu0
      %v999 = vpop.f32.mrb[0].mxu0
      %1000 = vdwg.mxu0
      %v1001 = vrcp.pop %v951
      %v1002 = vmul.f32 %v996, %v1001
      %1004 = vrot.lane.b32.xlu0 %v782, 8
      %v1005 = vpop.permute.xlu0 %1004
      %1008 = vrot.lane.b32.xlu0 %v892, 16
      %v1009 = vpop.permute.xlu0 %1008
      %1012 = vrot.lane.b32.xlu0 %v1002, 24
      %v1013 = vpop.permute.xlu0 %1012
      %v1015 = vsel %vm563, %v671, %v1005
      %vm1016 = vcmask 130048
      %v1017 = vsel %vm1016, %v1015, %v1009
      %vm1018 = vcmask 195584
      %v1019 = vsel %vm1018, %v1017, %v1013
      %v1020 = vpack.c.bf16 %v1019, %v1019
      %v1022 = vlaneseq
      %v1023 = vshrl.u32 %v1022, 7
      %v1024 = vsub.s32 0, %v1023
      %v1025 = vrot.slane %v554, %v1024
      %v1031 = vunpack.c.l.b16 %v550
      %v1032 = vunpack.c.l.b16 %v551
      %v1033 = vunpack.c.l.b16 %v552
      %v1034 = vunpack.c.l.b16 %v553
      %v1035 = vpack.c.b16 %v1032, %v1031
      %v1036 = vpack.c.b16 %v1034, %v1033
      %v1040 = vsel %vm439, %v1020, 0
      %1042 = vmatprep.subr.bf16.mxu0 0
      %1043 = vmatpush1.bf16.msra.mxu0 %v1035
      %1044 = vmatprep.subr.bf16.mxu0 0
      %1045 = vmatpush1.bf16.msra.mxu0 %v1036
      %1046 = vmatprep.subr.bf16.mxu0 0
      %1047 = vmatpush1.bf16.msra.mxu0 0
      %1048 = vmatprep.subr.bf16.mxu0 0
      %1049 = vmatpush1.bf16.msra.mxu0 0
      %1050 = vmatprep.subr.bf16.mxu0 0
      %1051 = vmatpush1.bf16.msra.mxu0 0
      %1052 = vmatprep.subr.bf16.mxu0 0
      %1053 = vmatpush1.bf16.msra.mxu0 0
      %1054 = vmatprep.subr.bf16.mxu0 0
      %1055 = vmatpush1.bf16.msra.mxu0 0
      %1056 = vmatprep.subr.bf16.mxu0 0
      %1057 = vmatpush1.bf16.msra.mxu0 0
      %1058 = vmatprep.subr.bf16.mxu0 0
      %1059 = vmatpush1.bf16.msra.mxu0 0
      %1060 = vmatprep.subr.bf16.mxu0 0
      %1061 = vmatpush1.bf16.msra.mxu0 0
      %1062 = vmatprep.subr.bf16.mxu0 0
      %1063 = vmatpush1.bf16.msra.mxu0 0
      %1064 = vmatprep.subr.bf16.mxu0 0
      %1065 = vmatpush1.bf16.msra.mxu0 0
      %1066 = vmatprep.subr.bf16.mxu0 0
      %1067 = vmatpush1.bf16.msra.mxu0 0
      %1068 = vmatprep.subr.bf16.mxu0 0
      %1069 = vmatpush1.bf16.msra.mxu0 0
      %1070 = vmatprep.subr.bf16.mxu0 0
      %1071 = vmatpush1.bf16.msra.mxu0 0
      %1072 = vmatprep.subr.bf16.mxu0 0
      %1073 = vmatpush1.bf16.msra.mxu0 0
      %1074 = vmatprep.mubr.bf16.mxu0 0
      %1075 = vmatmul.mubr.bf16.gmra.mrb[0].mxu0 %v1040
      %v1076 = vpop.f32.mrb[0].mxu0
      %v1077 = vadd.f32 %v1025, %v1076
      %v1078 = vpop.f32.mrb[0].mxu0
      %v1079 = vpop.f32.mrb[0].mxu0
      %v1080 = vpop.f32.mrb[0].mxu0
      %1081 = vdwg.mxu0
      %v1082 = vunpack.c.l.bf16 %v414
      %v1083 = vadd.f32 %v1082, %v1077
      %v1084 = vld [vmem:[%s9] sm:$0x1]
      %v1085 = vld [vmem:[%s10] sm:$0x1]
      %v1086 = vsel %vm439, %v1083, 0.0
      %1087 = vadd.xlane.f32.xlu0 %v1086
      %v1088 = vpop.xlane.xlu0 %1087
      %v1089 = vrcp.pop 32.0
      %v1090 = vmul.f32 %v1088, %v1089
      %v1091 = vsub.f32 %v1083, %v1090
      %v1092 = vmul.f32 %v1091, %v1091
      %v1093 = vsel %vm439, %v1092, 0.0
      %1094 = vadd.xlane.f32.xlu0 %v1093
      %v1095 = vpop.xlane.xlu0 %1094
      %v1096 = vmul.f32 %v1095, %v1089
      %v1097 = vadd.f32 %v1096, 1e-05
      %v1098 = vrsqrt.pop %v1097
      %v1099 = vmul.f32 %v1091, %v1098
      %v1101 = vlaneseq
      %v1102 = vshrl.u32 %v1101, 7
      %v1103 = vsub.s32 0, %v1102
      %v1104 = vrot.slane %v1084, %v1103
      %v1106 = vmul.f32 %v1099, %v1104
      %v1108 = vlaneseq
      %v1109 = vshrl.u32 %v1108, 7
      %v1110 = vsub.s32 0, %v1109
      %v1111 = vrot.slane %v1085, %v1110
      %v1113 = vadd.f32 %v1106, %v1111
      %v1114 = vpack.c.bf16 %v1113, %v1113
      %vm1115 = vcmask 257024
      %1116 = vst.msk [vmem:[%s412] sm:$0xf] %vm1115, %v1114
      %p1117 = scmp.lt.s32.totalorder %s22, 1
      %s1118 = scalar_select %p1117, %s22, 1
      %s1119 = smul.addr %s1118, 4
      %s1120 = scalar_lea.vmem %s11, %s1119
      // Predicated region
      $region65: #{forward.18} parent=63 // pred_check
        %p1121 = pneg %p286
      $region66: #{forward.18} parent=63 // pred_check_branch
        %1123 = sbr.rel (%p1121) target = $region68
      $region67: #{forward.18} parent=63 // pred_region
        _
      $region68: #{forward.18} parent=63 // pred_fallthru
        _
    $region64: #{forward.18} parent=5 // pred_fallthru
      _
    %p1124 = scmp.le.s32.totalorder 2, %s17
    // Predicated region
    $region69: #{forward.18} parent=5 // pred_check
      %p1125 = pneg %p1124
    $region70: #{forward.18} parent=5 // pred_check_branch
      %1127 = sbr.rel (%p1125) target = $region72
    $region71: #{forward.18} parent=5 // pred_region
      %s1128 = ssub.s32 %s17, 2
      // Predicated region
      $region73: #{forward.18} parent=71 // pred_check
        %p1129 = pneg %p292
      $region74: #{forward.18} parent=71 // pred_check_branch
        %1131 = sbr.rel (%p1129) target = $region76
      $region75: #{forward.18} parent=71 // pred_region
        %p1132 = scmp.lt.s32.totalorder %s23, 1
        %s1133 = scalar_select %p1132, %s23, 1
        %s1134 = smul.addr %s1133, 4
        %s1135 = scalar_lea.vmem %s11, %s1134
      $region76: #{forward.18} parent=71 // pred_fallthru
        _
    $region72: #{forward.18} parent=5 // pred_fallthru
      _
  $region6: #{forward.18} parent=0 // loop_footer
    %s21 = sadd.s32 1, %s17
  $region7: #{forward.18} parent=0 // loop_footer_branch
    %16 = sbr.rel target = $region3
  $region8: #{forward.18} parent=0 // loop_exit
    _

// kernel: forward.23
$region0: #{forward.23}
  #allocation0 [shape = 'u32[]', space=smem, size = 0x4, offset = 0x4, fixed_abs, tag = 'smem constant byte address 0x4 - core index']
  #allocation1 [shape = 'u32[144,128]{1,0:T(1,128)}', space=vmem, size = 0x12000, scoped, tag = 'internal scratch']
  %s0 = inlined_call_operand.vmem [shape: bf16[2,8,32], index: 0, kind: input, shape index: {}]
  %s1 = inlined_call_operand.vmem [shape: f32[1,32], index: 1, kind: input, shape index: {}]
  %s2 = inlined_call_operand.vmem [shape: f32[1,32], index: 2, kind: input, shape index: {}]
  %s3 = inlined_call_operand.vmem [shape: bf16[32,128], index: 3, kind: input, shape index: {}]
  %s4 = inlined_call_operand.vmem [shape: f32[1,128], index: 4, kind: input, shape index: {}]
  %s5 = inlined_call_operand.vmem [shape: f32[2,8,128], index: 5, kind: output, shape index: {}]
  %s6 = sld [smem:[#allocation0]]
  $region53: #{forward.23} parent=0
    _
  %s8 = ssub.s32 1, %s6
  %s9 = scalar_select 0, %s8, %s6
  loop: start=0, step=1, limit=4
  $region2: #{forward.23} parent=0 // loop_pre_header
    _
  $region3: #{forward.23} parent=0 // loop_header
    %s11 = sphi 0, %s15
    %p12 = scmp.ge.s32.totalorder %s11, 4
    %s21 = sphi 0, %s23
    %s24 = sphi 0, %s21
    %s25 = sphi 0, %s24
    %s41 = sphi 0, %s25
    %s45 = sphi 0, %s45
    %s47 = sphi 0, %s45
    %s48 = sphi 0, %s47
    %s62 = sphi 0, %s48
    %s66 = sphi 0, %s66
    %s68 = sphi 0, %s66
    %s69 = sphi 0, %s68
    %s83 = sphi 0, %s69
    %s87 = sphi 0, %s87
    %s89 = sphi 0, %s87
    %s90 = sphi 0, %s89
    %s104 = sphi 0, %s90
    %s108 = sphi 0, %s108
    %s110 = sphi 0, %s108
    %s111 = sphi 0, %s110
    %s125 = sphi 0, %s111
    %s131 = sphi 0, %s133
    %s134 = sphi 0, %s131
    %s135 = sphi 0, %s134
    %s151 = sphi 0, %s135
  $region4: #{forward.23} parent=0 // loop_header_branch
    %14 = sbr.rel (%p12) target = $region8
  $region5: #{forward.23} parent=0 // loop_body
    %s16 = ssub.s32 %s11, 1
    %s17 = ssub.s32 %s11, 2
    %s18 = sadd.s32 %s11, 1
    %s19 = ssub.s32 %s11, %s18
    %p20 = scmp.eq.s32.totalorder %s19, 0
    %s22 = sadd.s32 %s21, 1
    %s23 = scalar_select %p20, %s21, %s22
    %p26 = pneg %p20
    %p27 = scmp.eq.s32.totalorder %s11, 1
    %p28 = por %p26, %p27
    %p29 = scmp.ne.s32.totalorder %s21, %s24
    %p30 = scmp.eq.s32.totalorder %s11, 0
    %p31 = por %p29, %p30
    %p32 = scmp.ne.s32.totalorder %s21, %s24
    %p33 = scmp.eq.s32.totalorder %s16, 1
    %p34 = por %p32, %p33
    %p35 = scmp.ne.s32.totalorder %s24, %s25
    %p36 = scmp.eq.s32.totalorder %s16, 0
    %p37 = por %p35, %p36
    %p38 = scmp.ne.s32.totalorder %s24, %s25
    %p39 = scmp.eq.s32.totalorder %s17, 1
    %p40 = por %p38, %p39
    %p42 = scmp.ne.s32.totalorder %s25, %s41
    %p43 = scmp.eq.s32.totalorder %s17, 0
    %p44 = por %p42, %p43
    %s46 = sadd.s32 %s45, 1
    %p49 = scmp.eq.s32.totalorder %s11, 1
    %p50 = scmp.ne.s32.totalorder %s45, %s47
    %p51 = scmp.eq.s32.totalorder %s11, 0
    %p52 = por %p50, %p51
    %p53 = scmp.ne.s32.totalorder %s45, %s47
    %p54 = scmp.eq.s32.totalorder %s16, 1
    %p55 = por %p53, %p54
    %p56 = scmp.ne.s32.totalorder %s47, %s48
    %p57 = scmp.eq.s32.totalorder %s16, 0
    %p58 = por %p56, %p57
    %p59 = scmp.ne.s32.totalorder %s47, %s48
    %p60 = scmp.eq.s32.totalorder %s17, 1
    %p61 = por %p59, %p60
    %p63 = scmp.ne.s32.totalorder %s48, %s62
    %p64 = scmp.eq.s32.totalorder %s17, 0
    %p65 = por %p63, %p64
    %s67 = sadd.s32 %s66, 1
    %p70 = scmp.eq.s32.totalorder %s11, 1
    %p71 = scmp.ne.s32.totalorder %s66, %s68
    %p72 = scmp.eq.s32.totalorder %s11, 0
    %p73 = por %p71, %p72
    %p74 = scmp.ne.s32.totalorder %s66, %s68
    %p75 = scmp.eq.s32.totalorder %s16, 1
    %p76 = por %p74, %p75
    %p77 = scmp.ne.s32.totalorder %s68, %s69
    %p78 = scmp.eq.s32.totalorder %s16, 0
    %p79 = por %p77, %p78
    %p80 = scmp.ne.s32.totalorder %s68, %s69
    %p81 = scmp.eq.s32.totalorder %s17, 1
    %p82 = por %p80, %p81
    %p84 = scmp.ne.s32.totalorder %s69, %s83
    %p85 = scmp.eq.s32.totalorder %s17, 0
    %p86 = por %p84, %p85
    %s88 = sadd.s32 %s87, 1
    %p91 = scmp.eq.s32.totalorder %s11, 1
    %p92 = scmp.ne.s32.totalorder %s87, %s89
    %p93 = scmp.eq.s32.totalorder %s11, 0
    %p94 = por %p92, %p93
    %p95 = scmp.ne.s32.totalorder %s87, %s89
    %p96 = scmp.eq.s32.totalorder %s16, 1
    %p97 = por %p95, %p96
    %p98 = scmp.ne.s32.totalorder %s89, %s90
    %p99 = scmp.eq.s32.totalorder %s16, 0
    %p100 = por %p98, %p99
    %p101 = scmp.ne.s32.totalorder %s89, %s90
    %p102 = scmp.eq.s32.totalorder %s17, 1
    %p103 = por %p101, %p102
    %p105 = scmp.ne.s32.totalorder %s90, %s104
    %p106 = scmp.eq.s32.totalorder %s17, 0
    %p107 = por %p105, %p106
    %s109 = sadd.s32 %s108, 1
    %p112 = scmp.eq.s32.totalorder %s11, 1
    %p113 = scmp.ne.s32.totalorder %s108, %s110
    %p114 = scmp.eq.s32.totalorder %s11, 0
    %p115 = por %p113, %p114
    %p116 = scmp.ne.s32.totalorder %s108, %s110
    %p117 = scmp.eq.s32.totalorder %s16, 1
    %p118 = por %p116, %p117
    %p119 = scmp.ne.s32.totalorder %s110, %s111
    %p120 = scmp.eq.s32.totalorder %s16, 0
    %p121 = por %p119, %p120
    %p122 = scmp.ne.s32.totalorder %s110, %s111
    %p123 = scmp.eq.s32.totalorder %s17, 1
    %p124 = por %p122, %p123
    %p126 = scmp.ne.s32.totalorder %s111, %s125
    %p127 = scmp.eq.s32.totalorder %s17, 0
    %p128 = por %p126, %p127
    %s129 = ssub.s32 %s11, %s18
    %p130 = scmp.eq.s32.totalorder %s129, 0
    %s132 = sadd.s32 %s131, 1
    %s133 = scalar_select %p130, %s131, %s132
    %p136 = pneg %p130
    %p137 = scmp.eq.s32.totalorder %s11, 1
    %p138 = por %p136, %p137
    %p139 = scmp.ne.s32.totalorder %s131, %s134
    %p140 = scmp.eq.s32.totalorder %s11, 0
    %p141 = por %p139, %p140
    %p142 = scmp.ne.s32.totalorder %s131, %s134
    %p143 = scmp.eq.s32.totalorder %s16, 1
    %p144 = por %p142, %p143
    %p145 = scmp.ne.s32.totalorder %s134, %s135
    %p146 = scmp.eq.s32.totalorder %s16, 0
    %p147 = por %p145, %p146
    %p148 = scmp.ne.s32.totalorder %s134, %s135
    %p149 = scmp.eq.s32.totalorder %s17, 1
    %p150 = por %p148, %p149
    %p152 = scmp.ne.s32.totalorder %s135, %s151
    %p153 = scmp.eq.s32.totalorder %s17, 0
    %p154 = por %p152, %p153
    %p155 = scmp.le.s32.totalorder 1, %s11
    %p156 = scmp.lt.s32.totalorder %s11, 3
    %p157 = pnand %p155, %p156
    %p158 = pneg %p157
    // Predicated region
    $region9: #{forward.23} parent=5 // pred_check
      _
    $region10: #{forward.23} parent=5 // pred_check_branch
      %160 = sbr.rel (%p157) target = $region12
    $region11: #{forward.23} parent=5 // pred_region
      %s161 = ssub.s32 %s11, 1
      // Predicated region
      $region13: #{forward.23} parent=11 // pred_check
        %p162 = pneg %p58
      $region14: #{forward.23} parent=11 // pred_check_branch
        %164 = sbr.rel (%p162) target = $region16
      $region15: #{forward.23} parent=11 // pred_region
        _
      $region16: #{forward.23} parent=11 // pred_fallthru
        _
      // Predicated region
      $region17: #{forward.23} parent=11 // pred_check
        %p165 = pneg %p79
      $region18: #{forward.23} parent=11 // pred_check_branch
        %167 = sbr.rel (%p165) target = $region20
      $region19: #{forward.23} parent=11 // pred_region
        _
      $region20: #{forward.23} parent=11 // pred_fallthru
        _
      // Predicated region
      $region21: #{forward.23} parent=11 // pred_check
        %p168 = pneg %p100
      $region22: #{forward.23} parent=11 // pred_check_branch
        %170 = sbr.rel (%p168) target = $region24
      $region23: #{forward.23} parent=11 // pred_region
        _
      $region24: #{forward.23} parent=11 // pred_fallthru
        _
      // Predicated region
      $region25: #{forward.23} parent=11 // pred_check
        %p171 = pneg %p121
      $region26: #{forward.23} parent=11 // pred_check_branch
        %173 = sbr.rel (%p171) target = $region28
      $region27: #{forward.23} parent=11 // pred_region
        _
      $region28: #{forward.23} parent=11 // pred_fallthru
        _
    $region12: #{forward.23} parent=5 // pred_fallthru
      _
    %p174 = scmp.lt.s32.totalorder %s11, 2
    // Predicated region
    $region29: #{forward.23} parent=5 // pred_check
      %p175 = pneg %p174
    $region30: #{forward.23} parent=5 // pred_check_branch
      %177 = sbr.rel (%p175) target = $region32
    $region31: #{forward.23} parent=5 // pred_region
      // Predicated region
      $region33: #{forward.23} parent=31 // pred_check
        %p178 = pneg %p31
      $region34: #{forward.23} parent=31 // pred_check_branch
        %180 = sbr.rel (%p178) target = $region36
      $region35: #{forward.23} parent=31 // pred_region
        %p181 = scmp.lt.s32.totalorder %s11, 1
        %s182 = scalar_select %p181, %s11, 1
        %s183 = smul.addr %s182, 4
        %s184 = scalar_lea.vmem %s0, %s183
      $region36: #{forward.23} parent=31 // pred_fallthru
        _
    $region32: #{forward.23} parent=5 // pred_fallthru
      _
    %p185 = scmp.le.s32.totalorder 1, %s11
    %p186 = scmp.lt.s32.totalorder %s11, 3
    %p187 = pnand %p185, %p186
    %p188 = pneg %p187
    // Predicated region
    $region37: #{forward.23} parent=5 // pred_check
      _
    $region38: #{forward.23} parent=5 // pred_check_branch
      %190 = sbr.rel (%p187) target = $region40
    $region39: #{forward.23} parent=5 // pred_region
      %s191 = ssub.s32 %s11, 1
      %p192 = scmp.lt.s32.totalorder %s16, 1
      %s193 = scalar_select %p192, %s16, 1
      %s194 = smul.addr %s193, 4
      %s195 = scalar_lea.vmem %s0, %s194
      %p196 = pneg %p37
      %p197 = pneg %p34
      %p198 = pneg %p58
      %p199 = pneg %p55
      %p200 = pneg %p79
      %p201 = pneg %p76
      %p202 = pneg %p100
      %p203 = pneg %p97
      %p204 = pneg %p121
      %p205 = pneg %p118
      %p206 = pneg %p147
      %p207 = pneg %p144
      %p208 = scmp.lt.s32.totalorder %s16, 1
      %s209 = scalar_select %p208, %s16, 1
      %s210 = smul.addr %s209, 8
      %s211 = scalar_lea.vmem %s5, %s210
      %p212 = scmp.lt.s32.totalorder %s16, 1
      %s213 = scalar_select %p212, %s16, 1
      %s214 = smul.addr %s213, 4
      %s215 = scalar_lea.vmem %s0, %s214
      %p216 = scmp.lt.s32.totalorder %s16, 1
      %s217 = scalar_select %p216, %s16, 1
      %s218 = smul.addr %s217, 8
      %s219 = scalar_lea.vmem %s5, %s218
      %v221 = vld [vmem:[%s215] sm:$0xf]
      %v222 = vunpack.c.l.bf16 %v221
      %v223 = vld [vmem:[%s1] sm:$0x1]
      %v224 = vld [vmem:[%s2] sm:$0x1]
      %vm225 = vcmask 261120
      %v226 = vsel %vm225, %v222, 0.0
      %227 = vadd.xlane.f32.xlu0 %v226
      %v228 = vpop.xlane.xlu0 %227
      %v229 = vrcp.pop 32.0
      %v230 = vmul.f32 %v228, %v229
      %v231 = vsub.f32 %v222, %v230
      %v232 = vmul.f32 %v231, %v231
      %v233 = vsel %vm225, %v232, 0.0
      %234 = vadd.xlane.f32.xlu0 %v233
      %v235 = vpop.xlane.xlu0 %234
      %v236 = vmul.f32 %v235, %v229
      %v237 = vadd.f32 %v236, 1e-05
      %v238 = vrsqrt.pop %v237
      %v239 = vmul.f32 %v231, %v238
      %v241 = vlaneseq
      %v242 = vshrl.u32 %v241, 7
      %v243 = vsub.s32 0, %v242
      %v244 = vrot.slane %v223, %v243
      %v246 = vmul.f32 %v239, %v244
      %v248 = vlaneseq
      %v249 = vshrl.u32 %v248, 7
      %v250 = vsub.s32 0, %v249
      %v251 = vrot.slane %v224, %v250
      %v253 = vadd.f32 %v246, %v251
      %v254 = vpack.c.bf16 %v253, %v253
      %v255 = vld [vmem:[%s3] sm:$0xf]
      %v256 = vld [vmem:[%s3 + $0x4] sm:$0xf]
      %v257 = vld [vmem:[%s3 + $0x8] sm:$0xf]
      %v258 = vld [vmem:[%s3 + $0xc] sm:$0xf]
      %v259 = vld [vmem:[%s4] sm:$0x1]
      %v261 = vlaneseq
      %v262 = vshrl.u32 %v261, 7
      %v263 = vsub.s32 0, %v262
      %v264 = vrot.slane %v259, %v263
      %v270 = vunpack.c.l.b16 %v255
      %v271 = vunpack.c.l.b16 %v256
      %v272 = vunpack.c.l.b16 %v257
      %v273 = vunpack.c.l.b16 %v258
      %v274 = vpack.c.b16 %v271, %v270
      %v275 = vpack.c.b16 %v273, %v272
      %v279 = vsel %vm225, %v254, 0
      %281 = vmatprep.subr.bf16.mxu0 0
      %282 = vmatpush1.bf16.msra.mxu0 %v274
      %283 = vmatprep.subr.bf16.mxu0 0
      %284 = vmatpush1.bf16.msra.mxu0 %v275
      %285 = vmatprep.subr.bf16.mxu0 0
      %286 = vmatpush1.bf16.msra.mxu0 0
      %287 = vmatprep.subr.bf16.mxu0 0
      %288 = vmatpush1.bf16.msra.mxu0 0
      %289 = vmatprep.subr.bf16.mxu0 0
      %290 = vmatpush1.bf16.msra.mxu0 0
      %291 = vmatprep.subr.bf16.mxu0 0
      %292 = vmatpush1.bf16.msra.mxu0 0
      %293 = vmatprep.subr.bf16.mxu0 0
      %294 = vmatpush1.bf16.msra.mxu0 0
      %295 = vmatprep.subr.bf16.mxu0 0
      %296 = vmatpush1.bf16.msra.mxu0 0
      %297 = vmatprep.subr.bf16.mxu0 0
      %298 = vmatpush1.bf16.msra.mxu0 0
      %299 = vmatprep.subr.bf16.mxu0 0
      %300 = vmatpush1.bf16.msra.mxu0 0
      %301 = vmatprep.subr.bf16.mxu0 0
      %302 = vmatpush1.bf16.msra.mxu0 0
      %303 = vmatprep.subr.bf16.mxu0 0
      %304 = vmatpush1.bf16.msra.mxu0 0
      %305 = vmatprep.subr.bf16.mxu0 0
      %306 = vmatpush1.bf16.msra.mxu0 0
      %307 = vmatprep.subr.bf16.mxu0 0
      %308 = vmatpush1.bf16.msra.mxu0 0
      %309 = vmatprep.subr.bf16.mxu0 0
      %310 = vmatpush1.bf16.msra.mxu0 0
      %311 = vmatprep.subr.bf16.mxu0 0
      %312 = vmatpush1.bf16.msra.mxu0 0
      %313 = vmatprep.mubr.bf16.mxu0 0
      %314 = vmatmul.mubr.bf16.gmra.mrb[0].mxu0 %v279
      %v315 = vpop.f32.mrb[0].mxu0
      %v316 = vadd.f32 %v264, %v315
      %v317 = vpop.f32.mrb[0].mxu0
      %v318 = vpop.f32.mrb[0].mxu0
      %v319 = vpop.f32.mrb[0].mxu0
      %320 = vdwg.mxu0
      %321 = vst [vmem:[%s219] sm:$0xff] %v316
      %p322 = scmp.lt.s32.totalorder %s16, 1
      %s323 = scalar_select %p322, %s16, 1
      %s324 = smul.addr %s323, 8
      %s325 = scalar_lea.vmem %s5, %s324
      // Predicated region
      $region41: #{forward.23} parent=39 // pred_check
        %p326 = pneg %p144
      $region42: #{forward.23} parent=39 // pred_check_branch
        %328 = sbr.rel (%p326) target = $region44
      $region43: #{forward.23} parent=39 // pred_region
        _
      $region44: #{forward.23} parent=39 // pred_fallthru
        _
    $region40: #{forward.23} parent=5 // pred_fallthru
      _
    %p329 = scmp.le.s32.totalorder 2, %s11
    // Predicated region
    $region45: #{forward.23} parent=5 // pred_check
      %p330 = pneg %p329
    $region46: #{forward.23} parent=5 // pred_check_branch
      %332 = sbr.rel (%p330) target = $region48
    $region47: #{forward.23} parent=5 // pred_region
      %s333 = ssub.s32 %s11, 2
      // Predicated region
      $region49: #{forward.23} parent=47 // pred_check
        %p334 = pneg %p150
      $region50: #{forward.23} parent=47 // pred_check_branch
        %336 = sbr.rel (%p334) target = $region52
      $region51: #{forward.23} parent=47 // pred_region
        %p337 = scmp.lt.s32.totalorder %s17, 1
        %s338 = scalar_select %p337, %s17, 1
        %s339 = smul.addr %s338, 8
        %s340 = scalar_lea.vmem %s5, %s339
      $region52: #{forward.23} parent=47 // pred_fallthru
        _
    $region48: #{forward.23} parent=5 // pred_fallthru
      _
  $region6: #{forward.23} parent=0 // loop_footer
    %s15 = sadd.s32 1, %s11
  $region7: #{forward.23} parent=0 // loop_footer_branch
    %10 = sbr.rel target = $region3
  $region8: #{forward.23} parent=0 // loop_exit
    _

</llo_original>
